<compile_context>
chip_gen: v5e
topology: v5e:2x2
jax: 0.10.0
libtpu: 0.0.40
codegen_flags: <defaults>
</compile_context>

<pallas_src>
import jax
import jax.numpy as jnp
from jax.experimental import pallas as pl
from jax.experimental.pallas import tpu as pltpu

# ---------------- model hyper-params ----------------------------------------
IN_CH = 32        # in_channel
HID = 64          # dense_channels = [64, 64]
GROUPS = 8        # num_norm_groups
GROUP_SIZE = HID // GROUPS
POS_DIM = 3
NODE_NUM = 16
OUT_CH = POS_DIM * NODE_NUM   # 48 (nodewise=False)
OUT_PAD = 128                 # lane-dense padded output width

NEG_SLOPE = 0.01  # torch.nn.LeakyReLU default negative_slope ('lrelu')
EPS = 1e-5        # torch.nn.GroupNorm default eps
INV_GS = 1.0 / GROUP_SIZE

# ---------------- kernel tiling ----------------------------------------------
TILE_B = 256                       # rows per grid step (fills MXU M dim)
W_ROWS = IN_CH + 2 * HID           # 160: w1 | w2 | w3p stacked along sublanes
C_ROWS = 24 + HID                  # 88 : biases + 2 gamma-scaled gmats + gmat


# ---------------- Pallas kernel ----------------------------------------------
def graph_decoder_kernel(x_ref, w_ref, c_ref, o_ref):
    x = x_ref[...]                                   # (TILE_B, IN_CH) bf16

    # Weight slab (bf16): static sublane-aligned slices.
    w1 = w_ref[0:IN_CH, :HID]                        # (32, 64)
    w2 = w_ref[IN_CH:IN_CH + HID, :HID]              # (64, 64)
    w3 = w_ref[IN_CH + HID:IN_CH + 2 * HID, :]       # (64, 128), zero beyond 48

    # Constants slab (f32).
    b1 = c_ref[0:1, :HID]
    be1 = c_ref[1:2, :HID]
    b2 = c_ref[2:3, :HID]
    be2 = c_ref[3:4, :HID]
    b3 = c_ref[4:5, :]                               # (1, 128), zero beyond 48
    g1mat_t = c_ref[8:16, :HID]                      # (G, HID)  gamma1-scaled
    g2mat_t = c_ref[16:24, :HID]                     # (G, HID)  gamma2-scaled
    gmat = c_ref[24:24 + HID, :GROUPS]               # (HID, G)  unscaled (stats)

    tb = x.shape[0]

    def group_norm(h, gmat_gamma_t, beta):
        # Per-group stats with ONE NN matmul ([h ; h*h] stacked along sublanes),
        # then broadcast [mean*inv ; inv] back through the gamma-scaled group
        # matrix with ONE NN matmul.  All in f32.
        hh = jnp.concatenate([h, h * h], axis=0)                       # (2TB, HID)
        stats = jnp.dot(hh, gmat,
                        preferred_element_type=jnp.float32) * INV_GS   # (2TB, G)
        mean_g = stats[:tb]                                            # (TB, G)
        var_g = stats[tb:] - mean_g * mean_g                           # biased var
        inv_g = jax.lax.rsqrt(var_g + EPS)
        mi = jnp.concatenate([mean_g * inv_g, inv_g], axis=0)          # (2TB, G)
        mc = jnp.dot(mi, gmat_gamma_t,
                     preferred_element_type=jnp.float32)               # (2TB, HID)
        # y = h*(inv*gamma) - mean*inv*gamma + beta  (FMA form)
        return h * mc[tb:] + (beta - mc[:tb])

    def lrelu(v):
        return jnp.where(v >= 0, v, NEG_SLOPE * v)

    # DenseBlock 1: Linear (bf16 operands, f32 acc) -> GroupNorm -> LeakyReLU
    h = jnp.dot(x, w1, preferred_element_type=jnp.float32) + b1
    h = lrelu(group_norm(h, g1mat_t, be1))

    # DenseBlock 2
    h = jnp.dot(h.astype(jnp.bfloat16), w2,
                preferred_element_type=jnp.float32) + b2
    h = lrelu(group_norm(h, g2mat_t, be2))

    # Final DenseBlock (norm=None, activation=None): plain Linear, lane-padded.
    out = jnp.dot(h.astype(jnp.bfloat16), w3,
                  preferred_element_type=jnp.float32) + b3
    o_ref[...] = out.astype(o_ref.dtype)


# ---------------- wrapper -----------------------------------------------------
def graph_decoder_forward(x, kernel_params, t=None, c=None):
    """Returns (pos, feature, edge) like GraphDecoder.forward.

    feature / edge are None for this config (node_dim=0, recon_edge=False).
    time/condition channels are 0, so t/c are accepted and ignored.
    """
    del t, c
    wslab, cslab = kernel_params
    n = x.shape[0]
    n_tiles = pl.cdiv(n, TILE_B)
    n_pad = n_tiles * TILE_B
    if n_pad != n:
        x = jnp.pad(x, ((0, n_pad - n), (0, 0)))
    xb = x.astype(jnp.bfloat16)

    out = pl.pallas_call(
        graph_decoder_kernel,
        out_shape=jax.ShapeDtypeStruct((n_pad, OUT_PAD), jnp.float32),
        grid=(n_tiles,),
        in_specs=[
            pl.BlockSpec((TILE_B, IN_CH), lambda i: (i, 0)),   # x row tile
            pl.BlockSpec((W_ROWS, 128), lambda i: (0, 0)),     # weight slab (bf16)
            pl.BlockSpec((C_ROWS, 128), lambda i: (0, 0)),     # constants slab (f32)
        ],
        out_specs=pl.BlockSpec((TILE_B, OUT_PAD), lambda i: (i, 0)),
        compiler_params=pltpu.CompilerParams(
            dimension_semantics=("parallel",)),                # v7x: shard tiles over 2 TCs
    )(xb, wslab, cslab)

    # Lane-padded buffer is the hot-path output; slice/reshape deferred to here
    # (outside the kernel).  Columns 48:127 are exactly zero by construction.
    pos = out[:n, :OUT_CH].reshape(-1, POS_DIM)   # not nodewise -> reshape(-1, pos_dim)
    feature = None                                # node_dim = 0 / recon_feature = False
    edge = None                                   # recon_edge = False
    # TODO(synk): recon_edge path (inner-product decoder + sparse COO edge tensor)
    # has no clean Pallas equivalent and is disabled in this config.
    return pos, feature, edge


# ---------------- deterministic parameter init --------------------------------
def make_params(key):
    ks = jax.random.split(key, 6)
    w1 = jax.random.normal(ks[0], (IN_CH, HID), jnp.float32) * 0.1
    b1 = jax.random.normal(ks[1], (HID,), jnp.float32) * 0.01
    w2 = jax.random.normal(ks[2], (HID, HID), jnp.float32) * 0.1
    b2 = jax.random.normal(ks[3], (HID,), jnp.float32) * 0.01
    w3 = jax.random.normal(ks[4], (HID, OUT_CH), jnp.float32) * 0.1
    b3 = jax.random.normal(ks[5], (OUT_CH,), jnp.float32) * 0.01
    # GroupNorm affine params: torch init (weight=1, bias=0)
    g1 = jnp.ones((HID,), jnp.float32)
    be1 = jnp.zeros((HID,), jnp.float32)
    g2 = jnp.ones((HID,), jnp.float32)
    be2 = jnp.zeros((HID,), jnp.float32)
    return (w1, b1, g1, be1, w2, b2, g2, be2, w3, b3)


def pack_params(raw):
    """Pack parameters into two slabs: one bf16 weight slab, one f32 constants slab."""
    (w1, b1, g1, be1, w2, b2, g2, be2, w3, b3) = raw

    # Weight slab (bf16): w1 | w2 | w3 (lane-padded to 128) along sublanes.
    wslab = jnp.zeros((W_ROWS, 128), jnp.float32)
    wslab = wslab.at[0:IN_CH, :HID].set(w1)
    wslab = wslab.at[IN_CH:IN_CH + HID, :HID].set(w2)
    wslab = wslab.at[IN_CH + HID:IN_CH + 2 * HID, :OUT_CH].set(w3)
    wslab = wslab.astype(jnp.bfloat16)

    # One-hot group membership: channel c belongs to group c // GROUP_SIZE.
    gmat_t = (jnp.arange(HID)[None, :] // GROUP_SIZE
              == jnp.arange(GROUPS)[:, None]).astype(jnp.float32)   # (G, HID)
    gmat = gmat_t.T                                                  # (HID, G)

    # Constants slab (f32): biases/betas, gamma-scaled broadcast matrices,
    # unscaled stats matrix.
    cslab = jnp.zeros((C_ROWS, 128), jnp.float32)
    cslab = cslab.at[0, :HID].set(b1)
    cslab = cslab.at[1, :HID].set(be1)
    cslab = cslab.at[2, :HID].set(b2)
    cslab = cslab.at[3, :HID].set(be2)
    cslab = cslab.at[4, :OUT_CH].set(b3)
    cslab = cslab.at[8:16, :HID].set(gmat_t * g1[None, :])
    cslab = cslab.at[16:24, :HID].set(gmat_t * g2[None, :])
    cslab = cslab.at[24:24 + HID, :GROUPS].set(gmat)
    return (wslab, cslab)


# ---------------- pure-JAX reference (for verification) -----------------------
def reference_forward(x, raw, matmul_dtype=jnp.float32):
    (w1, b1, g1, be1, w2, b2, g2, be2, w3, b3) = raw

    def mm(a, w):
        return jnp.dot(a.astype(matmul_dtype), w.astype(matmul_dtype),
                       preferred_element_type=jnp.float32)

    def gn(h, gamma, beta):
        n, c = h.shape
        hg = h.reshape(n, GROUPS, c // GROUPS)
        m = hg.mean(-1, keepdims=True)
        v = hg.var(-1, keepdims=True)
        hg = (hg - m) / jnp.sqrt(v + EPS)
        return hg.reshape(n, c) * gamma + beta

    lrelu = lambda v: jnp.where(v >= 0, v, NEG_SLOPE * v)
    h = lrelu(gn(mm(x, w1) + b1, g1, be1))
    h = lrelu(gn(mm(h, w2) + b2, g2, be2))
    out = mm(h, w3) + b3
    return out.reshape(-1, POS_DIM)


# ---------------- main ---------------------------------------------------------
if __name__ == "__main__":
    B_TOTAL = 512   # batch of latent vectors (2 grid tiles of 256 rows)

    key = jax.random.PRNGKey(0)
    kx, kp = jax.random.split(key)
    x = jax.random.normal(kx, (B_TOTAL, IN_CH), jnp.float32)

    raw = make_params(kp)
    kernel_params = pack_params(raw)

    pos, feature, edge = graph_decoder_forward(x, kernel_params)
    pos = jax.block_until_ready(pos)

    assert pos.shape == (B_TOTAL * NODE_NUM, POS_DIM), pos.shape
    assert feature is None and edge is None

    # Tight check against a reference that mirrors the kernel's bf16 matmul
    # operands (GroupNorm/elementwise in f32), loose sanity check vs. pure f32.
    ref_bf16 = reference_forward(x, raw, matmul_dtype=jnp.bfloat16)
    ref_f32 = reference_forward(x, raw, matmul_dtype=jnp.float32)
    assert jnp.allclose(pos, ref_bf16, atol=2e-3, rtol=2e-3), \
        float(jnp.max(jnp.abs(pos - ref_bf16)))
    assert jnp.allclose(pos, ref_f32, atol=5e-2, rtol=5e-2), \
        float(jnp.max(jnp.abs(pos - ref_f32)))

    print("KERNEL_OK")
</pallas_src>

<mosaic_0001>
module attributes {stable_mosaic.version = 11 : i64} {
  func.func @graph_decoder_kernel(%arg0: i32, %arg1: memref<256x32xbf16, #tpu.memory_space<vmem>>, %arg2: memref<160x128xbf16, #tpu.memory_space<vmem>>, %arg3: memref<88x128xf32, #tpu.memory_space<vmem>>, %arg4: memref<256x128xf32, #tpu.memory_space<vmem>>) attributes {dimension_semantics = [#tpu.dimension_semantics<parallel>], iteration_bounds = array<i64: 2>, scalar_prefetch = 0 : i64, scratch_operands = 0 : i64, tpu.core_type = #tpu.core_type<tc>, window_params = [{transform_indices = @transform_0, window_bounds = array<i64: 256, 32>}, {pipeline_mode = #tpu.pipeline_mode<synchronous>, transform_indices = @transform_1, window_bounds = array<i64: 160, 128>}, {pipeline_mode = #tpu.pipeline_mode<synchronous>, transform_indices = @transform_2, window_bounds = array<i64: 88, 128>}, {transform_indices = @transform_3, window_bounds = array<i64: 256, 128>}]} {
    %c0 = arith.constant 0 : index
    %c0_0 = arith.constant 0 : index
    %0 = vector.load %arg1[%c0, %c0_0] : memref<256x32xbf16, #tpu.memory_space<vmem>>, vector<256x32xbf16>
    %c0_1 = arith.constant 0 : index
    %c0_2 = arith.constant 0 : index
    %1 = vector.load %arg2[%c0_1, %c0_2] : memref<160x128xbf16, #tpu.memory_space<vmem>>, vector<32x64xbf16>
    %c32 = arith.constant 32 : index
    %c0_3 = arith.constant 0 : index
    %2 = vector.load %arg2[%c32, %c0_3] : memref<160x128xbf16, #tpu.memory_space<vmem>>, vector<64x64xbf16>
    %c96 = arith.constant 96 : index
    %c0_4 = arith.constant 0 : index
    %3 = vector.load %arg2[%c96, %c0_4] : memref<160x128xbf16, #tpu.memory_space<vmem>>, vector<64x128xbf16>
    %c0_5 = arith.constant 0 : index
    %c0_6 = arith.constant 0 : index
    %4 = vector.load %arg3[%c0_5, %c0_6] : memref<88x128xf32, #tpu.memory_space<vmem>>, vector<1x64xf32>
    %c1 = arith.constant 1 : index
    %c0_7 = arith.constant 0 : index
    %5 = vector.load %arg3[%c1, %c0_7] : memref<88x128xf32, #tpu.memory_space<vmem>>, vector<1x64xf32>
    %c2 = arith.constant 2 : index
    %c0_8 = arith.constant 0 : index
    %6 = vector.load %arg3[%c2, %c0_8] : memref<88x128xf32, #tpu.memory_space<vmem>>, vector<1x64xf32>
    %c3 = arith.constant 3 : index
    %c0_9 = arith.constant 0 : index
    %7 = vector.load %arg3[%c3, %c0_9] : memref<88x128xf32, #tpu.memory_space<vmem>>, vector<1x64xf32>
    %c4 = arith.constant 4 : index
    %c0_10 = arith.constant 0 : index
    %8 = vector.load %arg3[%c4, %c0_10] : memref<88x128xf32, #tpu.memory_space<vmem>>, vector<1x128xf32>
    %c8 = arith.constant 8 : index
    %c0_11 = arith.constant 0 : index
    %9 = vector.load %arg3[%c8, %c0_11] : memref<88x128xf32, #tpu.memory_space<vmem>>, vector<8x64xf32>
    %c16 = arith.constant 16 : index
    %c0_12 = arith.constant 0 : index
    %10 = vector.load %arg3[%c16, %c0_12] : memref<88x128xf32, #tpu.memory_space<vmem>>, vector<8x64xf32>
    %c24 = arith.constant 24 : index
    %c0_13 = arith.constant 0 : index
    %11 = vector.load %arg3[%c24, %c0_13] : memref<88x128xf32, #tpu.memory_space<vmem>>, vector<64x8xf32>
    %cst = arith.constant dense<0.000000e+00> : vector<256x64xf32>
    %12 = tpu.matmul %0, %1, %cst {dimension_numbers = #tpu.dot_dimension_numbers<[1], [0], [0], [1], [0, 0, 1, 1], [], []>} : vector<256x32xbf16>, vector<32x64xbf16>, vector<256x64xf32> -> vector<256x64xf32>
    %13 = vector.broadcast %4 : vector<1x64xf32> to vector<256x64xf32>
    %14 = arith.addf %12, %13 : vector<256x64xf32>
    %15 = arith.mulf %14, %14 : vector<256x64xf32>
    %16 = tpu.concatenate %14, %15 in 0 : vector<256x64xf32>, vector<256x64xf32> -> vector<512x64xf32>
    %cst_14 = arith.constant dense<0.000000e+00> : vector<512x8xf32>
    %17 = tpu.matmul %16, %11, %cst_14 {dimension_numbers = #tpu.dot_dimension_numbers<[1], [0], [0], [1], [0, 0, 1, 1], [], []>} : vector<512x64xf32>, vector<64x8xf32>, vector<512x8xf32> -> vector<512x8xf32>
    %cst_15 = arith.constant 1.250000e-01 : f32
    %18 = vector.broadcast %cst_15 : f32 to vector<512x8xf32>
    %19 = arith.mulf %17, %18 : vector<512x8xf32>
    %20 = vector.extract_strided_slice %19 {offsets = [0, 0], sizes = [256, 8], strides = [1, 1]} : vector<512x8xf32> to vector<256x8xf32>
    %21 = vector.extract_strided_slice %19 {offsets = [256, 0], sizes = [256, 8], strides = [1, 1]} : vector<512x8xf32> to vector<256x8xf32>
    %22 = arith.mulf %20, %20 : vector<256x8xf32>
    %23 = arith.subf %21, %22 : vector<256x8xf32>
    %cst_16 = arith.constant 9.99999974E-6 : f32
    %24 = vector.broadcast %cst_16 : f32 to vector<256x8xf32>
    %25 = arith.addf %23, %24 : vector<256x8xf32>
    %26 = math.rsqrt %25 : vector<256x8xf32>
    %27 = arith.mulf %20, %26 : vector<256x8xf32>
    %28 = tpu.concatenate %27, %26 in 0 : vector<256x8xf32>, vector<256x8xf32> -> vector<512x8xf32>
    %cst_17 = arith.constant dense<0.000000e+00> : vector<512x64xf32>
    %29 = tpu.matmul %28, %9, %cst_17 {dimension_numbers = #tpu.dot_dimension_numbers<[1], [0], [0], [1], [0, 0, 1, 1], [], []>} : vector<512x8xf32>, vector<8x64xf32>, vector<512x64xf32> -> vector<512x64xf32>
    %30 = vector.extract_strided_slice %29 {offsets = [256, 0], sizes = [256, 64], strides = [1, 1]} : vector<512x64xf32> to vector<256x64xf32>
    %31 = arith.mulf %14, %30 : vector<256x64xf32>
    %32 = vector.extract_strided_slice %29 {offsets = [0, 0], sizes = [256, 64], strides = [1, 1]} : vector<512x64xf32> to vector<256x64xf32>
    %33 = vector.broadcast %5 : vector<1x64xf32> to vector<256x64xf32>
    %34 = arith.subf %33, %32 : vector<256x64xf32>
    %35 = arith.addf %31, %34 : vector<256x64xf32>
    %cst_18 = arith.constant 0.000000e+00 : f32
    %36 = vector.broadcast %cst_18 : f32 to vector<256x64xf32>
    %37 = arith.cmpf oge, %35, %36 : vector<256x64xf32>
    %cst_19 = arith.constant 0.00999999977 : f32
    %38 = vector.broadcast %cst_19 : f32 to vector<256x64xf32>
    %39 = arith.mulf %38, %35 : vector<256x64xf32>
    %40 = arith.select %37, %35, %39 : vector<256x64xi1>, vector<256x64xf32>
    %41 = arith.truncf %40 : vector<256x64xf32> to vector<256x64xbf16>
    %cst_20 = arith.constant dense<0.000000e+00> : vector<256x64xf32>
    %42 = tpu.matmul %41, %2, %cst_20 {dimension_numbers = #tpu.dot_dimension_numbers<[1], [0], [0], [1], [0, 0, 1, 1], [], []>} : vector<256x64xbf16>, vector<64x64xbf16>, vector<256x64xf32> -> vector<256x64xf32>
    %43 = vector.broadcast %6 : vector<1x64xf32> to vector<256x64xf32>
    %44 = arith.addf %42, %43 : vector<256x64xf32>
    %45 = arith.mulf %44, %44 : vector<256x64xf32>
    %46 = tpu.concatenate %44, %45 in 0 : vector<256x64xf32>, vector<256x64xf32> -> vector<512x64xf32>
    %cst_21 = arith.constant dense<0.000000e+00> : vector<512x8xf32>
    %47 = tpu.matmul %46, %11, %cst_21 {dimension_numbers = #tpu.dot_dimension_numbers<[1], [0], [0], [1], [0, 0, 1, 1], [], []>} : vector<512x64xf32>, vector<64x8xf32>, vector<512x8xf32> -> vector<512x8xf32>
    %cst_22 = arith.constant 1.250000e-01 : f32
    %48 = vector.broadcast %cst_22 : f32 to vector<512x8xf32>
    %49 = arith.mulf %47, %48 : vector<512x8xf32>
    %50 = vector.extract_strided_slice %49 {offsets = [0, 0], sizes = [256, 8], strides = [1, 1]} : vector<512x8xf32> to vector<256x8xf32>
    %51 = vector.extract_strided_slice %49 {offsets = [256, 0], sizes = [256, 8], strides = [1, 1]} : vector<512x8xf32> to vector<256x8xf32>
    %52 = arith.mulf %50, %50 : vector<256x8xf32>
    %53 = arith.subf %51, %52 : vector<256x8xf32>
    %cst_23 = arith.constant 9.99999974E-6 : f32
    %54 = vector.broadcast %cst_23 : f32 to vector<256x8xf32>
    %55 = arith.addf %53, %54 : vector<256x8xf32>
    %56 = math.rsqrt %55 : vector<256x8xf32>
    %57 = arith.mulf %50, %56 : vector<256x8xf32>
    %58 = tpu.concatenate %57, %56 in 0 : vector<256x8xf32>, vector<256x8xf32> -> vector<512x8xf32>
    %cst_24 = arith.constant dense<0.000000e+00> : vector<512x64xf32>
    %59 = tpu.matmul %58, %10, %cst_24 {dimension_numbers = #tpu.dot_dimension_numbers<[1], [0], [0], [1], [0, 0, 1, 1], [], []>} : vector<512x8xf32>, vector<8x64xf32>, vector<512x64xf32> -> vector<512x64xf32>
    %60 = vector.extract_strided_slice %59 {offsets = [256, 0], sizes = [256, 64], strides = [1, 1]} : vector<512x64xf32> to vector<256x64xf32>
    %61 = arith.mulf %44, %60 : vector<256x64xf32>
    %62 = vector.extract_strided_slice %59 {offsets = [0, 0], sizes = [256, 64], strides = [1, 1]} : vector<512x64xf32> to vector<256x64xf32>
    %63 = vector.broadcast %7 : vector<1x64xf32> to vector<256x64xf32>
    %64 = arith.subf %63, %62 : vector<256x64xf32>
    %65 = arith.addf %61, %64 : vector<256x64xf32>
    %cst_25 = arith.constant 0.000000e+00 : f32
    %66 = vector.broadcast %cst_25 : f32 to vector<256x64xf32>
    %67 = arith.cmpf oge, %65, %66 : vector<256x64xf32>
    %cst_26 = arith.constant 0.00999999977 : f32
    %68 = vector.broadcast %cst_26 : f32 to vector<256x64xf32>
    %69 = arith.mulf %68, %65 : vector<256x64xf32>
    %70 = arith.select %67, %65, %69 : vector<256x64xi1>, vector<256x64xf32>
    %71 = arith.truncf %70 : vector<256x64xf32> to vector<256x64xbf16>
    %cst_27 = arith.constant dense<0.000000e+00> : vector<256x128xf32>
    %72 = tpu.matmul %71, %3, %cst_27 {dimension_numbers = #tpu.dot_dimension_numbers<[1], [0], [0], [1], [0, 0, 1, 1], [], []>} : vector<256x64xbf16>, vector<64x128xbf16>, vector<256x128xf32> -> vector<256x128xf32>
    %73 = vector.broadcast %8 : vector<1x128xf32> to vector<256x128xf32>
    %74 = arith.addf %72, %73 : vector<256x128xf32>
    %c0_28 = arith.constant 0 : index
    %c0_29 = arith.constant 0 : index
    %75 = vector.load %arg4[%c0_28, %c0_29] : memref<256x128xf32, #tpu.memory_space<vmem>>, vector<256x128xf32>
    tpu.vector_store %arg4[%c0_28, %c0_29], %74 {strides = array<i32>} : memref<256x128xf32, #tpu.memory_space<vmem>>, vector<256x128xf32>,
    return
  }
  func.func @transform_0(%arg0: i32) -> (i32, i32) {
    %c0_i32 = arith.constant 0 : i32
    %c0_i32_0 = arith.constant 0 : i32
    return %arg0, %c0_i32 : i32, i32
  }
  func.func @transform_1(%arg0: i32) -> (i32, i32) {
    %c0_i32 = arith.constant 0 : i32
    %c0_i32_0 = arith.constant 0 : i32
    %c0_i32_1 = arith.constant 0 : i32
    return %c0_i32, %c0_i32_0 : i32, i32
  }
  func.func @transform_2(%arg0: i32) -> (i32, i32) {
    %c0_i32 = arith.constant 0 : i32
    %c0_i32_0 = arith.constant 0 : i32
    %c0_i32_1 = arith.constant 0 : i32
    return %c0_i32, %c0_i32_0 : i32, i32
  }
  func.func @transform_3(%arg0: i32) -> (i32, i32) {
    %c0_i32 = arith.constant 0 : i32
    %c0_i32_0 = arith.constant 0 : i32
    return %arg0, %c0_i32 : i32, i32
  }
}

</mosaic_0001>

<llo_original>
// kernel: tpu_custom_call.1
$region0: #{tpu_custom_call.1}
  #allocation0 [shape = 'u32[]', space=smem, size = 0x4, offset = 0x4, fixed_abs, tag = 'smem constant byte address 0x4 - core index']
  #allocation1 [shape = 'u32[72,128]{1,0:T(1,128)}', space=vmem, size = 0x9000, scoped, tag = 'internal scratch']
  %s0 = inlined_call_operand.vmem [shape: bf16[512,32], index: 0, kind: input, shape index: {}]
  %s1 = inlined_call_operand.vmem [shape: bf16[160,128], index: 1, kind: input, shape index: {}]
  %s2 = inlined_call_operand.vmem [shape: f32[88,128], index: 2, kind: input, shape index: {}]
  %s3 = inlined_call_operand.hbm [shape: f32[512,128], index: 3, kind: output, shape index: {}]
  %s4 = sld [smem:[#allocation0]]
  $region45: #{tpu_custom_call.1} parent=0
    _
  %s6 = ssub.s32 1, %s4
  %s7 = scalar_select 0, %s6, %s4
  $region1: #{tpu_custom_call.1} parent=0
    #allocation2 [shape = 'u8[262144]{0}', space=vmem, size = 0x40000, scoped, tag = 'output window, operand 0']
    #allocation3 [shape = 's32[2]{0}', space=sflag, size = 0x8, scoped, tag = 'scoped memory for tpu_custom_call.1']
    %8 = vsyncpa [#allocation3], 0
    %s9 = scalar_lea.sflag [#allocation3], 1
    %10 = vsyncpa %s9, 0
    loop: start=0, step=1, limit=4
    $region2: #{tpu_custom_call.1} parent=1 // loop_pre_header
      _
    $region3: #{tpu_custom_call.1} parent=1 // loop_header
      %s12 = sphi 0, %s16
      %p13 = scmp.ge.s32.totalorder %s12, 4
      %s22 = sphi 0, %s24
      %s25 = sphi 0, %s22
      %s26 = sphi 0, %s25
      %s42 = sphi 0, %s26
      %s46 = sphi 0, %s46
      %s48 = sphi 0, %s46
      %s49 = sphi 0, %s48
      %s63 = sphi 0, %s49
      %s67 = sphi 0, %s67
      %s69 = sphi 0, %s67
      %s70 = sphi 0, %s69
      %s84 = sphi 0, %s70
      %s90 = sphi 0, %s92
      %s93 = sphi 0, %s90
      %s94 = sphi 0, %s93
      %s110 = sphi 0, %s94
    $region4: #{tpu_custom_call.1} parent=1 // loop_header_branch
      %15 = sbr.rel (%p13) target = $region8
    $region5: #{tpu_custom_call.1} parent=1 // loop_body
      %s17 = ssub.s32 %s12, 1
      %s18 = ssub.s32 %s12, 2
      %s19 = sadd.s32 %s12, 1
      %s20 = ssub.s32 %s12, %s19
      %p21 = scmp.eq.s32.totalorder %s20, 0
      %s23 = sadd.s32 %s22, 1
      %s24 = scalar_select %p21, %s22, %s23
      %p27 = pneg %p21
      %p28 = scmp.eq.s32.totalorder %s12, 1
      %p29 = por %p27, %p28
      %p30 = scmp.ne.s32.totalorder %s22, %s25
      %p31 = scmp.eq.s32.totalorder %s12, 0
      %p32 = por %p30, %p31
      %p33 = scmp.ne.s32.totalorder %s22, %s25
      %p34 = scmp.eq.s32.totalorder %s17, 1
      %p35 = por %p33, %p34
      %p36 = scmp.ne.s32.totalorder %s25, %s26
      %p37 = scmp.eq.s32.totalorder %s17, 0
      %p38 = por %p36, %p37
      %p39 = scmp.ne.s32.totalorder %s25, %s26
      %p40 = scmp.eq.s32.totalorder %s18, 1
      %p41 = por %p39, %p40
      %p43 = scmp.ne.s32.totalorder %s26, %s42
      %p44 = scmp.eq.s32.totalorder %s18, 0
      %p45 = por %p43, %p44
      %s47 = sadd.s32 %s46, 1
      %p50 = scmp.eq.s32.totalorder %s12, 1
      %p51 = scmp.ne.s32.totalorder %s46, %s48
      %p52 = scmp.eq.s32.totalorder %s12, 0
      %p53 = por %p51, %p52
      %p54 = scmp.ne.s32.totalorder %s46, %s48
      %p55 = scmp.eq.s32.totalorder %s17, 1
      %p56 = por %p54, %p55
      %p57 = scmp.ne.s32.totalorder %s48, %s49
      %p58 = scmp.eq.s32.totalorder %s17, 0
      %p59 = por %p57, %p58
      %p60 = scmp.ne.s32.totalorder %s48, %s49
      %p61 = scmp.eq.s32.totalorder %s18, 1
      %p62 = por %p60, %p61
      %p64 = scmp.ne.s32.totalorder %s49, %s63
      %p65 = scmp.eq.s32.totalorder %s18, 0
      %p66 = por %p64, %p65
      %s68 = sadd.s32 %s67, 1
      %p71 = scmp.eq.s32.totalorder %s12, 1
      %p72 = scmp.ne.s32.totalorder %s67, %s69
      %p73 = scmp.eq.s32.totalorder %s12, 0
      %p74 = por %p72, %p73
      %p75 = scmp.ne.s32.totalorder %s67, %s69
      %p76 = scmp.eq.s32.totalorder %s17, 1
      %p77 = por %p75, %p76
      %p78 = scmp.ne.s32.totalorder %s69, %s70
      %p79 = scmp.eq.s32.totalorder %s17, 0
      %p80 = por %p78, %p79
      %p81 = scmp.ne.s32.totalorder %s69, %s70
      %p82 = scmp.eq.s32.totalorder %s18, 1
      %p83 = por %p81, %p82
      %p85 = scmp.ne.s32.totalorder %s70, %s84
      %p86 = scmp.eq.s32.totalorder %s18, 0
      %p87 = por %p85, %p86
      %s88 = ssub.s32 %s12, %s19
      %p89 = scmp.eq.s32.totalorder %s88, 0
      %s91 = sadd.s32 %s90, 1
      %s92 = scalar_select %p89, %s90, %s91
      %p95 = pneg %p89
      %p96 = scmp.eq.s32.totalorder %s12, 1
      %p97 = por %p95, %p96
      %p98 = scmp.ne.s32.totalorder %s90, %s93
      %p99 = scmp.eq.s32.totalorder %s12, 0
      %p100 = por %p98, %p99
      %p101 = scmp.ne.s32.totalorder %s90, %s93
      %p102 = scmp.eq.s32.totalorder %s17, 1
      %p103 = por %p101, %p102
      %p104 = scmp.ne.s32.totalorder %s93, %s94
      %p105 = scmp.eq.s32.totalorder %s17, 0
      %p106 = por %p104, %p105
      %p107 = scmp.ne.s32.totalorder %s93, %s94
      %p108 = scmp.eq.s32.totalorder %s18, 1
      %p109 = por %p107, %p108
      %p111 = scmp.ne.s32.totalorder %s94, %s110
      %p112 = scmp.eq.s32.totalorder %s18, 0
      %p113 = por %p111, %p112
      %p114 = scmp.le.s32.totalorder 1, %s12
      %p115 = scmp.lt.s32.totalorder %s12, 3
      %p116 = pnand %p114, %p115
      %p117 = pneg %p116
      // Predicated region
      $region9: #{tpu_custom_call.1} parent=5 // pred_check
        _
      $region10: #{tpu_custom_call.1} parent=5 // pred_check_branch
        %119 = sbr.rel (%p116) target = $region12
      $region11: #{tpu_custom_call.1} parent=5 // pred_region
        %s120 = ssub.s32 %s12, 1
        // Predicated region
        $region13: #{tpu_custom_call.1} parent=11 // pred_check
          %p121 = pneg %p59
        $region14: #{tpu_custom_call.1} parent=11 // pred_check_branch
          %123 = sbr.rel (%p121) target = $region16
        $region15: #{tpu_custom_call.1} parent=11 // pred_region
          _
        $region16: #{tpu_custom_call.1} parent=11 // pred_fallthru
          _
        // Predicated region
        $region17: #{tpu_custom_call.1} parent=11 // pred_check
          %p124 = pneg %p80
        $region18: #{tpu_custom_call.1} parent=11 // pred_check_branch
          %126 = sbr.rel (%p124) target = $region20
        $region19: #{tpu_custom_call.1} parent=11 // pred_region
          _
        $region20: #{tpu_custom_call.1} parent=11 // pred_fallthru
          _
      $region12: #{tpu_custom_call.1} parent=5 // pred_fallthru
        _
      %p127 = scmp.lt.s32.totalorder %s12, 2
      // Predicated region
      $region21: #{tpu_custom_call.1} parent=5 // pred_check
        %p128 = pneg %p127
      $region22: #{tpu_custom_call.1} parent=5 // pred_check_branch
        %130 = sbr.rel (%p128) target = $region24
      $region23: #{tpu_custom_call.1} parent=5 // pred_region
        // Predicated region
        $region25: #{tpu_custom_call.1} parent=23 // pred_check
          %p131 = pneg %p32
        $region26: #{tpu_custom_call.1} parent=23 // pred_check_branch
          %133 = sbr.rel (%p131) target = $region28
        $region27: #{tpu_custom_call.1} parent=23 // pred_region
          %s134 = smul.u32 32, %s12
          %p135 = scmp.lt.s32.totalorder %s134, 63
          %s136 = scalar_select %p135, %s134, 63
          %s137 = smul.addr %s136, 4
          %s138 = scalar_lea.vmem %s0, %s137
          %s139 = smul.u32 32, %s12
        $region28: #{tpu_custom_call.1} parent=23 // pred_fallthru
          _
      $region24: #{tpu_custom_call.1} parent=5 // pred_fallthru
        _
      %p140 = scmp.le.s32.totalorder 1, %s12
      %p141 = scmp.lt.s32.totalorder %s12, 3
      %p142 = pnand %p140, %p141
      %p143 = pneg %p142
      // Predicated region
      $region29: #{tpu_custom_call.1} parent=5 // pred_check
        _
      $region30: #{tpu_custom_call.1} parent=5 // pred_check_branch
        %145 = sbr.rel (%p142) target = $region32
      $region31: #{tpu_custom_call.1} parent=5 // pred_region
        %s146 = ssub.s32 %s12, 1
        %s147 = smul.u32 32, %s17
        %p148 = scmp.lt.s32.totalorder %s147, 63
        %s149 = scalar_select %p148, %s147, 63
        %s150 = smul.addr %s149, 4
        %s151 = scalar_lea.vmem %s0, %s150
        %p152 = pneg %p38
        %p153 = pneg %p35
        %p154 = pneg %p59
        %p155 = pneg %p56
        %p156 = pneg %p80
        %p157 = pneg %p77
        %p158 = pneg %p106
        %p159 = pneg %p103
        %s160 = sand.u32 %s93, 1
        %s161 = scalar_lea.sflag [#allocation3], %s160
        %s162 = sand.u32 %s93, 1
        %s163 = smul.addr %s162, 256
        %s164 = scalar_lea.vmem [#allocation2], %s163
        %s165 = smul.u32 32, %s17
        %p166 = scmp.lt.s32.totalorder %s165, 63
        %s167 = scalar_select %p166, %s165, 63
        %s168 = smul.addr %s167, 4
        %s169 = scalar_lea.vmem %s0, %s168
        %s170 = smul.u32 32, %s17
        %s171 = smul.u32 32, %s17
        %v173 = vld [vmem:[%s169] sm:$0xf]
        %v174 = vld [vmem:[%s169 + $0x4] sm:$0xf]
        %v175 = vld [vmem:[%s169 + $0x8] sm:$0xf]
        %v176 = vld [vmem:[%s169 + $0xc] sm:$0xf]
        %v177 = vld [vmem:[%s169 + $0x10] sm:$0xf]
        %v178 = vld [vmem:[%s169 + $0x14] sm:$0xf]
        %v179 = vld [vmem:[%s169 + $0x18] sm:$0xf]
        %v180 = vld [vmem:[%s169 + $0x1c] sm:$0xf]
        %v181 = vld [vmem:[%s169 + $0x20] sm:$0xf]
        %v182 = vld [vmem:[%s169 + $0x24] sm:$0xf]
        %v183 = vld [vmem:[%s169 + $0x28] sm:$0xf]
        %v184 = vld [vmem:[%s169 + $0x2c] sm:$0xf]
        %v185 = vld [vmem:[%s169 + $0x30] sm:$0xf]
        %v186 = vld [vmem:[%s169 + $0x34] sm:$0xf]
        %v187 = vld [vmem:[%s169 + $0x38] sm:$0xf]
        %v188 = vld [vmem:[%s169 + $0x3c] sm:$0xf]
        %v189 = vld [vmem:[%s169 + $0x40] sm:$0xf]
        %v190 = vld [vmem:[%s169 + $0x44] sm:$0xf]
        %v191 = vld [vmem:[%s169 + $0x48] sm:$0xf]
        %v192 = vld [vmem:[%s169 + $0x4c] sm:$0xf]
        %v193 = vld [vmem:[%s169 + $0x50] sm:$0xf]
        %v194 = vld [vmem:[%s169 + $0x54] sm:$0xf]
        %v195 = vld [vmem:[%s169 + $0x58] sm:$0xf]
        %v196 = vld [vmem:[%s169 + $0x5c] sm:$0xf]
        %v197 = vld [vmem:[%s169 + $0x60] sm:$0xf]
        %v198 = vld [vmem:[%s169 + $0x64] sm:$0xf]
        %v199 = vld [vmem:[%s169 + $0x68] sm:$0xf]
        %v200 = vld [vmem:[%s169 + $0x6c] sm:$0xf]
        %v201 = vld [vmem:[%s169 + $0x70] sm:$0xf]
        %v202 = vld [vmem:[%s169 + $0x74] sm:$0xf]
        %v203 = vld [vmem:[%s169 + $0x78] sm:$0xf]
        %v204 = vld [vmem:[%s169 + $0x7c] sm:$0xf]
        %v205 = vld [vmem:[%s1] sm:$0xf]
        %v206 = vld [vmem:[%s1 + $0x4] sm:$0xf]
        %v207 = vld [vmem:[%s1 + $0x8] sm:$0xf]
        %v208 = vld [vmem:[%s1 + $0xc] sm:$0xf]
        %v209 = vld [vmem:[%s1 + $0x10] sm:$0xf]
        %v210 = vld [vmem:[%s1 + $0x14] sm:$0xf]
        %v211 = vld [vmem:[%s1 + $0x18] sm:$0xf]
        %v212 = vld [vmem:[%s1 + $0x1c] sm:$0xf]
        %v213 = vld [vmem:[%s1 + $0x20] sm:$0xf]
        %v214 = vld [vmem:[%s1 + $0x24] sm:$0xf]
        %v215 = vld [vmem:[%s1 + $0x28] sm:$0xf]
        %v216 = vld [vmem:[%s1 + $0x2c] sm:$0xf]
        %v217 = vld [vmem:[%s1 + $0x30] sm:$0xf]
        %v218 = vld [vmem:[%s1 + $0x34] sm:$0xf]
        %v219 = vld [vmem:[%s1 + $0x38] sm:$0xf]
        %v220 = vld [vmem:[%s1 + $0x3c] sm:$0xf]
        %v221 = vld [vmem:[%s1 + $0x40] sm:$0xf]
        %v222 = vld [vmem:[%s1 + $0x44] sm:$0xf]
        %v223 = vld [vmem:[%s1 + $0x48] sm:$0xf]
        %v224 = vld [vmem:[%s1 + $0x4c] sm:$0xf]
        %v225 = vld [vmem:[%s2] sm:$0x1]
        %v226 = vld [vmem:[%s2 + $0x1] sm:$0x1]
        %v227 = vld [vmem:[%s2 + $0x2] sm:$0x1]
        %v228 = vld [vmem:[%s2 + $0x3] sm:$0x1]
        %v229 = vld [vmem:[%s2 + $0x4] sm:$0x1]
        %v230 = vld [vmem:[%s2 + $0x8] sm:$0xff]
        %v231 = vld [vmem:[%s2 + $0x10] sm:$0xff]
        %v232 = vld [vmem:[%s2 + $0x18] sm:$0xff]
        %v233 = vld [vmem:[%s2 + $0x20] sm:$0xff]
        %v234 = vld [vmem:[%s2 + $0x28] sm:$0xff]
        %v235 = vld [vmem:[%s2 + $0x30] sm:$0xff]
        %v236 = vld [vmem:[%s2 + $0x38] sm:$0xff]
        %v237 = vld [vmem:[%s2 + $0x40] sm:$0xff]
        %v238 = vld [vmem:[%s2 + $0x48] sm:$0xff]
        %v239 = vld [vmem:[%s2 + $0x50] sm:$0xff]
        %v240 = vperm.slane %v225, 0
        %v273 = vunpack.c.l.b16 %v173
        %v274 = vunpack.c.l.b16 %v174
        %v275 = vunpack.c.l.b16 %v175
        %v276 = vunpack.c.l.b16 %v176
        %v277 = vunpack.c.l.b16 %v177
        %v278 = vunpack.c.l.b16 %v178
        %v279 = vunpack.c.l.b16 %v179
        %v280 = vunpack.c.l.b16 %v180
        %v281 = vunpack.c.l.b16 %v181
        %v282 = vunpack.c.l.b16 %v182
        %v283 = vunpack.c.l.b16 %v183
        %v284 = vunpack.c.l.b16 %v184
        %v285 = vunpack.c.l.b16 %v185
        %v286 = vunpack.c.l.b16 %v186
        %v287 = vunpack.c.l.b16 %v187
        %v288 = vunpack.c.l.b16 %v188
        %v289 = vunpack.c.l.b16 %v189
        %v290 = vunpack.c.l.b16 %v190
        %v291 = vunpack.c.l.b16 %v191
        %v292 = vunpack.c.l.b16 %v192
        %v293 = vunpack.c.l.b16 %v193
        %v294 = vunpack.c.l.b16 %v194
        %v295 = vunpack.c.l.b16 %v195
        %v296 = vunpack.c.l.b16 %v196
        %v297 = vunpack.c.l.b16 %v197
        %v298 = vunpack.c.l.b16 %v198
        %v299 = vunpack.c.l.b16 %v199
        %v300 = vunpack.c.l.b16 %v200
        %v301 = vunpack.c.l.b16 %v201
        %v302 = vunpack.c.l.b16 %v202
        %v303 = vunpack.c.l.b16 %v203
        %v304 = vunpack.c.l.b16 %v204
        %v305 = vpack.c.b16 %v274, %v273
        %v306 = vpack.c.b16 %v276, %v275
        %v307 = vpack.c.b16 %v278, %v277
        %v308 = vpack.c.b16 %v280, %v279
        %v309 = vpack.c.b16 %v282, %v281
        %v310 = vpack.c.b16 %v284, %v283
        %v311 = vpack.c.b16 %v286, %v285
        %v312 = vpack.c.b16 %v288, %v287
        %v313 = vpack.c.b16 %v290, %v289
        %v314 = vpack.c.b16 %v292, %v291
        %v315 = vpack.c.b16 %v294, %v293
        %v316 = vpack.c.b16 %v296, %v295
        %v317 = vpack.c.b16 %v298, %v297
        %v318 = vpack.c.b16 %v300, %v299
        %v319 = vpack.c.b16 %v302, %v301
        %v320 = vpack.c.b16 %v304, %v303
        %v325 = vunpack.c.l.b16 %v205
        %v326 = vunpack.c.l.b16 %v206
        %v327 = vunpack.c.l.b16 %v207
        %v328 = vunpack.c.l.b16 %v208
        %v329 = vpack.c.b16 %v326, %v325
        %v330 = vpack.c.b16 %v328, %v327
        %vm333 = vcmask 261120
        %v335 = vsel %vm333, %v305, 0
        %v338 = vsel %vm333, %v306, 0
        %v341 = vsel %vm333, %v307, 0
        %v344 = vsel %vm333, %v308, 0
        %v347 = vsel %vm333, %v309, 0
        %v350 = vsel %vm333, %v310, 0
        %v353 = vsel %vm333, %v311, 0
        %v356 = vsel %vm333, %v312, 0
        %v359 = vsel %vm333, %v313, 0
        %v362 = vsel %vm333, %v314, 0
        %v365 = vsel %vm333, %v315, 0
        %v368 = vsel %vm333, %v316, 0
        %v371 = vsel %vm333, %v317, 0
        %v374 = vsel %vm333, %v318, 0
        %v377 = vsel %vm333, %v319, 0
        %v380 = vsel %vm333, %v320, 0
        %382 = vmatpush.bf16.msra.mxu0 0
        %383 = vmatpush.bf16.msra.mxu0 0
        %384 = vmatpush.bf16.msra.mxu0 0
        %385 = vmatpush.bf16.msra.mxu0 0
        %386 = vmatpush.bf16.msra.mxu0 0
        %387 = vmatpush.bf16.msra.mxu0 0
        %388 = vmatpush.bf16.msra.mxu0 %v330
        %389 = vmatpush.bf16.msra.mxu0 %v329
        %390 = vmatmul.bf16.gmra.mxu0 %v335
        %v391 = vpop.f32.mrf.mxu0
        %v392 = vadd.f32 %v240, %v391
        %v393 = vpop.f32.mrf.mxu0
        %v394 = vadd.f32 %v240, %v393
        %395 = vmatmul.bf16.gmra.mxu0 %v338
        %v396 = vpop.f32.mrf.mxu0
        %v397 = vadd.f32 %v240, %v396
        %v398 = vpop.f32.mrf.mxu0
        %v399 = vadd.f32 %v240, %v398
        %400 = vmatmul.bf16.gmra.mxu0 %v341
        %v401 = vpop.f32.mrf.mxu0
        %v402 = vadd.f32 %v240, %v401
        %v403 = vpop.f32.mrf.mxu0
        %v404 = vadd.f32 %v240, %v403
        %405 = vmatmul.bf16.gmra.mxu0 %v344
        %v406 = vpop.f32.mrf.mxu0
        %v407 = vadd.f32 %v240, %v406
        %v408 = vpop.f32.mrf.mxu0
        %v409 = vadd.f32 %v240, %v408
        %410 = vmatmul.bf16.gmra.mxu0 %v347
        %v411 = vpop.f32.mrf.mxu0
        %v412 = vadd.f32 %v240, %v411
        %v413 = vpop.f32.mrf.mxu0
        %v414 = vadd.f32 %v240, %v413
        %415 = vmatmul.bf16.gmra.mxu0 %v350
        %v416 = vpop.f32.mrf.mxu0
        %v417 = vadd.f32 %v240, %v416
        %v418 = vpop.f32.mrf.mxu0
        %v419 = vadd.f32 %v240, %v418
        %420 = vmatmul.bf16.gmra.mxu0 %v353
        %v421 = vpop.f32.mrf.mxu0
        %v422 = vadd.f32 %v240, %v421
        %v423 = vpop.f32.mrf.mxu0
        %v424 = vadd.f32 %v240, %v423
        %425 = vmatmul.bf16.gmra.mxu0 %v356
        %v426 = vpop.f32.mrf.mxu0
        %v427 = vadd.f32 %v240, %v426
        %v428 = vpop.f32.mrf.mxu0
        %v429 = vadd.f32 %v240, %v428
        %430 = vmatmul.bf16.gmra.mxu0 %v359
        %v431 = vpop.f32.mrf.mxu0
        %v432 = vadd.f32 %v240, %v431
        %v433 = vpop.f32.mrf.mxu0
        %v434 = vadd.f32 %v240, %v433
        %435 = vmatmul.bf16.gmra.mxu0 %v362
        %v436 = vpop.f32.mrf.mxu0
        %v437 = vadd.f32 %v240, %v436
        %v438 = vpop.f32.mrf.mxu0
        %v439 = vadd.f32 %v240, %v438
        %440 = vmatmul.bf16.gmra.mxu0 %v365
        %v441 = vpop.f32.mrf.mxu0
        %v442 = vadd.f32 %v240, %v441
        %v443 = vpop.f32.mrf.mxu0
        %v444 = vadd.f32 %v240, %v443
        %445 = vmatmul.bf16.gmra.mxu0 %v368
        %v446 = vpop.f32.mrf.mxu0
        %v447 = vadd.f32 %v240, %v446
        %v448 = vpop.f32.mrf.mxu0
        %v449 = vadd.f32 %v240, %v448
        %450 = vmatmul.bf16.gmra.mxu0 %v371
        %v451 = vpop.f32.mrf.mxu0
        %v452 = vadd.f32 %v240, %v451
        %v453 = vpop.f32.mrf.mxu0
        %v454 = vadd.f32 %v240, %v453
        %455 = vmatmul.bf16.gmra.mxu0 %v374
        %v456 = vpop.f32.mrf.mxu0
        %v457 = vadd.f32 %v240, %v456
        %v458 = vpop.f32.mrf.mxu0
        %v459 = vadd.f32 %v240, %v458
        %460 = vmatmul.bf16.gmra.mxu0 %v377
        %v461 = vpop.f32.mrf.mxu0
        %v462 = vadd.f32 %v240, %v461
        %v463 = vpop.f32.mrf.mxu0
        %v464 = vadd.f32 %v240, %v463
        %465 = vmatmul.bf16.gmra.mxu0 %v380
        %v466 = vpop.f32.mrf.mxu0
        %v467 = vadd.f32 %v240, %v466
        %v468 = vpop.f32.mrf.mxu0
        %v469 = vadd.f32 %v240, %v468
        %470 = vdwg.mxu0
        %v471 = vmul.f32 %v392, %v392
        %v472 = vmul.f32 %v394, %v394
        %v473 = vmul.f32 %v397, %v397
        %v474 = vmul.f32 %v399, %v399
        %v475 = vmul.f32 %v402, %v402
        %v476 = vmul.f32 %v404, %v404
        %v477 = vmul.f32 %v407, %v407
        %v478 = vmul.f32 %v409, %v409
        %v479 = vmul.f32 %v412, %v412
        %v480 = vmul.f32 %v414, %v414
        %v481 = vmul.f32 %v417, %v417
        %v482 = vmul.f32 %v419, %v419
        %v483 = vmul.f32 %v422, %v422
        %v484 = vmul.f32 %v424, %v424
        %v485 = vmul.f32 %v427, %v427
        %v486 = vmul.f32 %v429, %v429
        %v487 = vmul.f32 %v432, %v432
        %v488 = vmul.f32 %v434, %v434
        %v489 = vmul.f32 %v437, %v437
        %v490 = vmul.f32 %v439, %v439
        %v491 = vmul.f32 %v442, %v442
        %v492 = vmul.f32 %v444, %v444
        %v493 = vmul.f32 %v447, %v447
        %v494 = vmul.f32 %v449, %v449
        %v495 = vmul.f32 %v452, %v452
        %v496 = vmul.f32 %v454, %v454
        %v497 = vmul.f32 %v457, %v457
        %v498 = vmul.f32 %v459, %v459
        %v499 = vmul.f32 %v462, %v462
        %v500 = vmul.f32 %v464, %v464
        %v501 = vmul.f32 %v467, %v467
        %v502 = vmul.f32 %v469, %v469
        %vm503 = vcmask 523264
        %v505 = vsel %vm503, %v392, 0
        %v508 = vsel %vm503, %v394, 0
        %v511 = vsel %vm503, %v397, 0
        %v514 = vsel %vm503, %v399, 0
        %v517 = vsel %vm503, %v402, 0
        %v520 = vsel %vm503, %v404, 0
        %v523 = vsel %vm503, %v407, 0
        %v526 = vsel %vm503, %v409, 0
        %v529 = vsel %vm503, %v412, 0
        %v532 = vsel %vm503, %v414, 0
        %v535 = vsel %vm503, %v417, 0
        %v538 = vsel %vm503, %v419, 0
        %v541 = vsel %vm503, %v422, 0
        %v544 = vsel %vm503, %v424, 0
        %v547 = vsel %vm503, %v427, 0
        %v550 = vsel %vm503, %v429, 0
        %v553 = vsel %vm503, %v432, 0
        %v556 = vsel %vm503, %v434, 0
        %v559 = vsel %vm503, %v437, 0
        %v562 = vsel %vm503, %v439, 0
        %v565 = vsel %vm503, %v442, 0
        %v568 = vsel %vm503, %v444, 0
        %v571 = vsel %vm503, %v447, 0
        %v574 = vsel %vm503, %v449, 0
        %v577 = vsel %vm503, %v452, 0
        %v580 = vsel %vm503, %v454, 0
        %v583 = vsel %vm503, %v457, 0
        %v586 = vsel %vm503, %v459, 0
        %v589 = vsel %vm503, %v462, 0
        %v592 = vsel %vm503, %v464, 0
        %v595 = vsel %vm503, %v467, 0
        %v598 = vsel %vm503, %v469, 0
        %v601 = vsel %vm503, %v471, 0
        %v604 = vsel %vm503, %v472, 0
        %v607 = vsel %vm503, %v473, 0
        %v610 = vsel %vm503, %v474, 0
        %v613 = vsel %vm503, %v475, 0
        %v616 = vsel %vm503, %v476, 0
        %v619 = vsel %vm503, %v477, 0
        %v622 = vsel %vm503, %v478, 0
        %v625 = vsel %vm503, %v479, 0
        %v628 = vsel %vm503, %v480, 0
        %v631 = vsel %vm503, %v481, 0
        %v634 = vsel %vm503, %v482, 0
        %v637 = vsel %vm503, %v483, 0
        %v640 = vsel %vm503, %v484, 0
        %v643 = vsel %vm503, %v485, 0
        %v646 = vsel %vm503, %v486, 0
        %v649 = vsel %vm503, %v487, 0
        %v652 = vsel %vm503, %v488, 0
        %v655 = vsel %vm503, %v489, 0
        %v658 = vsel %vm503, %v490, 0
        %v661 = vsel %vm503, %v491, 0
        %v664 = vsel %vm503, %v492, 0
        %v667 = vsel %vm503, %v493, 0
        %v670 = vsel %vm503, %v494, 0
        %v673 = vsel %vm503, %v495, 0
        %v676 = vsel %vm503, %v496, 0
        %v679 = vsel %vm503, %v497, 0
        %v682 = vsel %vm503, %v498, 0
        %v685 = vsel %vm503, %v499, 0
        %v688 = vsel %vm503, %v500, 0
        %v691 = vsel %vm503, %v501, 0
        %v694 = vsel %vm503, %v502, 0
        %696 = vmatpush.msra.mxu0 0.0
        %697 = vmatpush.msra.mxu0 0.0
        %698 = vmatpush.msra.mxu0 0.0
        %699 = vmatpush.msra.mxu0 0.0
        %700 = vmatpush.msra.mxu0 0.0
        %701 = vmatpush.msra.mxu0 0.0
        %702 = vmatpush.msra.mxu0 0.0
        %703 = vmatpush.msra.mxu0 0.0
        %704 = vmatpush.msra.mxu0 %v239
        %705 = vmatpush.msra.mxu0 %v238
        %706 = vmatpush.msra.mxu0 %v237
        %707 = vmatpush.msra.mxu0 %v236
        %708 = vmatpush.msra.mxu0 %v235
        %709 = vmatpush.msra.mxu0 %v234
        %710 = vmatpush.msra.mxu0 %v233
        %711 = vmatpush.msra.mxu0 %v232
        %712 = vmatmul.f32.gmra.mxu0 %v505
        %v713 = vpop.f32.mrf.mxu0
        %v714 = vadd.f32 0.0, %v713
        %715 = vmatmul.f32.gmra.mxu0 %v508
        %v716 = vpop.f32.mrf.mxu0
        %v717 = vadd.f32 0.0, %v716
        %718 = vmatmul.f32.gmra.mxu0 %v511
        %v719 = vpop.f32.mrf.mxu0
        %v720 = vadd.f32 0.0, %v719
        %721 = vmatmul.f32.gmra.mxu0 %v514
        %v722 = vpop.f32.mrf.mxu0
        %v723 = vadd.f32 0.0, %v722
        %724 = vmatmul.f32.gmra.mxu0 %v517
        %v725 = vpop.f32.mrf.mxu0
        %v726 = vadd.f32 0.0, %v725
        %727 = vmatmul.f32.gmra.mxu0 %v520
        %v728 = vpop.f32.mrf.mxu0
        %v729 = vadd.f32 0.0, %v728
        %730 = vmatmul.f32.gmra.mxu0 %v523
        %v731 = vpop.f32.mrf.mxu0
        %v732 = vadd.f32 0.0, %v731
        %733 = vmatmul.f32.gmra.mxu0 %v526
        %v734 = vpop.f32.mrf.mxu0
        %v735 = vadd.f32 0.0, %v734
        %736 = vmatmul.f32.gmra.mxu0 %v529
        %v737 = vpop.f32.mrf.mxu0
        %v738 = vadd.f32 0.0, %v737
        %739 = vmatmul.f32.gmra.mxu0 %v532
        %v740 = vpop.f32.mrf.mxu0
        %v741 = vadd.f32 0.0, %v740
        %742 = vmatmul.f32.gmra.mxu0 %v535
        %v743 = vpop.f32.mrf.mxu0
        %v744 = vadd.f32 0.0, %v743
        %745 = vmatmul.f32.gmra.mxu0 %v538
        %v746 = vpop.f32.mrf.mxu0
        %v747 = vadd.f32 0.0, %v746
        %748 = vmatmul.f32.gmra.mxu0 %v541
        %v749 = vpop.f32.mrf.mxu0
        %v750 = vadd.f32 0.0, %v749
        %751 = vmatmul.f32.gmra.mxu0 %v544
        %v752 = vpop.f32.mrf.mxu0
        %v753 = vadd.f32 0.0, %v752
        %754 = vmatmul.f32.gmra.mxu0 %v547
        %v755 = vpop.f32.mrf.mxu0
        %v756 = vadd.f32 0.0, %v755
        %757 = vmatmul.f32.gmra.mxu0 %v550
        %v758 = vpop.f32.mrf.mxu0
        %v759 = vadd.f32 0.0, %v758
        %760 = vmatmul.f32.gmra.mxu0 %v553
        %v761 = vpop.f32.mrf.mxu0
        %v762 = vadd.f32 0.0, %v761
        %763 = vmatmul.f32.gmra.mxu0 %v556
        %v764 = vpop.f32.mrf.mxu0
        %v765 = vadd.f32 0.0, %v764
        %766 = vmatmul.f32.gmra.mxu0 %v559
        %v767 = vpop.f32.mrf.mxu0
        %v768 = vadd.f32 0.0, %v767
        %769 = vmatmul.f32.gmra.mxu0 %v562
        %v770 = vpop.f32.mrf.mxu0
        %v771 = vadd.f32 0.0, %v770
        %772 = vmatmul.f32.gmra.mxu0 %v565
        %v773 = vpop.f32.mrf.mxu0
        %v774 = vadd.f32 0.0, %v773
        %775 = vmatmul.f32.gmra.mxu0 %v568
        %v776 = vpop.f32.mrf.mxu0
        %v777 = vadd.f32 0.0, %v776
        %778 = vmatmul.f32.gmra.mxu0 %v571
        %v779 = vpop.f32.mrf.mxu0
        %v780 = vadd.f32 0.0, %v779
        %781 = vmatmul.f32.gmra.mxu0 %v574
        %v782 = vpop.f32.mrf.mxu0
        %v783 = vadd.f32 0.0, %v782
        %784 = vmatmul.f32.gmra.mxu0 %v577
        %v785 = vpop.f32.mrf.mxu0
        %v786 = vadd.f32 0.0, %v785
        %787 = vmatmul.f32.gmra.mxu0 %v580
        %v788 = vpop.f32.mrf.mxu0
        %v789 = vadd.f32 0.0, %v788
        %790 = vmatmul.f32.gmra.mxu0 %v583
        %v791 = vpop.f32.mrf.mxu0
        %v792 = vadd.f32 0.0, %v791
        %793 = vmatmul.f32.gmra.mxu0 %v586
        %v794 = vpop.f32.mrf.mxu0
        %v795 = vadd.f32 0.0, %v794
        %796 = vmatmul.f32.gmra.mxu0 %v589
        %v797 = vpop.f32.mrf.mxu0
        %v798 = vadd.f32 0.0, %v797
        %799 = vmatmul.f32.gmra.mxu0 %v592
        %v800 = vpop.f32.mrf.mxu0
        %v801 = vadd.f32 0.0, %v800
        %802 = vmatmul.f32.gmra.mxu0 %v595
        %v803 = vpop.f32.mrf.mxu0
        %v804 = vadd.f32 0.0, %v803
        %805 = vmatmul.f32.gmra.mxu0 %v598
        %v806 = vpop.f32.mrf.mxu0
        %v807 = vadd.f32 0.0, %v806
        %808 = vmatmul.f32.gmra.mxu0 %v601
        %v809 = vpop.f32.mrf.mxu0
        %v810 = vadd.f32 0.0, %v809
        %811 = vmatmul.f32.gmra.mxu0 %v604
        %v812 = vpop.f32.mrf.mxu0
        %v813 = vadd.f32 0.0, %v812
        %814 = vmatmul.f32.gmra.mxu0 %v607
        %v815 = vpop.f32.mrf.mxu0
        %v816 = vadd.f32 0.0, %v815
        %817 = vmatmul.f32.gmra.mxu0 %v610
        %v818 = vpop.f32.mrf.mxu0
        %v819 = vadd.f32 0.0, %v818
        %820 = vmatmul.f32.gmra.mxu0 %v613
        %v821 = vpop.f32.mrf.mxu0
        %v822 = vadd.f32 0.0, %v821
        %823 = vmatmul.f32.gmra.mxu0 %v616
        %v824 = vpop.f32.mrf.mxu0
        %v825 = vadd.f32 0.0, %v824
        %826 = vmatmul.f32.gmra.mxu0 %v619
        %v827 = vpop.f32.mrf.mxu0
        %v828 = vadd.f32 0.0, %v827
        %829 = vmatmul.f32.gmra.mxu0 %v622
        %v830 = vpop.f32.mrf.mxu0
        %v831 = vadd.f32 0.0, %v830
        %832 = vmatmul.f32.gmra.mxu0 %v625
        %v833 = vpop.f32.mrf.mxu0
        %v834 = vadd.f32 0.0, %v833
        %835 = vmatmul.f32.gmra.mxu0 %v628
        %v836 = vpop.f32.mrf.mxu0
        %v837 = vadd.f32 0.0, %v836
        %838 = vmatmul.f32.gmra.mxu0 %v631
        %v839 = vpop.f32.mrf.mxu0
        %v840 = vadd.f32 0.0, %v839
        %841 = vmatmul.f32.gmra.mxu0 %v634
        %v842 = vpop.f32.mrf.mxu0
        %v843 = vadd.f32 0.0, %v842
        %844 = vmatmul.f32.gmra.mxu0 %v637
        %v845 = vpop.f32.mrf.mxu0
        %v846 = vadd.f32 0.0, %v845
        %847 = vmatmul.f32.gmra.mxu0 %v640
        %v848 = vpop.f32.mrf.mxu0
        %v849 = vadd.f32 0.0, %v848
        %850 = vmatmul.f32.gmra.mxu0 %v643
        %v851 = vpop.f32.mrf.mxu0
        %v852 = vadd.f32 0.0, %v851
        %853 = vmatmul.f32.gmra.mxu0 %v646
        %v854 = vpop.f32.mrf.mxu0
        %v855 = vadd.f32 0.0, %v854
        %856 = vmatmul.f32.gmra.mxu0 %v649
        %v857 = vpop.f32.mrf.mxu0
        %v858 = vadd.f32 0.0, %v857
        %859 = vmatmul.f32.gmra.mxu0 %v652
        %v860 = vpop.f32.mrf.mxu0
        %v861 = vadd.f32 0.0, %v860
        %862 = vmatmul.f32.gmra.mxu0 %v655
        %v863 = vpop.f32.mrf.mxu0
        %v864 = vadd.f32 0.0, %v863
        %865 = vmatmul.f32.gmra.mxu0 %v658
        %v866 = vpop.f32.mrf.mxu0
        %v867 = vadd.f32 0.0, %v866
        %868 = vmatmul.f32.gmra.mxu0 %v661
        %v869 = vpop.f32.mrf.mxu0
        %v870 = vadd.f32 0.0, %v869
        %871 = vmatmul.f32.gmra.mxu0 %v664
        %v872 = vpop.f32.mrf.mxu0
        %v873 = vadd.f32 0.0, %v872
        %874 = vmatmul.f32.gmra.mxu0 %v667
        %v875 = vpop.f32.mrf.mxu0
        %v876 = vadd.f32 0.0, %v875
        %877 = vmatmul.f32.gmra.mxu0 %v670
        %v878 = vpop.f32.mrf.mxu0
        %v879 = vadd.f32 0.0, %v878
        %880 = vmatmul.f32.gmra.mxu0 %v673
        %v881 = vpop.f32.mrf.mxu0
        %v882 = vadd.f32 0.0, %v881
        %883 = vmatmul.f32.gmra.mxu0 %v676
        %v884 = vpop.f32.mrf.mxu0
        %v885 = vadd.f32 0.0, %v884
        %886 = vmatmul.f32.gmra.mxu0 %v679
        %v887 = vpop.f32.mrf.mxu0
        %v888 = vadd.f32 0.0, %v887
        %889 = vmatmul.f32.gmra.mxu0 %v682
        %v890 = vpop.f32.mrf.mxu0
        %v891 = vadd.f32 0.0, %v890
        %892 = vmatmul.f32.gmra.mxu0 %v685
        %v893 = vpop.f32.mrf.mxu0
        %v894 = vadd.f32 0.0, %v893
        %895 = vmatmul.f32.gmra.mxu0 %v688
        %v896 = vpop.f32.mrf.mxu0
        %v897 = vadd.f32 0.0, %v896
        %898 = vmatmul.f32.gmra.mxu0 %v691
        %v899 = vpop.f32.mrf.mxu0
        %v900 = vadd.f32 0.0, %v899
        %901 = vmatmul.f32.gmra.mxu0 %v694
        %v902 = vpop.f32.mrf.mxu0
        %v903 = vadd.f32 0.0, %v902
        %904 = vdwg.mxu0
        %v905 = vmul.f32 %v714, 0.125
        %v906 = vmul.f32 %v717, 0.125
        %v907 = vmul.f32 %v720, 0.125
        %v908 = vmul.f32 %v723, 0.125
        %v909 = vmul.f32 %v726, 0.125
        %v910 = vmul.f32 %v729, 0.125
        %v911 = vmul.f32 %v732, 0.125
        %v912 = vmul.f32 %v735, 0.125
        %v913 = vmul.f32 %v738, 0.125
        %v914 = vmul.f32 %v741, 0.125
        %v915 = vmul.f32 %v744, 0.125
        %v916 = vmul.f32 %v747, 0.125
        %v917 = vmul.f32 %v750, 0.125
        %v918 = vmul.f32 %v753, 0.125
        %v919 = vmul.f32 %v756, 0.125
        %v920 = vmul.f32 %v759, 0.125
        %v921 = vmul.f32 %v762, 0.125
        %v922 = vmul.f32 %v765, 0.125
        %v923 = vmul.f32 %v768, 0.125
        %v924 = vmul.f32 %v771, 0.125
        %v925 = vmul.f32 %v774, 0.125
        %v926 = vmul.f32 %v777, 0.125
        %v927 = vmul.f32 %v780, 0.125
        %v928 = vmul.f32 %v783, 0.125
        %v929 = vmul.f32 %v786, 0.125
        %v930 = vmul.f32 %v789, 0.125
        %v931 = vmul.f32 %v792, 0.125
        %v932 = vmul.f32 %v795, 0.125
        %v933 = vmul.f32 %v798, 0.125
        %v934 = vmul.f32 %v801, 0.125
        %v935 = vmul.f32 %v804, 0.125
        %v936 = vmul.f32 %v807, 0.125
        %v937 = vmul.f32 %v810, 0.125
        %v938 = vmul.f32 %v813, 0.125
        %v939 = vmul.f32 %v816, 0.125
        %v940 = vmul.f32 %v819, 0.125
        %v941 = vmul.f32 %v822, 0.125
        %v942 = vmul.f32 %v825, 0.125
        %v943 = vmul.f32 %v828, 0.125
        %v944 = vmul.f32 %v831, 0.125
        %v945 = vmul.f32 %v834, 0.125
        %v946 = vmul.f32 %v837, 0.125
        %v947 = vmul.f32 %v840, 0.125
        %v948 = vmul.f32 %v843, 0.125
        %v949 = vmul.f32 %v846, 0.125
        %v950 = vmul.f32 %v849, 0.125
        %v951 = vmul.f32 %v852, 0.125
        %v952 = vmul.f32 %v855, 0.125
        %v953 = vmul.f32 %v858, 0.125
        %v954 = vmul.f32 %v861, 0.125
        %v955 = vmul.f32 %v864, 0.125
        %v956 = vmul.f32 %v867, 0.125
        %v957 = vmul.f32 %v870, 0.125
        %v958 = vmul.f32 %v873, 0.125
        %v959 = vmul.f32 %v876, 0.125
        %v960 = vmul.f32 %v879, 0.125
        %v961 = vmul.f32 %v882, 0.125
        %v962 = vmul.f32 %v885, 0.125
        %v963 = vmul.f32 %v888, 0.125
        %v964 = vmul.f32 %v891, 0.125
        %v965 = vmul.f32 %v894, 0.125
        %v966 = vmul.f32 %v897, 0.125
        %v967 = vmul.f32 %v900, 0.125
        %v968 = vmul.f32 %v903, 0.125
        %v969 = vmul.f32 %v905, %v905
        %v970 = vmul.f32 %v906, %v906
        %v971 = vmul.f32 %v907, %v907
        %v972 = vmul.f32 %v908, %v908
        %v973 = vmul.f32 %v909, %v909
        %v974 = vmul.f32 %v910, %v910
        %v975 = vmul.f32 %v911, %v911
        %v976 = vmul.f32 %v912, %v912
        %v977 = vmul.f32 %v913, %v913
        %v978 = vmul.f32 %v914, %v914
        %v979 = vmul.f32 %v915, %v915
        %v980 = vmul.f32 %v916, %v916
        %v981 = vmul.f32 %v917, %v917
        %v982 = vmul.f32 %v918, %v918
        %v983 = vmul.f32 %v919, %v919
        %v984 = vmul.f32 %v920, %v920
        %v985 = vmul.f32 %v921, %v921
        %v986 = vmul.f32 %v922, %v922
        %v987 = vmul.f32 %v923, %v923
        %v988 = vmul.f32 %v924, %v924
        %v989 = vmul.f32 %v925, %v925
        %v990 = vmul.f32 %v926, %v926
        %v991 = vmul.f32 %v927, %v927
        %v992 = vmul.f32 %v928, %v928
        %v993 = vmul.f32 %v929, %v929
        %v994 = vmul.f32 %v930, %v930
        %v995 = vmul.f32 %v931, %v931
        %v996 = vmul.f32 %v932, %v932
        %v997 = vmul.f32 %v933, %v933
        %v998 = vmul.f32 %v934, %v934
        %v999 = vmul.f32 %v935, %v935
        %v1000 = vmul.f32 %v936, %v936
        %v1001 = vsub.f32 %v937, %v969
        %v1002 = vsub.f32 %v938, %v970
        %v1003 = vsub.f32 %v939, %v971
        %v1004 = vsub.f32 %v940, %v972
        %v1005 = vsub.f32 %v941, %v973
        %v1006 = vsub.f32 %v942, %v974
        %v1007 = vsub.f32 %v943, %v975
        %v1008 = vsub.f32 %v944, %v976
        %v1009 = vsub.f32 %v945, %v977
        %v1010 = vsub.f32 %v946, %v978
        %v1011 = vsub.f32 %v947, %v979
        %v1012 = vsub.f32 %v948, %v980
        %v1013 = vsub.f32 %v949, %v981
        %v1014 = vsub.f32 %v950, %v982
        %v1015 = vsub.f32 %v951, %v983
        %v1016 = vsub.f32 %v952, %v984
        %v1017 = vsub.f32 %v953, %v985
        %v1018 = vsub.f32 %v954, %v986
        %v1019 = vsub.f32 %v955, %v987
        %v1020 = vsub.f32 %v956, %v988
        %v1021 = vsub.f32 %v957, %v989
        %v1022 = vsub.f32 %v958, %v990
        %v1023 = vsub.f32 %v959, %v991
        %v1024 = vsub.f32 %v960, %v992
        %v1025 = vsub.f32 %v961, %v993
        %v1026 = vsub.f32 %v962, %v994
        %v1027 = vsub.f32 %v963, %v995
        %v1028 = vsub.f32 %v964, %v996
        %v1029 = vsub.f32 %v965, %v997
        %v1030 = vsub.f32 %v966, %v998
        %v1031 = vsub.f32 %v967, %v999
        %v1032 = vsub.f32 %v968, %v1000
        %v1033 = vadd.f32 %v1001, 1e-05
        %v1034 = vadd.f32 %v1002, 1e-05
        %v1035 = vadd.f32 %v1003, 1e-05
        %v1036 = vadd.f32 %v1004, 1e-05
        %v1037 = vadd.f32 %v1005, 1e-05
        %v1038 = vadd.f32 %v1006, 1e-05
        %v1039 = vadd.f32 %v1007, 1e-05
        %v1040 = vadd.f32 %v1008, 1e-05
        %v1041 = vadd.f32 %v1009, 1e-05
        %v1042 = vadd.f32 %v1010, 1e-05
        %v1043 = vadd.f32 %v1011, 1e-05
        %v1044 = vadd.f32 %v1012, 1e-05
        %v1045 = vadd.f32 %v1013, 1e-05
        %v1046 = vadd.f32 %v1014, 1e-05
        %v1047 = vadd.f32 %v1015, 1e-05
        %v1048 = vadd.f32 %v1016, 1e-05
        %v1049 = vadd.f32 %v1017, 1e-05
        %v1050 = vadd.f32 %v1018, 1e-05
        %v1051 = vadd.f32 %v1019, 1e-05
        %v1052 = vadd.f32 %v1020, 1e-05
        %v1053 = vadd.f32 %v1021, 1e-05
        %v1054 = vadd.f32 %v1022, 1e-05
        %v1055 = vadd.f32 %v1023, 1e-05
        %v1056 = vadd.f32 %v1024, 1e-05
        %v1057 = vadd.f32 %v1025, 1e-05
        %v1058 = vadd.f32 %v1026, 1e-05
        %v1059 = vadd.f32 %v1027, 1e-05
        %v1060 = vadd.f32 %v1028, 1e-05
        %v1061 = vadd.f32 %v1029, 1e-05
        %v1062 = vadd.f32 %v1030, 1e-05
        %v1063 = vadd.f32 %v1031, 1e-05
        %v1064 = vadd.f32 %v1032, 1e-05
        %v1065 = vrsqrt.pop %v1033
        %v1066 = vmul.f32 %v1065, %v1033
        %v1067 = vmul.f32 %v1066, %v1065
        %v1068 = vmul.f32 0.5, %v1067
        %v1069 = vsub.f32 1.5, %v1068
        %v1070 = vmul.f32 %v1065, %v1069
        %vm1071 = vweird.f32 %v1033
        %vm1072 = vweird.f32 %v1065
        %vm1073 = vmor %vm1071, %vm1072
        %v1074 = vsel %vm1073, %v1065, %v1070
        %v1075 = vrsqrt.pop %v1034
        %v1076 = vmul.f32 %v1075, %v1034
        %v1077 = vmul.f32 %v1076, %v1075
        %v1078 = vmul.f32 0.5, %v1077
        %v1079 = vsub.f32 1.5, %v1078
        %v1080 = vmul.f32 %v1075, %v1079
        %vm1081 = vweird.f32 %v1034
        %vm1082 = vweird.f32 %v1075
        %vm1083 = vmor %vm1081, %vm1082
        %v1084 = vsel %vm1083, %v1075, %v1080
        %v1085 = vrsqrt.pop %v1035
        %v1086 = vmul.f32 %v1085, %v1035
        %v1087 = vmul.f32 %v1086, %v1085
        %v1088 = vmul.f32 0.5, %v1087
        %v1089 = vsub.f32 1.5, %v1088
        %v1090 = vmul.f32 %v1085, %v1089
        %vm1091 = vweird.f32 %v1035
        %vm1092 = vweird.f32 %v1085
        %vm1093 = vmor %vm1091, %vm1092
        %v1094 = vsel %vm1093, %v1085, %v1090
        %v1095 = vrsqrt.pop %v1036
        %v1096 = vmul.f32 %v1095, %v1036
        %v1097 = vmul.f32 %v1096, %v1095
        %v1098 = vmul.f32 0.5, %v1097
        %v1099 = vsub.f32 1.5, %v1098
        %v1100 = vmul.f32 %v1095, %v1099
        %vm1101 = vweird.f32 %v1036
        %vm1102 = vweird.f32 %v1095
        %vm1103 = vmor %vm1101, %vm1102
        %v1104 = vsel %vm1103, %v1095, %v1100
        %v1105 = vrsqrt.pop %v1037
        %v1106 = vmul.f32 %v1105, %v1037
        %v1107 = vmul.f32 %v1106, %v1105
        %v1108 = vmul.f32 0.5, %v1107
        %v1109 = vsub.f32 1.5, %v1108
        %v1110 = vmul.f32 %v1105, %v1109
        %vm1111 = vweird.f32 %v1037
        %vm1112 = vweird.f32 %v1105
        %vm1113 = vmor %vm1111, %vm1112
        %v1114 = vsel %vm1113, %v1105, %v1110
        %v1115 = vrsqrt.pop %v1038
        %v1116 = vmul.f32 %v1115, %v1038
        %v1117 = vmul.f32 %v1116, %v1115
        %v1118 = vmul.f32 0.5, %v1117
        %v1119 = vsub.f32 1.5, %v1118
        %v1120 = vmul.f32 %v1115, %v1119
        %vm1121 = vweird.f32 %v1038
        %vm1122 = vweird.f32 %v1115
        %vm1123 = vmor %vm1121, %vm1122
        %v1124 = vsel %vm1123, %v1115, %v1120
        %v1125 = vrsqrt.pop %v1039
        %v1126 = vmul.f32 %v1125, %v1039
        %v1127 = vmul.f32 %v1126, %v1125
        %v1128 = vmul.f32 0.5, %v1127
        %v1129 = vsub.f32 1.5, %v1128
        %v1130 = vmul.f32 %v1125, %v1129
        %vm1131 = vweird.f32 %v1039
        %vm1132 = vweird.f32 %v1125
        %vm1133 = vmor %vm1131, %vm1132
        %v1134 = vsel %vm1133, %v1125, %v1130
        %v1135 = vrsqrt.pop %v1040
        %v1136 = vmul.f32 %v1135, %v1040
        %v1137 = vmul.f32 %v1136, %v1135
        %v1138 = vmul.f32 0.5, %v1137
        %v1139 = vsub.f32 1.5, %v1138
        %v1140 = vmul.f32 %v1135, %v1139
        %vm1141 = vweird.f32 %v1040
        %vm1142 = vweird.f32 %v1135
        %vm1143 = vmor %vm1141, %vm1142
        %v1144 = vsel %vm1143, %v1135, %v1140
        %v1145 = vrsqrt.pop %v1041
        %v1146 = vmul.f32 %v1145, %v1041
        %v1147 = vmul.f32 %v1146, %v1145
        %v1148 = vmul.f32 0.5, %v1147
        %v1149 = vsub.f32 1.5, %v1148
        %v1150 = vmul.f32 %v1145, %v1149
        %vm1151 = vweird.f32 %v1041
        %vm1152 = vweird.f32 %v1145
        %vm1153 = vmor %vm1151, %vm1152
        %v1154 = vsel %vm1153, %v1145, %v1150
        %v1155 = vrsqrt.pop %v1042
        %v1156 = vmul.f32 %v1155, %v1042
        %v1157 = vmul.f32 %v1156, %v1155
        %v1158 = vmul.f32 0.5, %v1157
        %v1159 = vsub.f32 1.5, %v1158
        %v1160 = vmul.f32 %v1155, %v1159
        %vm1161 = vweird.f32 %v1042
        %vm1162 = vweird.f32 %v1155
        %vm1163 = vmor %vm1161, %vm1162
        %v1164 = vsel %vm1163, %v1155, %v1160
        %v1165 = vrsqrt.pop %v1043
        %v1166 = vmul.f32 %v1165, %v1043
        %v1167 = vmul.f32 %v1166, %v1165
        %v1168 = vmul.f32 0.5, %v1167
        %v1169 = vsub.f32 1.5, %v1168
        %v1170 = vmul.f32 %v1165, %v1169
        %vm1171 = vweird.f32 %v1043
        %vm1172 = vweird.f32 %v1165
        %vm1173 = vmor %vm1171, %vm1172
        %v1174 = vsel %vm1173, %v1165, %v1170
        %v1175 = vrsqrt.pop %v1044
        %v1176 = vmul.f32 %v1175, %v1044
        %v1177 = vmul.f32 %v1176, %v1175
        %v1178 = vmul.f32 0.5, %v1177
        %v1179 = vsub.f32 1.5, %v1178
        %v1180 = vmul.f32 %v1175, %v1179
        %vm1181 = vweird.f32 %v1044
        %vm1182 = vweird.f32 %v1175
        %vm1183 = vmor %vm1181, %vm1182
        %v1184 = vsel %vm1183, %v1175, %v1180
        %v1185 = vrsqrt.pop %v1045
        %v1186 = vmul.f32 %v1185, %v1045
        %v1187 = vmul.f32 %v1186, %v1185
        %v1188 = vmul.f32 0.5, %v1187
        %v1189 = vsub.f32 1.5, %v1188
        %v1190 = vmul.f32 %v1185, %v1189
        %vm1191 = vweird.f32 %v1045
        %vm1192 = vweird.f32 %v1185
        %vm1193 = vmor %vm1191, %vm1192
        %v1194 = vsel %vm1193, %v1185, %v1190
        %v1195 = vrsqrt.pop %v1046
        %v1196 = vmul.f32 %v1195, %v1046
        %v1197 = vmul.f32 %v1196, %v1195
        %v1198 = vmul.f32 0.5, %v1197
        %v1199 = vsub.f32 1.5, %v1198
        %v1200 = vmul.f32 %v1195, %v1199
        %vm1201 = vweird.f32 %v1046
        %vm1202 = vweird.f32 %v1195
        %vm1203 = vmor %vm1201, %vm1202
        %v1204 = vsel %vm1203, %v1195, %v1200
        %v1205 = vrsqrt.pop %v1047
        %v1206 = vmul.f32 %v1205, %v1047
        %v1207 = vmul.f32 %v1206, %v1205
        %v1208 = vmul.f32 0.5, %v1207
        %v1209 = vsub.f32 1.5, %v1208
        %v1210 = vmul.f32 %v1205, %v1209
        %vm1211 = vweird.f32 %v1047
        %vm1212 = vweird.f32 %v1205
        %vm1213 = vmor %vm1211, %vm1212
        %v1214 = vsel %vm1213, %v1205, %v1210
        %v1215 = vrsqrt.pop %v1048
        %v1216 = vmul.f32 %v1215, %v1048
        %v1217 = vmul.f32 %v1216, %v1215
        %v1218 = vmul.f32 0.5, %v1217
        %v1219 = vsub.f32 1.5, %v1218
        %v1220 = vmul.f32 %v1215, %v1219
        %vm1221 = vweird.f32 %v1048
        %vm1222 = vweird.f32 %v1215
        %vm1223 = vmor %vm1221, %vm1222
        %v1224 = vsel %vm1223, %v1215, %v1220
        %v1225 = vrsqrt.pop %v1049
        %v1226 = vmul.f32 %v1225, %v1049
        %v1227 = vmul.f32 %v1226, %v1225
        %v1228 = vmul.f32 0.5, %v1227
        %v1229 = vsub.f32 1.5, %v1228
        %v1230 = vmul.f32 %v1225, %v1229
        %vm1231 = vweird.f32 %v1049
        %vm1232 = vweird.f32 %v1225
        %vm1233 = vmor %vm1231, %vm1232
        %v1234 = vsel %vm1233, %v1225, %v1230
        %v1235 = vrsqrt.pop %v1050
        %v1236 = vmul.f32 %v1235, %v1050
        %v1237 = vmul.f32 %v1236, %v1235
        %v1238 = vmul.f32 0.5, %v1237
        %v1239 = vsub.f32 1.5, %v1238
        %v1240 = vmul.f32 %v1235, %v1239
        %vm1241 = vweird.f32 %v1050
        %vm1242 = vweird.f32 %v1235
        %vm1243 = vmor %vm1241, %vm1242
        %v1244 = vsel %vm1243, %v1235, %v1240
        %v1245 = vrsqrt.pop %v1051
        %v1246 = vmul.f32 %v1245, %v1051
        %v1247 = vmul.f32 %v1246, %v1245
        %v1248 = vmul.f32 0.5, %v1247
        %v1249 = vsub.f32 1.5, %v1248
        %v1250 = vmul.f32 %v1245, %v1249
        %vm1251 = vweird.f32 %v1051
        %vm1252 = vweird.f32 %v1245
        %vm1253 = vmor %vm1251, %vm1252
        %v1254 = vsel %vm1253, %v1245, %v1250
        %v1255 = vrsqrt.pop %v1052
        %v1256 = vmul.f32 %v1255, %v1052
        %v1257 = vmul.f32 %v1256, %v1255
        %v1258 = vmul.f32 0.5, %v1257
        %v1259 = vsub.f32 1.5, %v1258
        %v1260 = vmul.f32 %v1255, %v1259
        %vm1261 = vweird.f32 %v1052
        %vm1262 = vweird.f32 %v1255
        %vm1263 = vmor %vm1261, %vm1262
        %v1264 = vsel %vm1263, %v1255, %v1260
        %v1265 = vrsqrt.pop %v1053
        %v1266 = vmul.f32 %v1265, %v1053
        %v1267 = vmul.f32 %v1266, %v1265
        %v1268 = vmul.f32 0.5, %v1267
        %v1269 = vsub.f32 1.5, %v1268
        %v1270 = vmul.f32 %v1265, %v1269
        %vm1271 = vweird.f32 %v1053
        %vm1272 = vweird.f32 %v1265
        %vm1273 = vmor %vm1271, %vm1272
        %v1274 = vsel %vm1273, %v1265, %v1270
        %v1275 = vrsqrt.pop %v1054
        %v1276 = vmul.f32 %v1275, %v1054
        %v1277 = vmul.f32 %v1276, %v1275
        %v1278 = vmul.f32 0.5, %v1277
        %v1279 = vsub.f32 1.5, %v1278
        %v1280 = vmul.f32 %v1275, %v1279
        %vm1281 = vweird.f32 %v1054
        %vm1282 = vweird.f32 %v1275
        %vm1283 = vmor %vm1281, %vm1282
        %v1284 = vsel %vm1283, %v1275, %v1280
        %v1285 = vrsqrt.pop %v1055
        %v1286 = vmul.f32 %v1285, %v1055
        %v1287 = vmul.f32 %v1286, %v1285
        %v1288 = vmul.f32 0.5, %v1287
        %v1289 = vsub.f32 1.5, %v1288
        %v1290 = vmul.f32 %v1285, %v1289
        %vm1291 = vweird.f32 %v1055
        %vm1292 = vweird.f32 %v1285
        %vm1293 = vmor %vm1291, %vm1292
        %v1294 = vsel %vm1293, %v1285, %v1290
        %v1295 = vrsqrt.pop %v1056
        %v1296 = vmul.f32 %v1295, %v1056
        %v1297 = vmul.f32 %v1296, %v1295
        %v1298 = vmul.f32 0.5, %v1297
        %v1299 = vsub.f32 1.5, %v1298
        %v1300 = vmul.f32 %v1295, %v1299
        %vm1301 = vweird.f32 %v1056
        %vm1302 = vweird.f32 %v1295
        %vm1303 = vmor %vm1301, %vm1302
        %v1304 = vsel %vm1303, %v1295, %v1300
        %v1305 = vrsqrt.pop %v1057
        %v1306 = vmul.f32 %v1305, %v1057
        %v1307 = vmul.f32 %v1306, %v1305
        %v1308 = vmul.f32 0.5, %v1307
        %v1309 = vsub.f32 1.5, %v1308
        %v1310 = vmul.f32 %v1305, %v1309
        %vm1311 = vweird.f32 %v1057
        %vm1312 = vweird.f32 %v1305
        %vm1313 = vmor %vm1311, %vm1312
        %v1314 = vsel %vm1313, %v1305, %v1310
        %v1315 = vrsqrt.pop %v1058
        %v1316 = vmul.f32 %v1315, %v1058
        %v1317 = vmul.f32 %v1316, %v1315
        %v1318 = vmul.f32 0.5, %v1317
        %v1319 = vsub.f32 1.5, %v1318
        %v1320 = vmul.f32 %v1315, %v1319
        %vm1321 = vweird.f32 %v1058
        %vm1322 = vweird.f32 %v1315
        %vm1323 = vmor %vm1321, %vm1322
        %v1324 = vsel %vm1323, %v1315, %v1320
        %v1325 = vrsqrt.pop %v1059
        %v1326 = vmul.f32 %v1325, %v1059
        %v1327 = vmul.f32 %v1326, %v1325
        %v1328 = vmul.f32 0.5, %v1327
        %v1329 = vsub.f32 1.5, %v1328
        %v1330 = vmul.f32 %v1325, %v1329
        %vm1331 = vweird.f32 %v1059
        %vm1332 = vweird.f32 %v1325
        %vm1333 = vmor %vm1331, %vm1332
        %v1334 = vsel %vm1333, %v1325, %v1330
        %v1335 = vrsqrt.pop %v1060
        %v1336 = vmul.f32 %v1335, %v1060
        %v1337 = vmul.f32 %v1336, %v1335
        %v1338 = vmul.f32 0.5, %v1337
        %v1339 = vsub.f32 1.5, %v1338
        %v1340 = vmul.f32 %v1335, %v1339
        %vm1341 = vweird.f32 %v1060
        %vm1342 = vweird.f32 %v1335
        %vm1343 = vmor %vm1341, %vm1342
        %v1344 = vsel %vm1343, %v1335, %v1340
        %v1345 = vrsqrt.pop %v1061
        %v1346 = vmul.f32 %v1345, %v1061
        %v1347 = vmul.f32 %v1346, %v1345
        %v1348 = vmul.f32 0.5, %v1347
        %v1349 = vsub.f32 1.5, %v1348
        %v1350 = vmul.f32 %v1345, %v1349
        %vm1351 = vweird.f32 %v1061
        %vm1352 = vweird.f32 %v1345
        %vm1353 = vmor %vm1351, %vm1352
        %v1354 = vsel %vm1353, %v1345, %v1350
        %v1355 = vrsqrt.pop %v1062
        %v1356 = vmul.f32 %v1355, %v1062
        %v1357 = vmul.f32 %v1356, %v1355
        %v1358 = vmul.f32 0.5, %v1357
        %v1359 = vsub.f32 1.5, %v1358
        %v1360 = vmul.f32 %v1355, %v1359
        %vm1361 = vweird.f32 %v1062
        %vm1362 = vweird.f32 %v1355
        %vm1363 = vmor %vm1361, %vm1362
        %v1364 = vsel %vm1363, %v1355, %v1360
        %v1365 = vrsqrt.pop %v1063
        %v1366 = vmul.f32 %v1365, %v1063
        %v1367 = vmul.f32 %v1366, %v1365
        %v1368 = vmul.f32 0.5, %v1367
        %v1369 = vsub.f32 1.5, %v1368
        %v1370 = vmul.f32 %v1365, %v1369
        %vm1371 = vweird.f32 %v1063
        %vm1372 = vweird.f32 %v1365
        %vm1373 = vmor %vm1371, %vm1372
        %v1374 = vsel %vm1373, %v1365, %v1370
        %v1375 = vrsqrt.pop %v1064
        %v1376 = vmul.f32 %v1375, %v1064
        %v1377 = vmul.f32 %v1376, %v1375
        %v1378 = vmul.f32 0.5, %v1377
        %v1379 = vsub.f32 1.5, %v1378
        %v1380 = vmul.f32 %v1375, %v1379
        %vm1381 = vweird.f32 %v1064
        %vm1382 = vweird.f32 %v1375
        %vm1383 = vmor %vm1381, %vm1382
        %v1384 = vsel %vm1383, %v1375, %v1380
        %v1385 = vmul.f32 %v905, %v1074
        %v1386 = vmul.f32 %v906, %v1084
        %v1387 = vmul.f32 %v907, %v1094
        %v1388 = vmul.f32 %v908, %v1104
        %v1389 = vmul.f32 %v909, %v1114
        %v1390 = vmul.f32 %v910, %v1124
        %v1391 = vmul.f32 %v911, %v1134
        %v1392 = vmul.f32 %v912, %v1144
        %v1393 = vmul.f32 %v913, %v1154
        %v1394 = vmul.f32 %v914, %v1164
        %v1395 = vmul.f32 %v915, %v1174
        %v1396 = vmul.f32 %v916, %v1184
        %v1397 = vmul.f32 %v917, %v1194
        %v1398 = vmul.f32 %v918, %v1204
        %v1399 = vmul.f32 %v919, %v1214
        %v1400 = vmul.f32 %v920, %v1224
        %v1401 = vmul.f32 %v921, %v1234
        %v1402 = vmul.f32 %v922, %v1244
        %v1403 = vmul.f32 %v923, %v1254
        %v1404 = vmul.f32 %v924, %v1264
        %v1405 = vmul.f32 %v925, %v1274
        %v1406 = vmul.f32 %v926, %v1284
        %v1407 = vmul.f32 %v927, %v1294
        %v1408 = vmul.f32 %v928, %v1304
        %v1409 = vmul.f32 %v929, %v1314
        %v1410 = vmul.f32 %v930, %v1324
        %v1411 = vmul.f32 %v931, %v1334
        %v1412 = vmul.f32 %v932, %v1344
        %v1413 = vmul.f32 %v933, %v1354
        %v1414 = vmul.f32 %v934, %v1364
        %v1415 = vmul.f32 %v935, %v1374
        %v1416 = vmul.f32 %v936, %v1384
        %vm1417 = vcmask 64512
        %v1419 = vsel %vm1417, %v1385, 0
        %v1422 = vsel %vm1417, %v1386, 0
        %v1425 = vsel %vm1417, %v1387, 0
        %v1428 = vsel %vm1417, %v1388, 0
        %v1431 = vsel %vm1417, %v1389, 0
        %v1434 = vsel %vm1417, %v1390, 0
        %v1437 = vsel %vm1417, %v1391, 0
        %v1440 = vsel %vm1417, %v1392, 0
        %v1443 = vsel %vm1417, %v1393, 0
        %v1446 = vsel %vm1417, %v1394, 0
        %v1449 = vsel %vm1417, %v1395, 0
        %v1452 = vsel %vm1417, %v1396, 0
        %v1455 = vsel %vm1417, %v1397, 0
        %v1458 = vsel %vm1417, %v1398, 0
        %v1461 = vsel %vm1417, %v1399, 0
        %v1464 = vsel %vm1417, %v1400, 0
        %v1467 = vsel %vm1417, %v1401, 0
        %v1470 = vsel %vm1417, %v1402, 0
        %v1473 = vsel %vm1417, %v1403, 0
        %v1476 = vsel %vm1417, %v1404, 0
        %v1479 = vsel %vm1417, %v1405, 0
        %v1482 = vsel %vm1417, %v1406, 0
        %v1485 = vsel %vm1417, %v1407, 0
        %v1488 = vsel %vm1417, %v1408, 0
        %v1491 = vsel %vm1417, %v1409, 0
        %v1494 = vsel %vm1417, %v1410, 0
        %v1497 = vsel %vm1417, %v1411, 0
        %v1500 = vsel %vm1417, %v1412, 0
        %v1503 = vsel %vm1417, %v1413, 0
        %v1506 = vsel %vm1417, %v1414, 0
        %v1509 = vsel %vm1417, %v1415, 0
        %v1512 = vsel %vm1417, %v1416, 0
        %v1515 = vsel %vm1417, %v1074, 0
        %v1518 = vsel %vm1417, %v1084, 0
        %v1521 = vsel %vm1417, %v1094, 0
        %v1524 = vsel %vm1417, %v1104, 0
        %v1527 = vsel %vm1417, %v1114, 0
        %v1530 = vsel %vm1417, %v1124, 0
        %v1533 = vsel %vm1417, %v1134, 0
        %v1536 = vsel %vm1417, %v1144, 0
        %v1539 = vsel %vm1417, %v1154, 0
        %v1542 = vsel %vm1417, %v1164, 0
        %v1545 = vsel %vm1417, %v1174, 0
        %v1548 = vsel %vm1417, %v1184, 0
        %v1551 = vsel %vm1417, %v1194, 0
        %v1554 = vsel %vm1417, %v1204, 0
        %v1557 = vsel %vm1417, %v1214, 0
        %v1560 = vsel %vm1417, %v1224, 0
        %v1563 = vsel %vm1417, %v1234, 0
        %v1566 = vsel %vm1417, %v1244, 0
        %v1569 = vsel %vm1417, %v1254, 0
        %v1572 = vsel %vm1417, %v1264, 0
        %v1575 = vsel %vm1417, %v1274, 0
        %v1578 = vsel %vm1417, %v1284, 0
        %v1581 = vsel %vm1417, %v1294, 0
        %v1584 = vsel %vm1417, %v1304, 0
        %v1587 = vsel %vm1417, %v1314, 0
        %v1590 = vsel %vm1417, %v1324, 0
        %v1593 = vsel %vm1417, %v1334, 0
        %v1596 = vsel %vm1417, %v1344, 0
        %v1599 = vsel %vm1417, %v1354, 0
        %v1602 = vsel %vm1417, %v1364, 0
        %v1605 = vsel %vm1417, %v1374, 0
        %v1608 = vsel %vm1417, %v1384, 0
        %1610 = vmatpush.msra.mxu0 0.0
        %1611 = vmatpush.msra.mxu0 0.0
        %1612 = vmatpush.msra.mxu0 0.0
        %1613 = vmatpush.msra.mxu0 0.0
        %1614 = vmatpush.msra.mxu0 0.0
        %1615 = vmatpush.msra.mxu0 0.0
        %1616 = vmatpush.msra.mxu0 0.0
        %1617 = vmatpush.msra.mxu0 0.0
        %1618 = vmatpush.msra.mxu0 0.0
        %1619 = vmatpush.msra.mxu0 0.0
        %1620 = vmatpush.msra.mxu0 0.0
        %1621 = vmatpush.msra.mxu0 0.0
        %1622 = vmatpush.msra.mxu0 0.0
        %1623 = vmatpush.msra.mxu0 0.0
        %1624 = vmatpush.msra.mxu0 0.0
        %1625 = vmatpush.msra.mxu0 %v230
        %1626 = vmatmul.f32.gmra.mxu0 %v1419
        %v1627 = vpop.f32.mrf.mxu0
        %v1628 = vadd.f32 0.0, %v1627
        %1629 = vmatmul.f32.gmra.mxu0 %v1422
        %v1630 = vpop.f32.mrf.mxu0
        %v1631 = vadd.f32 0.0, %v1630
        %1632 = vmatmul.f32.gmra.mxu0 %v1425
        %v1633 = vpop.f32.mrf.mxu0
        %v1634 = vadd.f32 0.0, %v1633
        %1635 = vmatmul.f32.gmra.mxu0 %v1428
        %v1636 = vpop.f32.mrf.mxu0
        %v1637 = vadd.f32 0.0, %v1636
        %1638 = vmatmul.f32.gmra.mxu0 %v1431
        %v1639 = vpop.f32.mrf.mxu0
        %v1640 = vadd.f32 0.0, %v1639
        %1641 = vmatmul.f32.gmra.mxu0 %v1434
        %v1642 = vpop.f32.mrf.mxu0
        %v1643 = vadd.f32 0.0, %v1642
        %1644 = vmatmul.f32.gmra.mxu0 %v1437
        %v1645 = vpop.f32.mrf.mxu0
        %v1646 = vadd.f32 0.0, %v1645
        %1647 = vmatmul.f32.gmra.mxu0 %v1440
        %v1648 = vpop.f32.mrf.mxu0
        %v1649 = vadd.f32 0.0, %v1648
        %1650 = vmatmul.f32.gmra.mxu0 %v1443
        %v1651 = vpop.f32.mrf.mxu0
        %v1652 = vadd.f32 0.0, %v1651
        %1653 = vmatmul.f32.gmra.mxu0 %v1446
        %v1654 = vpop.f32.mrf.mxu0
        %v1655 = vadd.f32 0.0, %v1654
        %1656 = vmatmul.f32.gmra.mxu0 %v1449
        %v1657 = vpop.f32.mrf.mxu0
        %v1658 = vadd.f32 0.0, %v1657
        %1659 = vmatmul.f32.gmra.mxu0 %v1452
        %v1660 = vpop.f32.mrf.mxu0
        %v1661 = vadd.f32 0.0, %v1660
        %1662 = vmatmul.f32.gmra.mxu0 %v1455
        %v1663 = vpop.f32.mrf.mxu0
        %v1664 = vadd.f32 0.0, %v1663
        %1665 = vmatmul.f32.gmra.mxu0 %v1458
        %v1666 = vpop.f32.mrf.mxu0
        %v1667 = vadd.f32 0.0, %v1666
        %1668 = vmatmul.f32.gmra.mxu0 %v1461
        %v1669 = vpop.f32.mrf.mxu0
        %v1670 = vadd.f32 0.0, %v1669
        %1671 = vmatmul.f32.gmra.mxu0 %v1464
        %v1672 = vpop.f32.mrf.mxu0
        %v1673 = vadd.f32 0.0, %v1672
        %1674 = vmatmul.f32.gmra.mxu0 %v1467
        %v1675 = vpop.f32.mrf.mxu0
        %v1676 = vadd.f32 0.0, %v1675
        %1677 = vmatmul.f32.gmra.mxu0 %v1470
        %v1678 = vpop.f32.mrf.mxu0
        %v1679 = vadd.f32 0.0, %v1678
        %1680 = vmatmul.f32.gmra.mxu0 %v1473
        %v1681 = vpop.f32.mrf.mxu0
        %v1682 = vadd.f32 0.0, %v1681
        %1683 = vmatmul.f32.gmra.mxu0 %v1476
        %v1684 = vpop.f32.mrf.mxu0
        %v1685 = vadd.f32 0.0, %v1684
        %1686 = vmatmul.f32.gmra.mxu0 %v1479
        %v1687 = vpop.f32.mrf.mxu0
        %v1688 = vadd.f32 0.0, %v1687
        %1689 = vmatmul.f32.gmra.mxu0 %v1482
        %v1690 = vpop.f32.mrf.mxu0
        %v1691 = vadd.f32 0.0, %v1690
        %1692 = vmatmul.f32.gmra.mxu0 %v1485
        %v1693 = vpop.f32.mrf.mxu0
        %v1694 = vadd.f32 0.0, %v1693
        %1695 = vmatmul.f32.gmra.mxu0 %v1488
        %v1696 = vpop.f32.mrf.mxu0
        %v1697 = vadd.f32 0.0, %v1696
        %1698 = vmatmul.f32.gmra.mxu0 %v1491
        %v1699 = vpop.f32.mrf.mxu0
        %v1700 = vadd.f32 0.0, %v1699
        %1701 = vmatmul.f32.gmra.mxu0 %v1494
        %v1702 = vpop.f32.mrf.mxu0
        %v1703 = vadd.f32 0.0, %v1702
        %1704 = vmatmul.f32.gmra.mxu0 %v1497
        %v1705 = vpop.f32.mrf.mxu0
        %v1706 = vadd.f32 0.0, %v1705
        %1707 = vmatmul.f32.gmra.mxu0 %v1500
        %v1708 = vpop.f32.mrf.mxu0
        %v1709 = vadd.f32 0.0, %v1708
        %1710 = vmatmul.f32.gmra.mxu0 %v1503
        %v1711 = vpop.f32.mrf.mxu0
        %v1712 = vadd.f32 0.0, %v1711
        %1713 = vmatmul.f32.gmra.mxu0 %v1506
        %v1714 = vpop.f32.mrf.mxu0
        %v1715 = vadd.f32 0.0, %v1714
        %1716 = vmatmul.f32.gmra.mxu0 %v1509
        %v1717 = vpop.f32.mrf.mxu0
        %v1718 = vadd.f32 0.0, %v1717
        %1719 = vmatmul.f32.gmra.mxu0 %v1512
        %v1720 = vpop.f32.mrf.mxu0
        %v1721 = vadd.f32 0.0, %v1720
        %1722 = vmatmul.f32.gmra.mxu0 %v1515
        %v1723 = vpop.f32.mrf.mxu0
        %v1724 = vadd.f32 0.0, %v1723
        %1725 = vmatmul.f32.gmra.mxu0 %v1518
        %v1726 = vpop.f32.mrf.mxu0
        %v1727 = vadd.f32 0.0, %v1726
        %1728 = vmatmul.f32.gmra.mxu0 %v1521
        %v1729 = vpop.f32.mrf.mxu0
        %v1730 = vadd.f32 0.0, %v1729
        %1731 = vmatmul.f32.gmra.mxu0 %v1524
        %v1732 = vpop.f32.mrf.mxu0
        %v1733 = vadd.f32 0.0, %v1732
        %1734 = vmatmul.f32.gmra.mxu0 %v1527
        %v1735 = vpop.f32.mrf.mxu0
        %v1736 = vadd.f32 0.0, %v1735
        %1737 = vmatmul.f32.gmra.mxu0 %v1530
        %v1738 = vpop.f32.mrf.mxu0
        %v1739 = vadd.f32 0.0, %v1738
        %1740 = vmatmul.f32.gmra.mxu0 %v1533
        %v1741 = vpop.f32.mrf.mxu0
        %v1742 = vadd.f32 0.0, %v1741
        %1743 = vmatmul.f32.gmra.mxu0 %v1536
        %v1744 = vpop.f32.mrf.mxu0
        %v1745 = vadd.f32 0.0, %v1744
        %1746 = vmatmul.f32.gmra.mxu0 %v1539
        %v1747 = vpop.f32.mrf.mxu0
        %v1748 = vadd.f32 0.0, %v1747
        %1749 = vmatmul.f32.gmra.mxu0 %v1542
        %v1750 = vpop.f32.mrf.mxu0
        %v1751 = vadd.f32 0.0, %v1750
        %1752 = vmatmul.f32.gmra.mxu0 %v1545
        %v1753 = vpop.f32.mrf.mxu0
        %v1754 = vadd.f32 0.0, %v1753
        %1755 = vmatmul.f32.gmra.mxu0 %v1548
        %v1756 = vpop.f32.mrf.mxu0
        %v1757 = vadd.f32 0.0, %v1756
        %1758 = vmatmul.f32.gmra.mxu0 %v1551
        %v1759 = vpop.f32.mrf.mxu0
        %v1760 = vadd.f32 0.0, %v1759
        %1761 = vmatmul.f32.gmra.mxu0 %v1554
        %v1762 = vpop.f32.mrf.mxu0
        %v1763 = vadd.f32 0.0, %v1762
        %1764 = vmatmul.f32.gmra.mxu0 %v1557
        %v1765 = vpop.f32.mrf.mxu0
        %v1766 = vadd.f32 0.0, %v1765
        %1767 = vmatmul.f32.gmra.mxu0 %v1560
        %v1768 = vpop.f32.mrf.mxu0
        %v1769 = vadd.f32 0.0, %v1768
        %1770 = vmatmul.f32.gmra.mxu0 %v1563
        %v1771 = vpop.f32.mrf.mxu0
        %v1772 = vadd.f32 0.0, %v1771
        %1773 = vmatmul.f32.gmra.mxu0 %v1566
        %v1774 = vpop.f32.mrf.mxu0
        %v1775 = vadd.f32 0.0, %v1774
        %1776 = vmatmul.f32.gmra.mxu0 %v1569
        %v1777 = vpop.f32.mrf.mxu0
        %v1778 = vadd.f32 0.0, %v1777
        %1779 = vmatmul.f32.gmra.mxu0 %v1572
        %v1780 = vpop.f32.mrf.mxu0
        %v1781 = vadd.f32 0.0, %v1780
        %1782 = vmatmul.f32.gmra.mxu0 %v1575
        %v1783 = vpop.f32.mrf.mxu0
        %v1784 = vadd.f32 0.0, %v1783
        %1785 = vmatmul.f32.gmra.mxu0 %v1578
        %v1786 = vpop.f32.mrf.mxu0
        %v1787 = vadd.f32 0.0, %v1786
        %1788 = vmatmul.f32.gmra.mxu0 %v1581
        %v1789 = vpop.f32.mrf.mxu0
        %v1790 = vadd.f32 0.0, %v1789
        %1791 = vmatmul.f32.gmra.mxu0 %v1584
        %v1792 = vpop.f32.mrf.mxu0
        %v1793 = vadd.f32 0.0, %v1792
        %1794 = vmatmul.f32.gmra.mxu0 %v1587
        %v1795 = vpop.f32.mrf.mxu0
        %v1796 = vadd.f32 0.0, %v1795
        %1797 = vmatmul.f32.gmra.mxu0 %v1590
        %v1798 = vpop.f32.mrf.mxu0
        %v1799 = vadd.f32 0.0, %v1798
        %1800 = vmatmul.f32.gmra.mxu0 %v1593
        %v1801 = vpop.f32.mrf.mxu0
        %v1802 = vadd.f32 0.0, %v1801
        %1803 = vmatmul.f32.gmra.mxu0 %v1596
        %v1804 = vpop.f32.mrf.mxu0
        %v1805 = vadd.f32 0.0, %v1804
        %1806 = vmatmul.f32.gmra.mxu0 %v1599
        %v1807 = vpop.f32.mrf.mxu0
        %v1808 = vadd.f32 0.0, %v1807
        %1809 = vmatmul.f32.gmra.mxu0 %v1602
        %v1810 = vpop.f32.mrf.mxu0
        %v1811 = vadd.f32 0.0, %v1810
        %1812 = vmatmul.f32.gmra.mxu0 %v1605
        %v1813 = vpop.f32.mrf.mxu0
        %v1814 = vadd.f32 0.0, %v1813
        %1815 = vmatmul.f32.gmra.mxu0 %v1608
        %v1816 = vpop.f32.mrf.mxu0
        %v1817 = vadd.f32 0.0, %v1816
        %1818 = vdwg.mxu0
        %v1819 = vmul.f32 %v392, %v1724
        %v1820 = vmul.f32 %v394, %v1727
        %v1821 = vmul.f32 %v397, %v1730
        %v1822 = vmul.f32 %v399, %v1733
        %v1823 = vmul.f32 %v402, %v1736
        %v1824 = vmul.f32 %v404, %v1739
        %v1825 = vmul.f32 %v407, %v1742
        %v1826 = vmul.f32 %v409, %v1745
        %v1827 = vmul.f32 %v412, %v1748
        %v1828 = vmul.f32 %v414, %v1751
        %v1829 = vmul.f32 %v417, %v1754
        %v1830 = vmul.f32 %v419, %v1757
        %v1831 = vmul.f32 %v422, %v1760
        %v1832 = vmul.f32 %v424, %v1763
        %v1833 = vmul.f32 %v427, %v1766
        %v1834 = vmul.f32 %v429, %v1769
        %v1835 = vmul.f32 %v432, %v1772
        %v1836 = vmul.f32 %v434, %v1775
        %v1837 = vmul.f32 %v437, %v1778
        %v1838 = vmul.f32 %v439, %v1781
        %v1839 = vmul.f32 %v442, %v1784
        %v1840 = vmul.f32 %v444, %v1787
        %v1841 = vmul.f32 %v447, %v1790
        %v1842 = vmul.f32 %v449, %v1793
        %v1843 = vmul.f32 %v452, %v1796
        %v1844 = vmul.f32 %v454, %v1799
        %v1845 = vmul.f32 %v457, %v1802
        %v1846 = vmul.f32 %v459, %v1805
        %v1847 = vmul.f32 %v462, %v1808
        %v1848 = vmul.f32 %v464, %v1811
        %v1849 = vmul.f32 %v467, %v1814
        %v1850 = vmul.f32 %v469, %v1817
        %v1851 = vperm.slane %v226, 0
        %v1852 = vsub.f32 %v1851, %v1628
        %v1853 = vsub.f32 %v1851, %v1631
        %v1854 = vsub.f32 %v1851, %v1634
        %v1855 = vsub.f32 %v1851, %v1637
        %v1856 = vsub.f32 %v1851, %v1640
        %v1857 = vsub.f32 %v1851, %v1643
        %v1858 = vsub.f32 %v1851, %v1646
        %v1859 = vsub.f32 %v1851, %v1649
        %v1860 = vsub.f32 %v1851, %v1652
        %v1861 = vsub.f32 %v1851, %v1655
        %v1862 = vsub.f32 %v1851, %v1658
        %v1863 = vsub.f32 %v1851, %v1661
        %v1864 = vsub.f32 %v1851, %v1664
        %v1865 = vsub.f32 %v1851, %v1667
        %v1866 = vsub.f32 %v1851, %v1670
        %v1867 = vsub.f32 %v1851, %v1673
        %v1868 = vsub.f32 %v1851, %v1676
        %v1869 = vsub.f32 %v1851, %v1679
        %v1870 = vsub.f32 %v1851, %v1682
        %v1871 = vsub.f32 %v1851, %v1685
        %v1872 = vsub.f32 %v1851, %v1688
        %v1873 = vsub.f32 %v1851, %v1691
        %v1874 = vsub.f32 %v1851, %v1694
        %v1875 = vsub.f32 %v1851, %v1697
        %v1876 = vsub.f32 %v1851, %v1700
        %v1877 = vsub.f32 %v1851, %v1703
        %v1878 = vsub.f32 %v1851, %v1706
        %v1879 = vsub.f32 %v1851, %v1709
        %v1880 = vsub.f32 %v1851, %v1712
        %v1881 = vsub.f32 %v1851, %v1715
        %v1882 = vsub.f32 %v1851, %v1718
        %v1883 = vsub.f32 %v1851, %v1721
        %v1884 = vadd.f32 %v1819, %v1852
        %v1885 = vadd.f32 %v1820, %v1853
        %v1886 = vadd.f32 %v1821, %v1854
        %v1887 = vadd.f32 %v1822, %v1855
        %v1888 = vadd.f32 %v1823, %v1856
        %v1889 = vadd.f32 %v1824, %v1857
        %v1890 = vadd.f32 %v1825, %v1858
        %v1891 = vadd.f32 %v1826, %v1859
        %v1892 = vadd.f32 %v1827, %v1860
        %v1893 = vadd.f32 %v1828, %v1861
        %v1894 = vadd.f32 %v1829, %v1862
        %v1895 = vadd.f32 %v1830, %v1863
        %v1896 = vadd.f32 %v1831, %v1864
        %v1897 = vadd.f32 %v1832, %v1865
        %v1898 = vadd.f32 %v1833, %v1866
        %v1899 = vadd.f32 %v1834, %v1867
        %v1900 = vadd.f32 %v1835, %v1868
        %v1901 = vadd.f32 %v1836, %v1869
        %v1902 = vadd.f32 %v1837, %v1870
        %v1903 = vadd.f32 %v1838, %v1871
        %v1904 = vadd.f32 %v1839, %v1872
        %v1905 = vadd.f32 %v1840, %v1873
        %v1906 = vadd.f32 %v1841, %v1874
        %v1907 = vadd.f32 %v1842, %v1875
        %v1908 = vadd.f32 %v1843, %v1876
        %v1909 = vadd.f32 %v1844, %v1877
        %v1910 = vadd.f32 %v1845, %v1878
        %v1911 = vadd.f32 %v1846, %v1879
        %v1912 = vadd.f32 %v1847, %v1880
        %v1913 = vadd.f32 %v1848, %v1881
        %v1914 = vadd.f32 %v1849, %v1882
        %v1915 = vadd.f32 %v1850, %v1883
        %vm1916 = vcmp.ge.f32.partialorder %v1884, 0.0
        %vm1917 = vcmp.ge.f32.partialorder %v1885, 0.0
        %vm1918 = vcmp.ge.f32.partialorder %v1886, 0.0
        %vm1919 = vcmp.ge.f32.partialorder %v1887, 0.0
        %vm1920 = vcmp.ge.f32.partialorder %v1888, 0.0
        %vm1921 = vcmp.ge.f32.partialorder %v1889, 0.0
        %vm1922 = vcmp.ge.f32.partialorder %v1890, 0.0
        %vm1923 = vcmp.ge.f32.partialorder %v1891, 0.0
        %vm1924 = vcmp.ge.f32.partialorder %v1892, 0.0
        %vm1925 = vcmp.ge.f32.partialorder %v1893, 0.0
        %vm1926 = vcmp.ge.f32.partialorder %v1894, 0.0
        %vm1927 = vcmp.ge.f32.partialorder %v1895, 0.0
        %vm1928 = vcmp.ge.f32.partialorder %v1896, 0.0
        %vm1929 = vcmp.ge.f32.partialorder %v1897, 0.0
        %vm1930 = vcmp.ge.f32.partialorder %v1898, 0.0
        %vm1931 = vcmp.ge.f32.partialorder %v1899, 0.0
        %vm1932 = vcmp.ge.f32.partialorder %v1900, 0.0
        %vm1933 = vcmp.ge.f32.partialorder %v1901, 0.0
        %vm1934 = vcmp.ge.f32.partialorder %v1902, 0.0
        %vm1935 = vcmp.ge.f32.partialorder %v1903, 0.0
        %vm1936 = vcmp.ge.f32.partialorder %v1904, 0.0
        %vm1937 = vcmp.ge.f32.partialorder %v1905, 0.0
        %vm1938 = vcmp.ge.f32.partialorder %v1906, 0.0
        %vm1939 = vcmp.ge.f32.partialorder %v1907, 0.0
        %vm1940 = vcmp.ge.f32.partialorder %v1908, 0.0
        %vm1941 = vcmp.ge.f32.partialorder %v1909, 0.0
        %vm1942 = vcmp.ge.f32.partialorder %v1910, 0.0
        %vm1943 = vcmp.ge.f32.partialorder %v1911, 0.0
        %vm1944 = vcmp.ge.f32.partialorder %v1912, 0.0
        %vm1945 = vcmp.ge.f32.partialorder %v1913, 0.0
        %vm1946 = vcmp.ge.f32.partialorder %v1914, 0.0
        %vm1947 = vcmp.ge.f32.partialorder %v1915, 0.0
        %v1948 = vmul.f32 %v1884, 0.01
        %v1949 = vmul.f32 %v1885, 0.01
        %v1950 = vmul.f32 %v1886, 0.01
        %v1951 = vmul.f32 %v1887, 0.01
        %v1952 = vmul.f32 %v1888, 0.01
        %v1953 = vmul.f32 %v1889, 0.01
        %v1954 = vmul.f32 %v1890, 0.01
        %v1955 = vmul.f32 %v1891, 0.01
        %v1956 = vmul.f32 %v1892, 0.01
        %v1957 = vmul.f32 %v1893, 0.01
        %v1958 = vmul.f32 %v1894, 0.01
        %v1959 = vmul.f32 %v1895, 0.01
        %v1960 = vmul.f32 %v1896, 0.01
        %v1961 = vmul.f32 %v1897, 0.01
        %v1962 = vmul.f32 %v1898, 0.01
        %v1963 = vmul.f32 %v1899, 0.01
        %v1964 = vmul.f32 %v1900, 0.01
        %v1965 = vmul.f32 %v1901, 0.01
        %v1966 = vmul.f32 %v1902, 0.01
        %v1967 = vmul.f32 %v1903, 0.01
        %v1968 = vmul.f32 %v1904, 0.01
        %v1969 = vmul.f32 %v1905, 0.01
        %v1970 = vmul.f32 %v1906, 0.01
        %v1971 = vmul.f32 %v1907, 0.01
        %v1972 = vmul.f32 %v1908, 0.01
        %v1973 = vmul.f32 %v1909, 0.01
        %v1974 = vmul.f32 %v1910, 0.01
        %v1975 = vmul.f32 %v1911, 0.01
        %v1976 = vmul.f32 %v1912, 0.01
        %v1977 = vmul.f32 %v1913, 0.01
        %v1978 = vmul.f32 %v1914, 0.01
        %v1979 = vmul.f32 %v1915, 0.01
        %v1980 = vsel %vm1916, %v1884, %v1948
        %v1981 = vsel %vm1917, %v1885, %v1949
        %v1982 = vsel %vm1918, %v1886, %v1950
        %v1983 = vsel %vm1919, %v1887, %v1951
        %v1984 = vsel %vm1920, %v1888, %v1952
        %v1985 = vsel %vm1921, %v1889, %v1953
        %v1986 = vsel %vm1922, %v1890, %v1954
        %v1987 = vsel %vm1923, %v1891, %v1955
        %v1988 = vsel %vm1924, %v1892, %v1956
        %v1989 = vsel %vm1925, %v1893, %v1957
        %v1990 = vsel %vm1926, %v1894, %v1958
        %v1991 = vsel %vm1927, %v1895, %v1959
        %v1992 = vsel %vm1928, %v1896, %v1960
        %v1993 = vsel %vm1929, %v1897, %v1961
        %v1994 = vsel %vm1930, %v1898, %v1962
        %v1995 = vsel %vm1931, %v1899, %v1963
        %v1996 = vsel %vm1932, %v1900, %v1964
        %v1997 = vsel %vm1933, %v1901, %v1965
        %v1998 = vsel %vm1934, %v1902, %v1966
        %v1999 = vsel %vm1935, %v1903, %v1967
        %v2000 = vsel %vm1936, %v1904, %v1968
        %v2001 = vsel %vm1937, %v1905, %v1969
        %v2002 = vsel %vm1938, %v1906, %v1970
        %v2003 = vsel %vm1939, %v1907, %v1971
        %v2004 = vsel %vm1940, %v1908, %v1972
        %v2005 = vsel %vm1941, %v1909, %v1973
        %v2006 = vsel %vm1942, %v1910, %v1974
        %v2007 = vsel %vm1943, %v1911, %v1975
        %v2008 = vsel %vm1944, %v1912, %v1976
        %v2009 = vsel %vm1945, %v1913, %v1977
        %v2010 = vsel %vm1946, %v1914, %v1978
        %v2011 = vsel %vm1947, %v1915, %v1979
        %v2012 = vpack.c.bf16 %v1981, %v1980
        %v2013 = vpack.c.bf16 %v1983, %v1982
        %v2014 = vpack.c.bf16 %v1985, %v1984
        %v2015 = vpack.c.bf16 %v1987, %v1986
        %v2016 = vpack.c.bf16 %v1989, %v1988
        %v2017 = vpack.c.bf16 %v1991, %v1990
        %v2018 = vpack.c.bf16 %v1993, %v1992
        %v2019 = vpack.c.bf16 %v1995, %v1994
        %v2020 = vpack.c.bf16 %v1997, %v1996
        %v2021 = vpack.c.bf16 %v1999, %v1998
        %v2022 = vpack.c.bf16 %v2001, %v2000
        %v2023 = vpack.c.bf16 %v2003, %v2002
        %v2024 = vpack.c.bf16 %v2005, %v2004
        %v2025 = vpack.c.bf16 %v2007, %v2006
        %v2026 = vpack.c.bf16 %v2009, %v2008
        %v2027 = vpack.c.bf16 %v2011, %v2010
        %v2028 = vperm.slane %v227, 0
        %v2037 = vunpack.c.l.b16 %v209
        %v2038 = vunpack.c.l.b16 %v210
        %v2039 = vunpack.c.l.b16 %v211
        %v2040 = vunpack.c.l.b16 %v212
        %v2041 = vunpack.c.l.b16 %v213
        %v2042 = vunpack.c.l.b16 %v214
        %v2043 = vunpack.c.l.b16 %v215
        %v2044 = vunpack.c.l.b16 %v216
        %v2045 = vpack.c.b16 %v2038, %v2037
        %v2046 = vpack.c.b16 %v2040, %v2039
        %v2047 = vpack.c.b16 %v2042, %v2041
        %v2048 = vpack.c.b16 %v2044, %v2043
        %v2054 = vsel %vm503, %v2012, 0
        %v2057 = vsel %vm503, %v2013, 0
        %v2060 = vsel %vm503, %v2014, 0
        %v2063 = vsel %vm503, %v2015, 0
        %v2066 = vsel %vm503, %v2016, 0
        %v2069 = vsel %vm503, %v2017, 0
        %v2072 = vsel %vm503, %v2018, 0
        %v2075 = vsel %vm503, %v2019, 0
        %v2078 = vsel %vm503, %v2020, 0
        %v2081 = vsel %vm503, %v2021, 0
        %v2084 = vsel %vm503, %v2022, 0
        %v2087 = vsel %vm503, %v2023, 0
        %v2090 = vsel %vm503, %v2024, 0
        %v2093 = vsel %vm503, %v2025, 0
        %v2096 = vsel %vm503, %v2026, 0
        %v2099 = vsel %vm503, %v2027, 0
        %2101 = vmatpush.bf16.msra.mxu0 0
        %2102 = vmatpush.bf16.msra.mxu0 0
        %2103 = vmatpush.bf16.msra.mxu0 0
        %2104 = vmatpush.bf16.msra.mxu0 0
        %2105 = vmatpush.bf16.msra.mxu0 %v2048
        %2106 = vmatpush.bf16.msra.mxu0 %v2047
        %2107 = vmatpush.bf16.msra.mxu0 %v2046
        %2108 = vmatpush.bf16.msra.mxu0 %v2045
        %2109 = vmatmul.bf16.gmra.mxu0 %v2054
        %v2110 = vpop.f32.mrf.mxu0
        %v2111 = vadd.f32 %v2028, %v2110
        %v2112 = vpop.f32.mrf.mxu0
        %v2113 = vadd.f32 %v2028, %v2112
        %2114 = vmatmul.bf16.gmra.mxu0 %v2057
        %v2115 = vpop.f32.mrf.mxu0
        %v2116 = vadd.f32 %v2028, %v2115
        %v2117 = vpop.f32.mrf.mxu0
        %v2118 = vadd.f32 %v2028, %v2117
        %2119 = vmatmul.bf16.gmra.mxu0 %v2060
        %v2120 = vpop.f32.mrf.mxu0
        %v2121 = vadd.f32 %v2028, %v2120
        %v2122 = vpop.f32.mrf.mxu0
        %v2123 = vadd.f32 %v2028, %v2122
        %2124 = vmatmul.bf16.gmra.mxu0 %v2063
        %v2125 = vpop.f32.mrf.mxu0
        %v2126 = vadd.f32 %v2028, %v2125
        %v2127 = vpop.f32.mrf.mxu0
        %v2128 = vadd.f32 %v2028, %v2127
        %2129 = vmatmul.bf16.gmra.mxu0 %v2066
        %v2130 = vpop.f32.mrf.mxu0
        %v2131 = vadd.f32 %v2028, %v2130
        %v2132 = vpop.f32.mrf.mxu0
        %v2133 = vadd.f32 %v2028, %v2132
        %2134 = vmatmul.bf16.gmra.mxu0 %v2069
        %v2135 = vpop.f32.mrf.mxu0
        %v2136 = vadd.f32 %v2028, %v2135
        %v2137 = vpop.f32.mrf.mxu0
        %v2138 = vadd.f32 %v2028, %v2137
        %2139 = vmatmul.bf16.gmra.mxu0 %v2072
        %v2140 = vpop.f32.mrf.mxu0
        %v2141 = vadd.f32 %v2028, %v2140
        %v2142 = vpop.f32.mrf.mxu0
        %v2143 = vadd.f32 %v2028, %v2142
        %2144 = vmatmul.bf16.gmra.mxu0 %v2075
        %v2145 = vpop.f32.mrf.mxu0
        %v2146 = vadd.f32 %v2028, %v2145
        %v2147 = vpop.f32.mrf.mxu0
        %v2148 = vadd.f32 %v2028, %v2147
        %2149 = vmatmul.bf16.gmra.mxu0 %v2078
        %v2150 = vpop.f32.mrf.mxu0
        %v2151 = vadd.f32 %v2028, %v2150
        %v2152 = vpop.f32.mrf.mxu0
        %v2153 = vadd.f32 %v2028, %v2152
        %2154 = vmatmul.bf16.gmra.mxu0 %v2081
        %v2155 = vpop.f32.mrf.mxu0
        %v2156 = vadd.f32 %v2028, %v2155
        %v2157 = vpop.f32.mrf.mxu0
        %v2158 = vadd.f32 %v2028, %v2157
        %2159 = vmatmul.bf16.gmra.mxu0 %v2084
        %v2160 = vpop.f32.mrf.mxu0
        %v2161 = vadd.f32 %v2028, %v2160
        %v2162 = vpop.f32.mrf.mxu0
        %v2163 = vadd.f32 %v2028, %v2162
        %2164 = vmatmul.bf16.gmra.mxu0 %v2087
        %v2165 = vpop.f32.mrf.mxu0
        %v2166 = vadd.f32 %v2028, %v2165
        %v2167 = vpop.f32.mrf.mxu0
        %v2168 = vadd.f32 %v2028, %v2167
        %2169 = vmatmul.bf16.gmra.mxu0 %v2090
        %v2170 = vpop.f32.mrf.mxu0
        %v2171 = vadd.f32 %v2028, %v2170
        %v2172 = vpop.f32.mrf.mxu0
        %v2173 = vadd.f32 %v2028, %v2172
        %2174 = vmatmul.bf16.gmra.mxu0 %v2093
        %v2175 = vpop.f32.mrf.mxu0
        %v2176 = vadd.f32 %v2028, %v2175
        %v2177 = vpop.f32.mrf.mxu0
        %v2178 = vadd.f32 %v2028, %v2177
        %2179 = vmatmul.bf16.gmra.mxu0 %v2096
        %v2180 = vpop.f32.mrf.mxu0
        %v2181 = vadd.f32 %v2028, %v2180
        %v2182 = vpop.f32.mrf.mxu0
        %v2183 = vadd.f32 %v2028, %v2182
        %2184 = vmatmul.bf16.gmra.mxu0 %v2099
        %v2185 = vpop.f32.mrf.mxu0
        %v2186 = vadd.f32 %v2028, %v2185
        %v2187 = vpop.f32.mrf.mxu0
        %v2188 = vadd.f32 %v2028, %v2187
        %2189 = vdwg.mxu0
        %v2190 = vmul.f32 %v2111, %v2111
        %v2191 = vmul.f32 %v2113, %v2113
        %v2192 = vmul.f32 %v2116, %v2116
        %v2193 = vmul.f32 %v2118, %v2118
        %v2194 = vmul.f32 %v2121, %v2121
        %v2195 = vmul.f32 %v2123, %v2123
        %v2196 = vmul.f32 %v2126, %v2126
        %v2197 = vmul.f32 %v2128, %v2128
        %v2198 = vmul.f32 %v2131, %v2131
        %v2199 = vmul.f32 %v2133, %v2133
        %v2200 = vmul.f32 %v2136, %v2136
        %v2201 = vmul.f32 %v2138, %v2138
        %v2202 = vmul.f32 %v2141, %v2141
        %v2203 = vmul.f32 %v2143, %v2143
        %v2204 = vmul.f32 %v2146, %v2146
        %v2205 = vmul.f32 %v2148, %v2148
        %v2206 = vmul.f32 %v2151, %v2151
        %v2207 = vmul.f32 %v2153, %v2153
        %v2208 = vmul.f32 %v2156, %v2156
        %v2209 = vmul.f32 %v2158, %v2158
        %v2210 = vmul.f32 %v2161, %v2161
        %v2211 = vmul.f32 %v2163, %v2163
        %v2212 = vmul.f32 %v2166, %v2166
        %v2213 = vmul.f32 %v2168, %v2168
        %v2214 = vmul.f32 %v2171, %v2171
        %v2215 = vmul.f32 %v2173, %v2173
        %v2216 = vmul.f32 %v2176, %v2176
        %v2217 = vmul.f32 %v2178, %v2178
        %v2218 = vmul.f32 %v2181, %v2181
        %v2219 = vmul.f32 %v2183, %v2183
        %v2220 = vmul.f32 %v2186, %v2186
        %v2221 = vmul.f32 %v2188, %v2188
        %v2223 = vsel %vm503, %v2111, 0
        %v2226 = vsel %vm503, %v2113, 0
        %v2229 = vsel %vm503, %v2116, 0
        %v2232 = vsel %vm503, %v2118, 0
        %v2235 = vsel %vm503, %v2121, 0
        %v2238 = vsel %vm503, %v2123, 0
        %v2241 = vsel %vm503, %v2126, 0
        %v2244 = vsel %vm503, %v2128, 0
        %v2247 = vsel %vm503, %v2131, 0
        %v2250 = vsel %vm503, %v2133, 0
        %v2253 = vsel %vm503, %v2136, 0
        %v2256 = vsel %vm503, %v2138, 0
        %v2259 = vsel %vm503, %v2141, 0
        %v2262 = vsel %vm503, %v2143, 0
        %v2265 = vsel %vm503, %v2146, 0
        %v2268 = vsel %vm503, %v2148, 0
        %v2271 = vsel %vm503, %v2151, 0
        %v2274 = vsel %vm503, %v2153, 0
        %v2277 = vsel %vm503, %v2156, 0
        %v2280 = vsel %vm503, %v2158, 0
        %v2283 = vsel %vm503, %v2161, 0
        %v2286 = vsel %vm503, %v2163, 0
        %v2289 = vsel %vm503, %v2166, 0
        %v2292 = vsel %vm503, %v2168, 0
        %v2295 = vsel %vm503, %v2171, 0
        %v2298 = vsel %vm503, %v2173, 0
        %v2301 = vsel %vm503, %v2176, 0
        %v2304 = vsel %vm503, %v2178, 0
        %v2307 = vsel %vm503, %v2181, 0
        %v2310 = vsel %vm503, %v2183, 0
        %v2313 = vsel %vm503, %v2186, 0
        %v2316 = vsel %vm503, %v2188, 0
        %v2319 = vsel %vm503, %v2190, 0
        %v2322 = vsel %vm503, %v2191, 0
        %v2325 = vsel %vm503, %v2192, 0
        %v2328 = vsel %vm503, %v2193, 0
        %v2331 = vsel %vm503, %v2194, 0
        %v2334 = vsel %vm503, %v2195, 0
        %v2337 = vsel %vm503, %v2196, 0
        %v2340 = vsel %vm503, %v2197, 0
        %v2343 = vsel %vm503, %v2198, 0
        %v2346 = vsel %vm503, %v2199, 0
        %v2349 = vsel %vm503, %v2200, 0
        %v2352 = vsel %vm503, %v2201, 0
        %v2355 = vsel %vm503, %v2202, 0
        %v2358 = vsel %vm503, %v2203, 0
        %v2361 = vsel %vm503, %v2204, 0
        %v2364 = vsel %vm503, %v2205, 0
        %v2367 = vsel %vm503, %v2206, 0
        %v2370 = vsel %vm503, %v2207, 0
        %v2373 = vsel %vm503, %v2208, 0
        %v2376 = vsel %vm503, %v2209, 0
        %v2379 = vsel %vm503, %v2210, 0
        %v2382 = vsel %vm503, %v2211, 0
        %v2385 = vsel %vm503, %v2212, 0
        %v2388 = vsel %vm503, %v2213, 0
        %v2391 = vsel %vm503, %v2214, 0
        %v2394 = vsel %vm503, %v2215, 0
        %v2397 = vsel %vm503, %v2216, 0
        %v2400 = vsel %vm503, %v2217, 0
        %v2403 = vsel %vm503, %v2218, 0
        %v2406 = vsel %vm503, %v2219, 0
        %v2409 = vsel %vm503, %v2220, 0
        %v2412 = vsel %vm503, %v2221, 0
        %2414 = vmatpush.msra.mxu0 0.0
        %2415 = vmatpush.msra.mxu0 0.0
        %2416 = vmatpush.msra.mxu0 0.0
        %2417 = vmatpush.msra.mxu0 0.0
        %2418 = vmatpush.msra.mxu0 0.0
        %2419 = vmatpush.msra.mxu0 0.0
        %2420 = vmatpush.msra.mxu0 0.0
        %2421 = vmatpush.msra.mxu0 0.0
        %2422 = vmatpush.msra.mxu0 %v239
        %2423 = vmatpush.msra.mxu0 %v238
        %2424 = vmatpush.msra.mxu0 %v237
        %2425 = vmatpush.msra.mxu0 %v236
        %2426 = vmatpush.msra.mxu0 %v235
        %2427 = vmatpush.msra.mxu0 %v234
        %2428 = vmatpush.msra.mxu0 %v233
        %2429 = vmatpush.msra.mxu0 %v232
        %2430 = vmatmul.f32.gmra.mxu0 %v2223
        %v2431 = vpop.f32.mrf.mxu0
        %v2432 = vadd.f32 0.0, %v2431
        %2433 = vmatmul.f32.gmra.mxu0 %v2226
        %v2434 = vpop.f32.mrf.mxu0
        %v2435 = vadd.f32 0.0, %v2434
        %2436 = vmatmul.f32.gmra.mxu0 %v2229
        %v2437 = vpop.f32.mrf.mxu0
        %v2438 = vadd.f32 0.0, %v2437
        %2439 = vmatmul.f32.gmra.mxu0 %v2232
        %v2440 = vpop.f32.mrf.mxu0
        %v2441 = vadd.f32 0.0, %v2440
        %2442 = vmatmul.f32.gmra.mxu0 %v2235
        %v2443 = vpop.f32.mrf.mxu0
        %v2444 = vadd.f32 0.0, %v2443
        %2445 = vmatmul.f32.gmra.mxu0 %v2238
        %v2446 = vpop.f32.mrf.mxu0
        %v2447 = vadd.f32 0.0, %v2446
        %2448 = vmatmul.f32.gmra.mxu0 %v2241
        %v2449 = vpop.f32.mrf.mxu0
        %v2450 = vadd.f32 0.0, %v2449
        %2451 = vmatmul.f32.gmra.mxu0 %v2244
        %v2452 = vpop.f32.mrf.mxu0
        %v2453 = vadd.f32 0.0, %v2452
        %2454 = vmatmul.f32.gmra.mxu0 %v2247
        %v2455 = vpop.f32.mrf.mxu0
        %v2456 = vadd.f32 0.0, %v2455
        %2457 = vmatmul.f32.gmra.mxu0 %v2250
        %v2458 = vpop.f32.mrf.mxu0
        %v2459 = vadd.f32 0.0, %v2458
        %2460 = vmatmul.f32.gmra.mxu0 %v2253
        %v2461 = vpop.f32.mrf.mxu0
        %v2462 = vadd.f32 0.0, %v2461
        %2463 = vmatmul.f32.gmra.mxu0 %v2256
        %v2464 = vpop.f32.mrf.mxu0
        %v2465 = vadd.f32 0.0, %v2464
        %2466 = vmatmul.f32.gmra.mxu0 %v2259
        %v2467 = vpop.f32.mrf.mxu0
        %v2468 = vadd.f32 0.0, %v2467
        %2469 = vmatmul.f32.gmra.mxu0 %v2262
        %v2470 = vpop.f32.mrf.mxu0
        %v2471 = vadd.f32 0.0, %v2470
        %2472 = vmatmul.f32.gmra.mxu0 %v2265
        %v2473 = vpop.f32.mrf.mxu0
        %v2474 = vadd.f32 0.0, %v2473
        %2475 = vmatmul.f32.gmra.mxu0 %v2268
        %v2476 = vpop.f32.mrf.mxu0
        %v2477 = vadd.f32 0.0, %v2476
        %2478 = vmatmul.f32.gmra.mxu0 %v2271
        %v2479 = vpop.f32.mrf.mxu0
        %v2480 = vadd.f32 0.0, %v2479
        %2481 = vmatmul.f32.gmra.mxu0 %v2274
        %v2482 = vpop.f32.mrf.mxu0
        %v2483 = vadd.f32 0.0, %v2482
        %2484 = vmatmul.f32.gmra.mxu0 %v2277
        %v2485 = vpop.f32.mrf.mxu0
        %v2486 = vadd.f32 0.0, %v2485
        %2487 = vmatmul.f32.gmra.mxu0 %v2280
        %v2488 = vpop.f32.mrf.mxu0
        %v2489 = vadd.f32 0.0, %v2488
        %2490 = vmatmul.f32.gmra.mxu0 %v2283
        %v2491 = vpop.f32.mrf.mxu0
        %v2492 = vadd.f32 0.0, %v2491
        %2493 = vmatmul.f32.gmra.mxu0 %v2286
        %v2494 = vpop.f32.mrf.mxu0
        %v2495 = vadd.f32 0.0, %v2494
        %2496 = vmatmul.f32.gmra.mxu0 %v2289
        %v2497 = vpop.f32.mrf.mxu0
        %v2498 = vadd.f32 0.0, %v2497
        %2499 = vmatmul.f32.gmra.mxu0 %v2292
        %v2500 = vpop.f32.mrf.mxu0
        %v2501 = vadd.f32 0.0, %v2500
        %2502 = vmatmul.f32.gmra.mxu0 %v2295
        %v2503 = vpop.f32.mrf.mxu0
        %v2504 = vadd.f32 0.0, %v2503
        %2505 = vmatmul.f32.gmra.mxu0 %v2298
        %v2506 = vpop.f32.mrf.mxu0
        %v2507 = vadd.f32 0.0, %v2506
        %2508 = vmatmul.f32.gmra.mxu0 %v2301
        %v2509 = vpop.f32.mrf.mxu0
        %v2510 = vadd.f32 0.0, %v2509
        %2511 = vmatmul.f32.gmra.mxu0 %v2304
        %v2512 = vpop.f32.mrf.mxu0
        %v2513 = vadd.f32 0.0, %v2512
        %2514 = vmatmul.f32.gmra.mxu0 %v2307
        %v2515 = vpop.f32.mrf.mxu0
        %v2516 = vadd.f32 0.0, %v2515
        %2517 = vmatmul.f32.gmra.mxu0 %v2310
        %v2518 = vpop.f32.mrf.mxu0
        %v2519 = vadd.f32 0.0, %v2518
        %2520 = vmatmul.f32.gmra.mxu0 %v2313
        %v2521 = vpop.f32.mrf.mxu0
        %v2522 = vadd.f32 0.0, %v2521
        %2523 = vmatmul.f32.gmra.mxu0 %v2316
        %v2524 = vpop.f32.mrf.mxu0
        %v2525 = vadd.f32 0.0, %v2524
        %2526 = vmatmul.f32.gmra.mxu0 %v2319
        %v2527 = vpop.f32.mrf.mxu0
        %v2528 = vadd.f32 0.0, %v2527
        %2529 = vmatmul.f32.gmra.mxu0 %v2322
        %v2530 = vpop.f32.mrf.mxu0
        %v2531 = vadd.f32 0.0, %v2530
        %2532 = vmatmul.f32.gmra.mxu0 %v2325
        %v2533 = vpop.f32.mrf.mxu0
        %v2534 = vadd.f32 0.0, %v2533
        %2535 = vmatmul.f32.gmra.mxu0 %v2328
        %v2536 = vpop.f32.mrf.mxu0
        %v2537 = vadd.f32 0.0, %v2536
        %2538 = vmatmul.f32.gmra.mxu0 %v2331
        %v2539 = vpop.f32.mrf.mxu0
        %v2540 = vadd.f32 0.0, %v2539
        %2541 = vmatmul.f32.gmra.mxu0 %v2334
        %v2542 = vpop.f32.mrf.mxu0
        %v2543 = vadd.f32 0.0, %v2542
        %2544 = vmatmul.f32.gmra.mxu0 %v2337
        %v2545 = vpop.f32.mrf.mxu0
        %v2546 = vadd.f32 0.0, %v2545
        %2547 = vmatmul.f32.gmra.mxu0 %v2340
        %v2548 = vpop.f32.mrf.mxu0
        %v2549 = vadd.f32 0.0, %v2548
        %2550 = vmatmul.f32.gmra.mxu0 %v2343
        %v2551 = vpop.f32.mrf.mxu0
        %v2552 = vadd.f32 0.0, %v2551
        %2553 = vmatmul.f32.gmra.mxu0 %v2346
        %v2554 = vpop.f32.mrf.mxu0
        %v2555 = vadd.f32 0.0, %v2554
        %2556 = vmatmul.f32.gmra.mxu0 %v2349
        %v2557 = vpop.f32.mrf.mxu0
        %v2558 = vadd.f32 0.0, %v2557
        %2559 = vmatmul.f32.gmra.mxu0 %v2352
        %v2560 = vpop.f32.mrf.mxu0
        %v2561 = vadd.f32 0.0, %v2560
        %2562 = vmatmul.f32.gmra.mxu0 %v2355
        %v2563 = vpop.f32.mrf.mxu0
        %v2564 = vadd.f32 0.0, %v2563
        %2565 = vmatmul.f32.gmra.mxu0 %v2358
        %v2566 = vpop.f32.mrf.mxu0
        %v2567 = vadd.f32 0.0, %v2566
        %2568 = vmatmul.f32.gmra.mxu0 %v2361
        %v2569 = vpop.f32.mrf.mxu0
        %v2570 = vadd.f32 0.0, %v2569
        %2571 = vmatmul.f32.gmra.mxu0 %v2364
        %v2572 = vpop.f32.mrf.mxu0
        %v2573 = vadd.f32 0.0, %v2572
        %2574 = vmatmul.f32.gmra.mxu0 %v2367
        %v2575 = vpop.f32.mrf.mxu0
        %v2576 = vadd.f32 0.0, %v2575
        %2577 = vmatmul.f32.gmra.mxu0 %v2370
        %v2578 = vpop.f32.mrf.mxu0
        %v2579 = vadd.f32 0.0, %v2578
        %2580 = vmatmul.f32.gmra.mxu0 %v2373
        %v2581 = vpop.f32.mrf.mxu0
        %v2582 = vadd.f32 0.0, %v2581
        %2583 = vmatmul.f32.gmra.mxu0 %v2376
        %v2584 = vpop.f32.mrf.mxu0
        %v2585 = vadd.f32 0.0, %v2584
        %2586 = vmatmul.f32.gmra.mxu0 %v2379
        %v2587 = vpop.f32.mrf.mxu0
        %v2588 = vadd.f32 0.0, %v2587
        %2589 = vmatmul.f32.gmra.mxu0 %v2382
        %v2590 = vpop.f32.mrf.mxu0
        %v2591 = vadd.f32 0.0, %v2590
        %2592 = vmatmul.f32.gmra.mxu0 %v2385
        %v2593 = vpop.f32.mrf.mxu0
        %v2594 = vadd.f32 0.0, %v2593
        %2595 = vmatmul.f32.gmra.mxu0 %v2388
        %v2596 = vpop.f32.mrf.mxu0
        %v2597 = vadd.f32 0.0, %v2596
        %2598 = vmatmul.f32.gmra.mxu0 %v2391
        %v2599 = vpop.f32.mrf.mxu0
        %v2600 = vadd.f32 0.0, %v2599
        %2601 = vmatmul.f32.gmra.mxu0 %v2394
        %v2602 = vpop.f32.mrf.mxu0
        %v2603 = vadd.f32 0.0, %v2602
        %2604 = vmatmul.f32.gmra.mxu0 %v2397
        %v2605 = vpop.f32.mrf.mxu0
        %v2606 = vadd.f32 0.0, %v2605
        %2607 = vmatmul.f32.gmra.mxu0 %v2400
        %v2608 = vpop.f32.mrf.mxu0
        %v2609 = vadd.f32 0.0, %v2608
        %2610 = vmatmul.f32.gmra.mxu0 %v2403
        %v2611 = vpop.f32.mrf.mxu0
        %v2612 = vadd.f32 0.0, %v2611
        %2613 = vmatmul.f32.gmra.mxu0 %v2406
        %v2614 = vpop.f32.mrf.mxu0
        %v2615 = vadd.f32 0.0, %v2614
        %2616 = vmatmul.f32.gmra.mxu0 %v2409
        %v2617 = vpop.f32.mrf.mxu0
        %v2618 = vadd.f32 0.0, %v2617
        %2619 = vmatmul.f32.gmra.mxu0 %v2412
        %v2620 = vpop.f32.mrf.mxu0
        %v2621 = vadd.f32 0.0, %v2620
        %2622 = vdwg.mxu0
        %v2623 = vmul.f32 %v2432, 0.125
        %v2624 = vmul.f32 %v2435, 0.125
        %v2625 = vmul.f32 %v2438, 0.125
        %v2626 = vmul.f32 %v2441, 0.125
        %v2627 = vmul.f32 %v2444, 0.125
        %v2628 = vmul.f32 %v2447, 0.125
        %v2629 = vmul.f32 %v2450, 0.125
        %v2630 = vmul.f32 %v2453, 0.125
        %v2631 = vmul.f32 %v2456, 0.125
        %v2632 = vmul.f32 %v2459, 0.125
        %v2633 = vmul.f32 %v2462, 0.125
        %v2634 = vmul.f32 %v2465, 0.125
        %v2635 = vmul.f32 %v2468, 0.125
        %v2636 = vmul.f32 %v2471, 0.125
        %v2637 = vmul.f32 %v2474, 0.125
        %v2638 = vmul.f32 %v2477, 0.125
        %v2639 = vmul.f32 %v2480, 0.125
        %v2640 = vmul.f32 %v2483, 0.125
        %v2641 = vmul.f32 %v2486, 0.125
        %v2642 = vmul.f32 %v2489, 0.125
        %v2643 = vmul.f32 %v2492, 0.125
        %v2644 = vmul.f32 %v2495, 0.125
        %v2645 = vmul.f32 %v2498, 0.125
        %v2646 = vmul.f32 %v2501, 0.125
        %v2647 = vmul.f32 %v2504, 0.125
        %v2648 = vmul.f32 %v2507, 0.125
        %v2649 = vmul.f32 %v2510, 0.125
        %v2650 = vmul.f32 %v2513, 0.125
        %v2651 = vmul.f32 %v2516, 0.125
        %v2652 = vmul.f32 %v2519, 0.125
        %v2653 = vmul.f32 %v2522, 0.125
        %v2654 = vmul.f32 %v2525, 0.125
        %v2655 = vmul.f32 %v2528, 0.125
        %v2656 = vmul.f32 %v2531, 0.125
        %v2657 = vmul.f32 %v2534, 0.125
        %v2658 = vmul.f32 %v2537, 0.125
        %v2659 = vmul.f32 %v2540, 0.125
        %v2660 = vmul.f32 %v2543, 0.125
        %v2661 = vmul.f32 %v2546, 0.125
        %v2662 = vmul.f32 %v2549, 0.125
        %v2663 = vmul.f32 %v2552, 0.125
        %v2664 = vmul.f32 %v2555, 0.125
        %v2665 = vmul.f32 %v2558, 0.125
        %v2666 = vmul.f32 %v2561, 0.125
        %v2667 = vmul.f32 %v2564, 0.125
        %v2668 = vmul.f32 %v2567, 0.125
        %v2669 = vmul.f32 %v2570, 0.125
        %v2670 = vmul.f32 %v2573, 0.125
        %v2671 = vmul.f32 %v2576, 0.125
        %v2672 = vmul.f32 %v2579, 0.125
        %v2673 = vmul.f32 %v2582, 0.125
        %v2674 = vmul.f32 %v2585, 0.125
        %v2675 = vmul.f32 %v2588, 0.125
        %v2676 = vmul.f32 %v2591, 0.125
        %v2677 = vmul.f32 %v2594, 0.125
        %v2678 = vmul.f32 %v2597, 0.125
        %v2679 = vmul.f32 %v2600, 0.125
        %v2680 = vmul.f32 %v2603, 0.125
        %v2681 = vmul.f32 %v2606, 0.125
        %v2682 = vmul.f32 %v2609, 0.125
        %v2683 = vmul.f32 %v2612, 0.125
        %v2684 = vmul.f32 %v2615, 0.125
        %v2685 = vmul.f32 %v2618, 0.125
        %v2686 = vmul.f32 %v2621, 0.125
        %v2687 = vmul.f32 %v2623, %v2623
        %v2688 = vmul.f32 %v2624, %v2624
        %v2689 = vmul.f32 %v2625, %v2625
        %v2690 = vmul.f32 %v2626, %v2626
        %v2691 = vmul.f32 %v2627, %v2627
        %v2692 = vmul.f32 %v2628, %v2628
        %v2693 = vmul.f32 %v2629, %v2629
        %v2694 = vmul.f32 %v2630, %v2630
        %v2695 = vmul.f32 %v2631, %v2631
        %v2696 = vmul.f32 %v2632, %v2632
        %v2697 = vmul.f32 %v2633, %v2633
        %v2698 = vmul.f32 %v2634, %v2634
        %v2699 = vmul.f32 %v2635, %v2635
        %v2700 = vmul.f32 %v2636, %v2636
        %v2701 = vmul.f32 %v2637, %v2637
        %v2702 = vmul.f32 %v2638, %v2638
        %v2703 = vmul.f32 %v2639, %v2639
        %v2704 = vmul.f32 %v2640, %v2640
        %v2705 = vmul.f32 %v2641, %v2641
        %v2706 = vmul.f32 %v2642, %v2642
        %v2707 = vmul.f32 %v2643, %v2643
        %v2708 = vmul.f32 %v2644, %v2644
        %v2709 = vmul.f32 %v2645, %v2645
        %v2710 = vmul.f32 %v2646, %v2646
        %v2711 = vmul.f32 %v2647, %v2647
        %v2712 = vmul.f32 %v2648, %v2648
        %v2713 = vmul.f32 %v2649, %v2649
        %v2714 = vmul.f32 %v2650, %v2650
        %v2715 = vmul.f32 %v2651, %v2651
        %v2716 = vmul.f32 %v2652, %v2652
        %v2717 = vmul.f32 %v2653, %v2653
        %v2718 = vmul.f32 %v2654, %v2654
        %v2719 = vsub.f32 %v2655, %v2687
        %v2720 = vsub.f32 %v2656, %v2688
        %v2721 = vsub.f32 %v2657, %v2689
        %v2722 = vsub.f32 %v2658, %v2690
        %v2723 = vsub.f32 %v2659, %v2691
        %v2724 = vsub.f32 %v2660, %v2692
        %v2725 = vsub.f32 %v2661, %v2693
        %v2726 = vsub.f32 %v2662, %v2694
        %v2727 = vsub.f32 %v2663, %v2695
        %v2728 = vsub.f32 %v2664, %v2696
        %v2729 = vsub.f32 %v2665, %v2697
        %v2730 = vsub.f32 %v2666, %v2698
        %v2731 = vsub.f32 %v2667, %v2699
        %v2732 = vsub.f32 %v2668, %v2700
        %v2733 = vsub.f32 %v2669, %v2701
        %v2734 = vsub.f32 %v2670, %v2702
        %v2735 = vsub.f32 %v2671, %v2703
        %v2736 = vsub.f32 %v2672, %v2704
        %v2737 = vsub.f32 %v2673, %v2705
        %v2738 = vsub.f32 %v2674, %v2706
        %v2739 = vsub.f32 %v2675, %v2707
        %v2740 = vsub.f32 %v2676, %v2708
        %v2741 = vsub.f32 %v2677, %v2709
        %v2742 = vsub.f32 %v2678, %v2710
        %v2743 = vsub.f32 %v2679, %v2711
        %v2744 = vsub.f32 %v2680, %v2712
        %v2745 = vsub.f32 %v2681, %v2713
        %v2746 = vsub.f32 %v2682, %v2714
        %v2747 = vsub.f32 %v2683, %v2715
        %v2748 = vsub.f32 %v2684, %v2716
        %v2749 = vsub.f32 %v2685, %v2717
        %v2750 = vsub.f32 %v2686, %v2718
        %v2751 = vadd.f32 %v2719, 1e-05
        %v2752 = vadd.f32 %v2720, 1e-05
        %v2753 = vadd.f32 %v2721, 1e-05
        %v2754 = vadd.f32 %v2722, 1e-05
        %v2755 = vadd.f32 %v2723, 1e-05
        %v2756 = vadd.f32 %v2724, 1e-05
        %v2757 = vadd.f32 %v2725, 1e-05
        %v2758 = vadd.f32 %v2726, 1e-05
        %v2759 = vadd.f32 %v2727, 1e-05
        %v2760 = vadd.f32 %v2728, 1e-05
        %v2761 = vadd.f32 %v2729, 1e-05
        %v2762 = vadd.f32 %v2730, 1e-05
        %v2763 = vadd.f32 %v2731, 1e-05
        %v2764 = vadd.f32 %v2732, 1e-05
        %v2765 = vadd.f32 %v2733, 1e-05
        %v2766 = vadd.f32 %v2734, 1e-05
        %v2767 = vadd.f32 %v2735, 1e-05
        %v2768 = vadd.f32 %v2736, 1e-05
        %v2769 = vadd.f32 %v2737, 1e-05
        %v2770 = vadd.f32 %v2738, 1e-05
        %v2771 = vadd.f32 %v2739, 1e-05
        %v2772 = vadd.f32 %v2740, 1e-05
        %v2773 = vadd.f32 %v2741, 1e-05
        %v2774 = vadd.f32 %v2742, 1e-05
        %v2775 = vadd.f32 %v2743, 1e-05
        %v2776 = vadd.f32 %v2744, 1e-05
        %v2777 = vadd.f32 %v2745, 1e-05
        %v2778 = vadd.f32 %v2746, 1e-05
        %v2779 = vadd.f32 %v2747, 1e-05
        %v2780 = vadd.f32 %v2748, 1e-05
        %v2781 = vadd.f32 %v2749, 1e-05
        %v2782 = vadd.f32 %v2750, 1e-05
        %v2783 = vrsqrt.pop %v2751
        %v2784 = vmul.f32 %v2783, %v2751
        %v2785 = vmul.f32 %v2784, %v2783
        %v2786 = vmul.f32 0.5, %v2785
        %v2787 = vsub.f32 1.5, %v2786
        %v2788 = vmul.f32 %v2783, %v2787
        %vm2789 = vweird.f32 %v2751
        %vm2790 = vweird.f32 %v2783
        %vm2791 = vmor %vm2789, %vm2790
        %v2792 = vsel %vm2791, %v2783, %v2788
        %v2793 = vrsqrt.pop %v2752
        %v2794 = vmul.f32 %v2793, %v2752
        %v2795 = vmul.f32 %v2794, %v2793
        %v2796 = vmul.f32 0.5, %v2795
        %v2797 = vsub.f32 1.5, %v2796
        %v2798 = vmul.f32 %v2793, %v2797
        %vm2799 = vweird.f32 %v2752
        %vm2800 = vweird.f32 %v2793
        %vm2801 = vmor %vm2799, %vm2800
        %v2802 = vsel %vm2801, %v2793, %v2798
        %v2803 = vrsqrt.pop %v2753
        %v2804 = vmul.f32 %v2803, %v2753
        %v2805 = vmul.f32 %v2804, %v2803
        %v2806 = vmul.f32 0.5, %v2805
        %v2807 = vsub.f32 1.5, %v2806
        %v2808 = vmul.f32 %v2803, %v2807
        %vm2809 = vweird.f32 %v2753
        %vm2810 = vweird.f32 %v2803
        %vm2811 = vmor %vm2809, %vm2810
        %v2812 = vsel %vm2811, %v2803, %v2808
        %v2813 = vrsqrt.pop %v2754
        %v2814 = vmul.f32 %v2813, %v2754
        %v2815 = vmul.f32 %v2814, %v2813
        %v2816 = vmul.f32 0.5, %v2815
        %v2817 = vsub.f32 1.5, %v2816
        %v2818 = vmul.f32 %v2813, %v2817
        %vm2819 = vweird.f32 %v2754
        %vm2820 = vweird.f32 %v2813
        %vm2821 = vmor %vm2819, %vm2820
        %v2822 = vsel %vm2821, %v2813, %v2818
        %v2823 = vrsqrt.pop %v2755
        %v2824 = vmul.f32 %v2823, %v2755
        %v2825 = vmul.f32 %v2824, %v2823
        %v2826 = vmul.f32 0.5, %v2825
        %v2827 = vsub.f32 1.5, %v2826
        %v2828 = vmul.f32 %v2823, %v2827
        %vm2829 = vweird.f32 %v2755
        %vm2830 = vweird.f32 %v2823
        %vm2831 = vmor %vm2829, %vm2830
        %v2832 = vsel %vm2831, %v2823, %v2828
        %v2833 = vrsqrt.pop %v2756
        %v2834 = vmul.f32 %v2833, %v2756
        %v2835 = vmul.f32 %v2834, %v2833
        %v2836 = vmul.f32 0.5, %v2835
        %v2837 = vsub.f32 1.5, %v2836
        %v2838 = vmul.f32 %v2833, %v2837
        %vm2839 = vweird.f32 %v2756
        %vm2840 = vweird.f32 %v2833
        %vm2841 = vmor %vm2839, %vm2840
        %v2842 = vsel %vm2841, %v2833, %v2838
        %v2843 = vrsqrt.pop %v2757
        %v2844 = vmul.f32 %v2843, %v2757
        %v2845 = vmul.f32 %v2844, %v2843
        %v2846 = vmul.f32 0.5, %v2845
        %v2847 = vsub.f32 1.5, %v2846
        %v2848 = vmul.f32 %v2843, %v2847
        %vm2849 = vweird.f32 %v2757
        %vm2850 = vweird.f32 %v2843
        %vm2851 = vmor %vm2849, %vm2850
        %v2852 = vsel %vm2851, %v2843, %v2848
        %v2853 = vrsqrt.pop %v2758
        %v2854 = vmul.f32 %v2853, %v2758
        %v2855 = vmul.f32 %v2854, %v2853
        %v2856 = vmul.f32 0.5, %v2855
        %v2857 = vsub.f32 1.5, %v2856
        %v2858 = vmul.f32 %v2853, %v2857
        %vm2859 = vweird.f32 %v2758
        %vm2860 = vweird.f32 %v2853
        %vm2861 = vmor %vm2859, %vm2860
        %v2862 = vsel %vm2861, %v2853, %v2858
        %v2863 = vrsqrt.pop %v2759
        %v2864 = vmul.f32 %v2863, %v2759
        %v2865 = vmul.f32 %v2864, %v2863
        %v2866 = vmul.f32 0.5, %v2865
        %v2867 = vsub.f32 1.5, %v2866
        %v2868 = vmul.f32 %v2863, %v2867
        %vm2869 = vweird.f32 %v2759
        %vm2870 = vweird.f32 %v2863
        %vm2871 = vmor %vm2869, %vm2870
        %v2872 = vsel %vm2871, %v2863, %v2868
        %v2873 = vrsqrt.pop %v2760
        %v2874 = vmul.f32 %v2873, %v2760
        %v2875 = vmul.f32 %v2874, %v2873
        %v2876 = vmul.f32 0.5, %v2875
        %v2877 = vsub.f32 1.5, %v2876
        %v2878 = vmul.f32 %v2873, %v2877
        %vm2879 = vweird.f32 %v2760
        %vm2880 = vweird.f32 %v2873
        %vm2881 = vmor %vm2879, %vm2880
        %v2882 = vsel %vm2881, %v2873, %v2878
        %v2883 = vrsqrt.pop %v2761
        %v2884 = vmul.f32 %v2883, %v2761
        %v2885 = vmul.f32 %v2884, %v2883
        %v2886 = vmul.f32 0.5, %v2885
        %v2887 = vsub.f32 1.5, %v2886
        %v2888 = vmul.f32 %v2883, %v2887
        %vm2889 = vweird.f32 %v2761
        %vm2890 = vweird.f32 %v2883
        %vm2891 = vmor %vm2889, %vm2890
        %v2892 = vsel %vm2891, %v2883, %v2888
        %v2893 = vrsqrt.pop %v2762
        %v2894 = vmul.f32 %v2893, %v2762
        %v2895 = vmul.f32 %v2894, %v2893
        %v2896 = vmul.f32 0.5, %v2895
        %v2897 = vsub.f32 1.5, %v2896
        %v2898 = vmul.f32 %v2893, %v2897
        %vm2899 = vweird.f32 %v2762
        %vm2900 = vweird.f32 %v2893
        %vm2901 = vmor %vm2899, %vm2900
        %v2902 = vsel %vm2901, %v2893, %v2898
        %v2903 = vrsqrt.pop %v2763
        %v2904 = vmul.f32 %v2903, %v2763
        %v2905 = vmul.f32 %v2904, %v2903
        %v2906 = vmul.f32 0.5, %v2905
        %v2907 = vsub.f32 1.5, %v2906
        %v2908 = vmul.f32 %v2903, %v2907
        %vm2909 = vweird.f32 %v2763
        %vm2910 = vweird.f32 %v2903
        %vm2911 = vmor %vm2909, %vm2910
        %v2912 = vsel %vm2911, %v2903, %v2908
        %v2913 = vrsqrt.pop %v2764
        %v2914 = vmul.f32 %v2913, %v2764
        %v2915 = vmul.f32 %v2914, %v2913
        %v2916 = vmul.f32 0.5, %v2915
        %v2917 = vsub.f32 1.5, %v2916
        %v2918 = vmul.f32 %v2913, %v2917
        %vm2919 = vweird.f32 %v2764
        %vm2920 = vweird.f32 %v2913
        %vm2921 = vmor %vm2919, %vm2920
        %v2922 = vsel %vm2921, %v2913, %v2918
        %v2923 = vrsqrt.pop %v2765
        %v2924 = vmul.f32 %v2923, %v2765
        %v2925 = vmul.f32 %v2924, %v2923
        %v2926 = vmul.f32 0.5, %v2925
        %v2927 = vsub.f32 1.5, %v2926
        %v2928 = vmul.f32 %v2923, %v2927
        %vm2929 = vweird.f32 %v2765
        %vm2930 = vweird.f32 %v2923
        %vm2931 = vmor %vm2929, %vm2930
        %v2932 = vsel %vm2931, %v2923, %v2928
        %v2933 = vrsqrt.pop %v2766
        %v2934 = vmul.f32 %v2933, %v2766
        %v2935 = vmul.f32 %v2934, %v2933
        %v2936 = vmul.f32 0.5, %v2935
        %v2937 = vsub.f32 1.5, %v2936
        %v2938 = vmul.f32 %v2933, %v2937
        %vm2939 = vweird.f32 %v2766
        %vm2940 = vweird.f32 %v2933
        %vm2941 = vmor %vm2939, %vm2940
        %v2942 = vsel %vm2941, %v2933, %v2938
        %v2943 = vrsqrt.pop %v2767
        %v2944 = vmul.f32 %v2943, %v2767
        %v2945 = vmul.f32 %v2944, %v2943
        %v2946 = vmul.f32 0.5, %v2945
        %v2947 = vsub.f32 1.5, %v2946
        %v2948 = vmul.f32 %v2943, %v2947
        %vm2949 = vweird.f32 %v2767
        %vm2950 = vweird.f32 %v2943
        %vm2951 = vmor %vm2949, %vm2950
        %v2952 = vsel %vm2951, %v2943, %v2948
        %v2953 = vrsqrt.pop %v2768
        %v2954 = vmul.f32 %v2953, %v2768
        %v2955 = vmul.f32 %v2954, %v2953
        %v2956 = vmul.f32 0.5, %v2955
        %v2957 = vsub.f32 1.5, %v2956
        %v2958 = vmul.f32 %v2953, %v2957
        %vm2959 = vweird.f32 %v2768
        %vm2960 = vweird.f32 %v2953
        %vm2961 = vmor %vm2959, %vm2960
        %v2962 = vsel %vm2961, %v2953, %v2958
        %v2963 = vrsqrt.pop %v2769
        %v2964 = vmul.f32 %v2963, %v2769
        %v2965 = vmul.f32 %v2964, %v2963
        %v2966 = vmul.f32 0.5, %v2965
        %v2967 = vsub.f32 1.5, %v2966
        %v2968 = vmul.f32 %v2963, %v2967
        %vm2969 = vweird.f32 %v2769
        %vm2970 = vweird.f32 %v2963
        %vm2971 = vmor %vm2969, %vm2970
        %v2972 = vsel %vm2971, %v2963, %v2968
        %v2973 = vrsqrt.pop %v2770
        %v2974 = vmul.f32 %v2973, %v2770
        %v2975 = vmul.f32 %v2974, %v2973
        %v2976 = vmul.f32 0.5, %v2975
        %v2977 = vsub.f32 1.5, %v2976
        %v2978 = vmul.f32 %v2973, %v2977
        %vm2979 = vweird.f32 %v2770
        %vm2980 = vweird.f32 %v2973
        %vm2981 = vmor %vm2979, %vm2980
        %v2982 = vsel %vm2981, %v2973, %v2978
        %v2983 = vrsqrt.pop %v2771
        %v2984 = vmul.f32 %v2983, %v2771
        %v2985 = vmul.f32 %v2984, %v2983
        %v2986 = vmul.f32 0.5, %v2985
        %v2987 = vsub.f32 1.5, %v2986
        %v2988 = vmul.f32 %v2983, %v2987
        %vm2989 = vweird.f32 %v2771
        %vm2990 = vweird.f32 %v2983
        %vm2991 = vmor %vm2989, %vm2990
        %v2992 = vsel %vm2991, %v2983, %v2988
        %v2993 = vrsqrt.pop %v2772
        %v2994 = vmul.f32 %v2993, %v2772
        %v2995 = vmul.f32 %v2994, %v2993
        %v2996 = vmul.f32 0.5, %v2995
        %v2997 = vsub.f32 1.5, %v2996
        %v2998 = vmul.f32 %v2993, %v2997
        %vm2999 = vweird.f32 %v2772
        %vm3000 = vweird.f32 %v2993
        %vm3001 = vmor %vm2999, %vm3000
        %v3002 = vsel %vm3001, %v2993, %v2998
        %v3003 = vrsqrt.pop %v2773
        %v3004 = vmul.f32 %v3003, %v2773
        %v3005 = vmul.f32 %v3004, %v3003
        %v3006 = vmul.f32 0.5, %v3005
        %v3007 = vsub.f32 1.5, %v3006
        %v3008 = vmul.f32 %v3003, %v3007
        %vm3009 = vweird.f32 %v2773
        %vm3010 = vweird.f32 %v3003
        %vm3011 = vmor %vm3009, %vm3010
        %v3012 = vsel %vm3011, %v3003, %v3008
        %v3013 = vrsqrt.pop %v2774
        %v3014 = vmul.f32 %v3013, %v2774
        %v3015 = vmul.f32 %v3014, %v3013
        %v3016 = vmul.f32 0.5, %v3015
        %v3017 = vsub.f32 1.5, %v3016
        %v3018 = vmul.f32 %v3013, %v3017
        %vm3019 = vweird.f32 %v2774
        %vm3020 = vweird.f32 %v3013
        %vm3021 = vmor %vm3019, %vm3020
        %v3022 = vsel %vm3021, %v3013, %v3018
        %v3023 = vrsqrt.pop %v2775
        %v3024 = vmul.f32 %v3023, %v2775
        %v3025 = vmul.f32 %v3024, %v3023
        %v3026 = vmul.f32 0.5, %v3025
        %v3027 = vsub.f32 1.5, %v3026
        %v3028 = vmul.f32 %v3023, %v3027
        %vm3029 = vweird.f32 %v2775
        %vm3030 = vweird.f32 %v3023
        %vm3031 = vmor %vm3029, %vm3030
        %v3032 = vsel %vm3031, %v3023, %v3028
        %v3033 = vrsqrt.pop %v2776
        %v3034 = vmul.f32 %v3033, %v2776
        %v3035 = vmul.f32 %v3034, %v3033
        %v3036 = vmul.f32 0.5, %v3035
        %v3037 = vsub.f32 1.5, %v3036
        %v3038 = vmul.f32 %v3033, %v3037
        %vm3039 = vweird.f32 %v2776
        %vm3040 = vweird.f32 %v3033
        %vm3041 = vmor %vm3039, %vm3040
        %v3042 = vsel %vm3041, %v3033, %v3038
        %v3043 = vrsqrt.pop %v2777
        %v3044 = vmul.f32 %v3043, %v2777
        %v3045 = vmul.f32 %v3044, %v3043
        %v3046 = vmul.f32 0.5, %v3045
        %v3047 = vsub.f32 1.5, %v3046
        %v3048 = vmul.f32 %v3043, %v3047
        %vm3049 = vweird.f32 %v2777
        %vm3050 = vweird.f32 %v3043
        %vm3051 = vmor %vm3049, %vm3050
        %v3052 = vsel %vm3051, %v3043, %v3048
        %v3053 = vrsqrt.pop %v2778
        %v3054 = vmul.f32 %v3053, %v2778
        %v3055 = vmul.f32 %v3054, %v3053
        %v3056 = vmul.f32 0.5, %v3055
        %v3057 = vsub.f32 1.5, %v3056
        %v3058 = vmul.f32 %v3053, %v3057
        %vm3059 = vweird.f32 %v2778
        %vm3060 = vweird.f32 %v3053
        %vm3061 = vmor %vm3059, %vm3060
        %v3062 = vsel %vm3061, %v3053, %v3058
        %v3063 = vrsqrt.pop %v2779
        %v3064 = vmul.f32 %v3063, %v2779
        %v3065 = vmul.f32 %v3064, %v3063
        %v3066 = vmul.f32 0.5, %v3065
        %v3067 = vsub.f32 1.5, %v3066
        %v3068 = vmul.f32 %v3063, %v3067
        %vm3069 = vweird.f32 %v2779
        %vm3070 = vweird.f32 %v3063
        %vm3071 = vmor %vm3069, %vm3070
        %v3072 = vsel %vm3071, %v3063, %v3068
        %v3073 = vrsqrt.pop %v2780
        %v3074 = vmul.f32 %v3073, %v2780
        %v3075 = vmul.f32 %v3074, %v3073
        %v3076 = vmul.f32 0.5, %v3075
        %v3077 = vsub.f32 1.5, %v3076
        %v3078 = vmul.f32 %v3073, %v3077
        %vm3079 = vweird.f32 %v2780
        %vm3080 = vweird.f32 %v3073
        %vm3081 = vmor %vm3079, %vm3080
        %v3082 = vsel %vm3081, %v3073, %v3078
        %v3083 = vrsqrt.pop %v2781
        %v3084 = vmul.f32 %v3083, %v2781
        %v3085 = vmul.f32 %v3084, %v3083
        %v3086 = vmul.f32 0.5, %v3085
        %v3087 = vsub.f32 1.5, %v3086
        %v3088 = vmul.f32 %v3083, %v3087
        %vm3089 = vweird.f32 %v2781
        %vm3090 = vweird.f32 %v3083
        %vm3091 = vmor %vm3089, %vm3090
        %v3092 = vsel %vm3091, %v3083, %v3088
        %v3093 = vrsqrt.pop %v2782
        %v3094 = vmul.f32 %v3093, %v2782
        %v3095 = vmul.f32 %v3094, %v3093
        %v3096 = vmul.f32 0.5, %v3095
        %v3097 = vsub.f32 1.5, %v3096
        %v3098 = vmul.f32 %v3093, %v3097
        %vm3099 = vweird.f32 %v2782
        %vm3100 = vweird.f32 %v3093
        %vm3101 = vmor %vm3099, %vm3100
        %v3102 = vsel %vm3101, %v3093, %v3098
        %v3103 = vmul.f32 %v2623, %v2792
        %v3104 = vmul.f32 %v2624, %v2802
        %v3105 = vmul.f32 %v2625, %v2812
        %v3106 = vmul.f32 %v2626, %v2822
        %v3107 = vmul.f32 %v2627, %v2832
        %v3108 = vmul.f32 %v2628, %v2842
        %v3109 = vmul.f32 %v2629, %v2852
        %v3110 = vmul.f32 %v2630, %v2862
        %v3111 = vmul.f32 %v2631, %v2872
        %v3112 = vmul.f32 %v2632, %v2882
        %v3113 = vmul.f32 %v2633, %v2892
        %v3114 = vmul.f32 %v2634, %v2902
        %v3115 = vmul.f32 %v2635, %v2912
        %v3116 = vmul.f32 %v2636, %v2922
        %v3117 = vmul.f32 %v2637, %v2932
        %v3118 = vmul.f32 %v2638, %v2942
        %v3119 = vmul.f32 %v2639, %v2952
        %v3120 = vmul.f32 %v2640, %v2962
        %v3121 = vmul.f32 %v2641, %v2972
        %v3122 = vmul.f32 %v2642, %v2982
        %v3123 = vmul.f32 %v2643, %v2992
        %v3124 = vmul.f32 %v2644, %v3002
        %v3125 = vmul.f32 %v2645, %v3012
        %v3126 = vmul.f32 %v2646, %v3022
        %v3127 = vmul.f32 %v2647, %v3032
        %v3128 = vmul.f32 %v2648, %v3042
        %v3129 = vmul.f32 %v2649, %v3052
        %v3130 = vmul.f32 %v2650, %v3062
        %v3131 = vmul.f32 %v2651, %v3072
        %v3132 = vmul.f32 %v2652, %v3082
        %v3133 = vmul.f32 %v2653, %v3092
        %v3134 = vmul.f32 %v2654, %v3102
        %v3136 = vsel %vm1417, %v3103, 0
        %v3139 = vsel %vm1417, %v3104, 0
        %v3142 = vsel %vm1417, %v3105, 0
        %v3145 = vsel %vm1417, %v3106, 0
        %v3148 = vsel %vm1417, %v3107, 0
        %v3151 = vsel %vm1417, %v3108, 0
        %v3154 = vsel %vm1417, %v3109, 0
        %v3157 = vsel %vm1417, %v3110, 0
        %v3160 = vsel %vm1417, %v3111, 0
        %v3163 = vsel %vm1417, %v3112, 0
        %v3166 = vsel %vm1417, %v3113, 0
        %v3169 = vsel %vm1417, %v3114, 0
        %v3172 = vsel %vm1417, %v3115, 0
        %v3175 = vsel %vm1417, %v3116, 0
        %v3178 = vsel %vm1417, %v3117, 0
        %v3181 = vsel %vm1417, %v3118, 0
        %v3184 = vsel %vm1417, %v3119, 0
        %v3187 = vsel %vm1417, %v3120, 0
        %v3190 = vsel %vm1417, %v3121, 0
        %v3193 = vsel %vm1417, %v3122, 0
        %v3196 = vsel %vm1417, %v3123, 0
        %v3199 = vsel %vm1417, %v3124, 0
        %v3202 = vsel %vm1417, %v3125, 0
        %v3205 = vsel %vm1417, %v3126, 0
        %v3208 = vsel %vm1417, %v3127, 0
        %v3211 = vsel %vm1417, %v3128, 0
        %v3214 = vsel %vm1417, %v3129, 0
        %v3217 = vsel %vm1417, %v3130, 0
        %v3220 = vsel %vm1417, %v3131, 0
        %v3223 = vsel %vm1417, %v3132, 0
        %v3226 = vsel %vm1417, %v3133, 0
        %v3229 = vsel %vm1417, %v3134, 0
        %v3232 = vsel %vm1417, %v2792, 0
        %v3235 = vsel %vm1417, %v2802, 0
        %v3238 = vsel %vm1417, %v2812, 0
        %v3241 = vsel %vm1417, %v2822, 0
        %v3244 = vsel %vm1417, %v2832, 0
        %v3247 = vsel %vm1417, %v2842, 0
        %v3250 = vsel %vm1417, %v2852, 0
        %v3253 = vsel %vm1417, %v2862, 0
        %v3256 = vsel %vm1417, %v2872, 0
        %v3259 = vsel %vm1417, %v2882, 0
        %v3262 = vsel %vm1417, %v2892, 0
        %v3265 = vsel %vm1417, %v2902, 0
        %v3268 = vsel %vm1417, %v2912, 0
        %v3271 = vsel %vm1417, %v2922, 0
        %v3274 = vsel %vm1417, %v2932, 0
        %v3277 = vsel %vm1417, %v2942, 0
        %v3280 = vsel %vm1417, %v2952, 0
        %v3283 = vsel %vm1417, %v2962, 0
        %v3286 = vsel %vm1417, %v2972, 0
        %v3289 = vsel %vm1417, %v2982, 0
        %v3292 = vsel %vm1417, %v2992, 0
        %v3295 = vsel %vm1417, %v3002, 0
        %v3298 = vsel %vm1417, %v3012, 0
        %v3301 = vsel %vm1417, %v3022, 0
        %v3304 = vsel %vm1417, %v3032, 0
        %v3307 = vsel %vm1417, %v3042, 0
        %v3310 = vsel %vm1417, %v3052, 0
        %v3313 = vsel %vm1417, %v3062, 0
        %v3316 = vsel %vm1417, %v3072, 0
        %v3319 = vsel %vm1417, %v3082, 0
        %v3322 = vsel %vm1417, %v3092, 0
        %v3325 = vsel %vm1417, %v3102, 0
        %3327 = vmatpush.msra.mxu0 0.0
        %3328 = vmatpush.msra.mxu0 0.0
        %3329 = vmatpush.msra.mxu0 0.0
        %3330 = vmatpush.msra.mxu0 0.0
        %3331 = vmatpush.msra.mxu0 0.0
        %3332 = vmatpush.msra.mxu0 0.0
        %3333 = vmatpush.msra.mxu0 0.0
        %3334 = vmatpush.msra.mxu0 0.0
        %3335 = vmatpush.msra.mxu0 0.0
        %3336 = vmatpush.msra.mxu0 0.0
        %3337 = vmatpush.msra.mxu0 0.0
        %3338 = vmatpush.msra.mxu0 0.0
        %3339 = vmatpush.msra.mxu0 0.0
        %3340 = vmatpush.msra.mxu0 0.0
        %3341 = vmatpush.msra.mxu0 0.0
        %3342 = vmatpush.msra.mxu0 %v231
        %3343 = vmatmul.f32.gmra.mxu0 %v3136
        %v3344 = vpop.f32.mrf.mxu0
        %v3345 = vadd.f32 0.0, %v3344
        %3346 = vmatmul.f32.gmra.mxu0 %v3139
        %v3347 = vpop.f32.mrf.mxu0
        %v3348 = vadd.f32 0.0, %v3347
        %3349 = vmatmul.f32.gmra.mxu0 %v3142
        %v3350 = vpop.f32.mrf.mxu0
        %v3351 = vadd.f32 0.0, %v3350
        %3352 = vmatmul.f32.gmra.mxu0 %v3145
        %v3353 = vpop.f32.mrf.mxu0
        %v3354 = vadd.f32 0.0, %v3353
        %3355 = vmatmul.f32.gmra.mxu0 %v3148
        %v3356 = vpop.f32.mrf.mxu0
        %v3357 = vadd.f32 0.0, %v3356
        %3358 = vmatmul.f32.gmra.mxu0 %v3151
        %v3359 = vpop.f32.mrf.mxu0
        %v3360 = vadd.f32 0.0, %v3359
        %3361 = vmatmul.f32.gmra.mxu0 %v3154
        %v3362 = vpop.f32.mrf.mxu0
        %v3363 = vadd.f32 0.0, %v3362
        %3364 = vmatmul.f32.gmra.mxu0 %v3157
        %v3365 = vpop.f32.mrf.mxu0
        %v3366 = vadd.f32 0.0, %v3365
        %3367 = vmatmul.f32.gmra.mxu0 %v3160
        %v3368 = vpop.f32.mrf.mxu0
        %v3369 = vadd.f32 0.0, %v3368
        %3370 = vmatmul.f32.gmra.mxu0 %v3163
        %v3371 = vpop.f32.mrf.mxu0
        %v3372 = vadd.f32 0.0, %v3371
        %3373 = vmatmul.f32.gmra.mxu0 %v3166
        %v3374 = vpop.f32.mrf.mxu0
        %v3375 = vadd.f32 0.0, %v3374
        %3376 = vmatmul.f32.gmra.mxu0 %v3169
        %v3377 = vpop.f32.mrf.mxu0
        %v3378 = vadd.f32 0.0, %v3377
        %3379 = vmatmul.f32.gmra.mxu0 %v3172
        %v3380 = vpop.f32.mrf.mxu0
        %v3381 = vadd.f32 0.0, %v3380
        %3382 = vmatmul.f32.gmra.mxu0 %v3175
        %v3383 = vpop.f32.mrf.mxu0
        %v3384 = vadd.f32 0.0, %v3383
        %3385 = vmatmul.f32.gmra.mxu0 %v3178
        %v3386 = vpop.f32.mrf.mxu0
        %v3387 = vadd.f32 0.0, %v3386
        %3388 = vmatmul.f32.gmra.mxu0 %v3181
        %v3389 = vpop.f32.mrf.mxu0
        %v3390 = vadd.f32 0.0, %v3389
        %3391 = vmatmul.f32.gmra.mxu0 %v3184
        %v3392 = vpop.f32.mrf.mxu0
        %v3393 = vadd.f32 0.0, %v3392
        %3394 = vmatmul.f32.gmra.mxu0 %v3187
        %v3395 = vpop.f32.mrf.mxu0
        %v3396 = vadd.f32 0.0, %v3395
        %3397 = vmatmul.f32.gmra.mxu0 %v3190
        %v3398 = vpop.f32.mrf.mxu0
        %v3399 = vadd.f32 0.0, %v3398
        %3400 = vmatmul.f32.gmra.mxu0 %v3193
        %v3401 = vpop.f32.mrf.mxu0
        %v3402 = vadd.f32 0.0, %v3401
        %3403 = vmatmul.f32.gmra.mxu0 %v3196
        %v3404 = vpop.f32.mrf.mxu0
        %v3405 = vadd.f32 0.0, %v3404
        %3406 = vmatmul.f32.gmra.mxu0 %v3199
        %v3407 = vpop.f32.mrf.mxu0
        %v3408 = vadd.f32 0.0, %v3407
        %3409 = vmatmul.f32.gmra.mxu0 %v3202
        %v3410 = vpop.f32.mrf.mxu0
        %v3411 = vadd.f32 0.0, %v3410
        %3412 = vmatmul.f32.gmra.mxu0 %v3205
        %v3413 = vpop.f32.mrf.mxu0
        %v3414 = vadd.f32 0.0, %v3413
        %3415 = vmatmul.f32.gmra.mxu0 %v3208
        %v3416 = vpop.f32.mrf.mxu0
        %v3417 = vadd.f32 0.0, %v3416
        %3418 = vmatmul.f32.gmra.mxu0 %v3211
        %v3419 = vpop.f32.mrf.mxu0
        %v3420 = vadd.f32 0.0, %v3419
        %3421 = vmatmul.f32.gmra.mxu0 %v3214
        %v3422 = vpop.f32.mrf.mxu0
        %v3423 = vadd.f32 0.0, %v3422
        %3424 = vmatmul.f32.gmra.mxu0 %v3217
        %v3425 = vpop.f32.mrf.mxu0
        %v3426 = vadd.f32 0.0, %v3425
        %3427 = vmatmul.f32.gmra.mxu0 %v3220
        %v3428 = vpop.f32.mrf.mxu0
        %v3429 = vadd.f32 0.0, %v3428
        %3430 = vmatmul.f32.gmra.mxu0 %v3223
        %v3431 = vpop.f32.mrf.mxu0
        %v3432 = vadd.f32 0.0, %v3431
        %3433 = vmatmul.f32.gmra.mxu0 %v3226
        %v3434 = vpop.f32.mrf.mxu0
        %v3435 = vadd.f32 0.0, %v3434
        %3436 = vmatmul.f32.gmra.mxu0 %v3229
        %v3437 = vpop.f32.mrf.mxu0
        %v3438 = vadd.f32 0.0, %v3437
        %3439 = vmatmul.f32.gmra.mxu0 %v3232
        %v3440 = vpop.f32.mrf.mxu0
        %v3441 = vadd.f32 0.0, %v3440
        %3442 = vmatmul.f32.gmra.mxu0 %v3235
        %v3443 = vpop.f32.mrf.mxu0
        %v3444 = vadd.f32 0.0, %v3443
        %3445 = vmatmul.f32.gmra.mxu0 %v3238
        %v3446 = vpop.f32.mrf.mxu0
        %v3447 = vadd.f32 0.0, %v3446
        %3448 = vmatmul.f32.gmra.mxu0 %v3241
        %v3449 = vpop.f32.mrf.mxu0
        %v3450 = vadd.f32 0.0, %v3449
        %3451 = vmatmul.f32.gmra.mxu0 %v3244
        %v3452 = vpop.f32.mrf.mxu0
        %v3453 = vadd.f32 0.0, %v3452
        %3454 = vmatmul.f32.gmra.mxu0 %v3247
        %v3455 = vpop.f32.mrf.mxu0
        %v3456 = vadd.f32 0.0, %v3455
        %3457 = vmatmul.f32.gmra.mxu0 %v3250
        %v3458 = vpop.f32.mrf.mxu0
        %v3459 = vadd.f32 0.0, %v3458
        %3460 = vmatmul.f32.gmra.mxu0 %v3253
        %v3461 = vpop.f32.mrf.mxu0
        %v3462 = vadd.f32 0.0, %v3461
        %3463 = vmatmul.f32.gmra.mxu0 %v3256
        %v3464 = vpop.f32.mrf.mxu0
        %v3465 = vadd.f32 0.0, %v3464
        %3466 = vmatmul.f32.gmra.mxu0 %v3259
        %v3467 = vpop.f32.mrf.mxu0
        %v3468 = vadd.f32 0.0, %v3467
        %3469 = vmatmul.f32.gmra.mxu0 %v3262
        %v3470 = vpop.f32.mrf.mxu0
        %v3471 = vadd.f32 0.0, %v3470
        %3472 = vmatmul.f32.gmra.mxu0 %v3265
        %v3473 = vpop.f32.mrf.mxu0
        %v3474 = vadd.f32 0.0, %v3473
        %3475 = vmatmul.f32.gmra.mxu0 %v3268
        %v3476 = vpop.f32.mrf.mxu0
        %v3477 = vadd.f32 0.0, %v3476
        %3478 = vmatmul.f32.gmra.mxu0 %v3271
        %v3479 = vpop.f32.mrf.mxu0
        %v3480 = vadd.f32 0.0, %v3479
        %3481 = vmatmul.f32.gmra.mxu0 %v3274
        %v3482 = vpop.f32.mrf.mxu0
        %v3483 = vadd.f32 0.0, %v3482
        %3484 = vmatmul.f32.gmra.mxu0 %v3277
        %v3485 = vpop.f32.mrf.mxu0
        %v3486 = vadd.f32 0.0, %v3485
        %3487 = vmatmul.f32.gmra.mxu0 %v3280
        %v3488 = vpop.f32.mrf.mxu0
        %v3489 = vadd.f32 0.0, %v3488
        %3490 = vmatmul.f32.gmra.mxu0 %v3283
        %v3491 = vpop.f32.mrf.mxu0
        %v3492 = vadd.f32 0.0, %v3491
        %3493 = vmatmul.f32.gmra.mxu0 %v3286
        %v3494 = vpop.f32.mrf.mxu0
        %v3495 = vadd.f32 0.0, %v3494
        %3496 = vmatmul.f32.gmra.mxu0 %v3289
        %v3497 = vpop.f32.mrf.mxu0
        %v3498 = vadd.f32 0.0, %v3497
        %3499 = vmatmul.f32.gmra.mxu0 %v3292
        %v3500 = vpop.f32.mrf.mxu0
        %v3501 = vadd.f32 0.0, %v3500
        %3502 = vmatmul.f32.gmra.mxu0 %v3295
        %v3503 = vpop.f32.mrf.mxu0
        %v3504 = vadd.f32 0.0, %v3503
        %3505 = vmatmul.f32.gmra.mxu0 %v3298
        %v3506 = vpop.f32.mrf.mxu0
        %v3507 = vadd.f32 0.0, %v3506
        %3508 = vmatmul.f32.gmra.mxu0 %v3301
        %v3509 = vpop.f32.mrf.mxu0
        %v3510 = vadd.f32 0.0, %v3509
        %3511 = vmatmul.f32.gmra.mxu0 %v3304
        %v3512 = vpop.f32.mrf.mxu0
        %v3513 = vadd.f32 0.0, %v3512
        %3514 = vmatmul.f32.gmra.mxu0 %v3307
        %v3515 = vpop.f32.mrf.mxu0
        %v3516 = vadd.f32 0.0, %v3515
        %3517 = vmatmul.f32.gmra.mxu0 %v3310
        %v3518 = vpop.f32.mrf.mxu0
        %v3519 = vadd.f32 0.0, %v3518
        %3520 = vmatmul.f32.gmra.mxu0 %v3313
        %v3521 = vpop.f32.mrf.mxu0
        %v3522 = vadd.f32 0.0, %v3521
        %3523 = vmatmul.f32.gmra.mxu0 %v3316
        %v3524 = vpop.f32.mrf.mxu0
        %v3525 = vadd.f32 0.0, %v3524
        %3526 = vmatmul.f32.gmra.mxu0 %v3319
        %v3527 = vpop.f32.mrf.mxu0
        %v3528 = vadd.f32 0.0, %v3527
        %3529 = vmatmul.f32.gmra.mxu0 %v3322
        %v3530 = vpop.f32.mrf.mxu0
        %v3531 = vadd.f32 0.0, %v3530
        %3532 = vmatmul.f32.gmra.mxu0 %v3325
        %v3533 = vpop.f32.mrf.mxu0
        %v3534 = vadd.f32 0.0, %v3533
        %3535 = vdwg.mxu0
        %v3536 = vmul.f32 %v2111, %v3441
        %v3537 = vmul.f32 %v2113, %v3444
        %v3538 = vmul.f32 %v2116, %v3447
        %v3539 = vmul.f32 %v2118, %v3450
        %v3540 = vmul.f32 %v2121, %v3453
        %v3541 = vmul.f32 %v2123, %v3456
        %v3542 = vmul.f32 %v2126, %v3459
        %v3543 = vmul.f32 %v2128, %v3462
        %v3544 = vmul.f32 %v2131, %v3465
        %v3545 = vmul.f32 %v2133, %v3468
        %v3546 = vmul.f32 %v2136, %v3471
        %v3547 = vmul.f32 %v2138, %v3474
        %v3548 = vmul.f32 %v2141, %v3477
        %v3549 = vmul.f32 %v2143, %v3480
        %v3550 = vmul.f32 %v2146, %v3483
        %v3551 = vmul.f32 %v2148, %v3486
        %v3552 = vmul.f32 %v2151, %v3489
        %v3553 = vmul.f32 %v2153, %v3492
        %v3554 = vmul.f32 %v2156, %v3495
        %v3555 = vmul.f32 %v2158, %v3498
        %v3556 = vmul.f32 %v2161, %v3501
        %v3557 = vmul.f32 %v2163, %v3504
        %v3558 = vmul.f32 %v2166, %v3507
        %v3559 = vmul.f32 %v2168, %v3510
        %v3560 = vmul.f32 %v2171, %v3513
        %v3561 = vmul.f32 %v2173, %v3516
        %v3562 = vmul.f32 %v2176, %v3519
        %v3563 = vmul.f32 %v2178, %v3522
        %v3564 = vmul.f32 %v2181, %v3525
        %v3565 = vmul.f32 %v2183, %v3528
        %v3566 = vmul.f32 %v2186, %v3531
        %v3567 = vmul.f32 %v2188, %v3534
        %v3568 = vperm.slane %v228, 0
        %v3569 = vsub.f32 %v3568, %v3345
        %v3570 = vsub.f32 %v3568, %v3348
        %v3571 = vsub.f32 %v3568, %v3351
        %v3572 = vsub.f32 %v3568, %v3354
        %v3573 = vsub.f32 %v3568, %v3357
        %v3574 = vsub.f32 %v3568, %v3360
        %v3575 = vsub.f32 %v3568, %v3363
        %v3576 = vsub.f32 %v3568, %v3366
        %v3577 = vsub.f32 %v3568, %v3369
        %v3578 = vsub.f32 %v3568, %v3372
        %v3579 = vsub.f32 %v3568, %v3375
        %v3580 = vsub.f32 %v3568, %v3378
        %v3581 = vsub.f32 %v3568, %v3381
        %v3582 = vsub.f32 %v3568, %v3384
        %v3583 = vsub.f32 %v3568, %v3387
        %v3584 = vsub.f32 %v3568, %v3390
        %v3585 = vsub.f32 %v3568, %v3393
        %v3586 = vsub.f32 %v3568, %v3396
        %v3587 = vsub.f32 %v3568, %v3399
        %v3588 = vsub.f32 %v3568, %v3402
        %v3589 = vsub.f32 %v3568, %v3405
        %v3590 = vsub.f32 %v3568, %v3408
        %v3591 = vsub.f32 %v3568, %v3411
        %v3592 = vsub.f32 %v3568, %v3414
        %v3593 = vsub.f32 %v3568, %v3417
        %v3594 = vsub.f32 %v3568, %v3420
        %v3595 = vsub.f32 %v3568, %v3423
        %v3596 = vsub.f32 %v3568, %v3426
        %v3597 = vsub.f32 %v3568, %v3429
        %v3598 = vsub.f32 %v3568, %v3432
        %v3599 = vsub.f32 %v3568, %v3435
        %v3600 = vsub.f32 %v3568, %v3438
        %v3601 = vadd.f32 %v3536, %v3569
        %v3602 = vadd.f32 %v3537, %v3570
        %v3603 = vadd.f32 %v3538, %v3571
        %v3604 = vadd.f32 %v3539, %v3572
        %v3605 = vadd.f32 %v3540, %v3573
        %v3606 = vadd.f32 %v3541, %v3574
        %v3607 = vadd.f32 %v3542, %v3575
        %v3608 = vadd.f32 %v3543, %v3576
        %v3609 = vadd.f32 %v3544, %v3577
        %v3610 = vadd.f32 %v3545, %v3578
        %v3611 = vadd.f32 %v3546, %v3579
        %v3612 = vadd.f32 %v3547, %v3580
        %v3613 = vadd.f32 %v3548, %v3581
        %v3614 = vadd.f32 %v3549, %v3582
        %v3615 = vadd.f32 %v3550, %v3583
        %v3616 = vadd.f32 %v3551, %v3584
        %v3617 = vadd.f32 %v3552, %v3585
        %v3618 = vadd.f32 %v3553, %v3586
        %v3619 = vadd.f32 %v3554, %v3587
        %v3620 = vadd.f32 %v3555, %v3588
        %v3621 = vadd.f32 %v3556, %v3589
        %v3622 = vadd.f32 %v3557, %v3590
        %v3623 = vadd.f32 %v3558, %v3591
        %v3624 = vadd.f32 %v3559, %v3592
        %v3625 = vadd.f32 %v3560, %v3593
        %v3626 = vadd.f32 %v3561, %v3594
        %v3627 = vadd.f32 %v3562, %v3595
        %v3628 = vadd.f32 %v3563, %v3596
        %v3629 = vadd.f32 %v3564, %v3597
        %v3630 = vadd.f32 %v3565, %v3598
        %v3631 = vadd.f32 %v3566, %v3599
        %v3632 = vadd.f32 %v3567, %v3600
        %vm3633 = vcmp.ge.f32.partialorder %v3601, 0.0
        %vm3634 = vcmp.ge.f32.partialorder %v3602, 0.0
        %vm3635 = vcmp.ge.f32.partialorder %v3603, 0.0
        %vm3636 = vcmp.ge.f32.partialorder %v3604, 0.0
        %vm3637 = vcmp.ge.f32.partialorder %v3605, 0.0
        %vm3638 = vcmp.ge.f32.partialorder %v3606, 0.0
        %vm3639 = vcmp.ge.f32.partialorder %v3607, 0.0
        %vm3640 = vcmp.ge.f32.partialorder %v3608, 0.0
        %vm3641 = vcmp.ge.f32.partialorder %v3609, 0.0
        %vm3642 = vcmp.ge.f32.partialorder %v3610, 0.0
        %vm3643 = vcmp.ge.f32.partialorder %v3611, 0.0
        %vm3644 = vcmp.ge.f32.partialorder %v3612, 0.0
        %vm3645 = vcmp.ge.f32.partialorder %v3613, 0.0
        %vm3646 = vcmp.ge.f32.partialorder %v3614, 0.0
        %vm3647 = vcmp.ge.f32.partialorder %v3615, 0.0
        %vm3648 = vcmp.ge.f32.partialorder %v3616, 0.0
        %vm3649 = vcmp.ge.f32.partialorder %v3617, 0.0
        %vm3650 = vcmp.ge.f32.partialorder %v3618, 0.0
        %vm3651 = vcmp.ge.f32.partialorder %v3619, 0.0
        %vm3652 = vcmp.ge.f32.partialorder %v3620, 0.0
        %vm3653 = vcmp.ge.f32.partialorder %v3621, 0.0
        %vm3654 = vcmp.ge.f32.partialorder %v3622, 0.0
        %vm3655 = vcmp.ge.f32.partialorder %v3623, 0.0
        %vm3656 = vcmp.ge.f32.partialorder %v3624, 0.0
        %vm3657 = vcmp.ge.f32.partialorder %v3625, 0.0
        %vm3658 = vcmp.ge.f32.partialorder %v3626, 0.0
        %vm3659 = vcmp.ge.f32.partialorder %v3627, 0.0
        %vm3660 = vcmp.ge.f32.partialorder %v3628, 0.0
        %vm3661 = vcmp.ge.f32.partialorder %v3629, 0.0
        %vm3662 = vcmp.ge.f32.partialorder %v3630, 0.0
        %vm3663 = vcmp.ge.f32.partialorder %v3631, 0.0
        %vm3664 = vcmp.ge.f32.partialorder %v3632, 0.0
        %v3665 = vmul.f32 %v3601, 0.01
        %v3666 = vmul.f32 %v3602, 0.01
        %v3667 = vmul.f32 %v3603, 0.01
        %v3668 = vmul.f32 %v3604, 0.01
        %v3669 = vmul.f32 %v3605, 0.01
        %v3670 = vmul.f32 %v3606, 0.01
        %v3671 = vmul.f32 %v3607, 0.01
        %v3672 = vmul.f32 %v3608, 0.01
        %v3673 = vmul.f32 %v3609, 0.01
        %v3674 = vmul.f32 %v3610, 0.01
        %v3675 = vmul.f32 %v3611, 0.01
        %v3676 = vmul.f32 %v3612, 0.01
        %v3677 = vmul.f32 %v3613, 0.01
        %v3678 = vmul.f32 %v3614, 0.01
        %v3679 = vmul.f32 %v3615, 0.01
        %v3680 = vmul.f32 %v3616, 0.01
        %v3681 = vmul.f32 %v3617, 0.01
        %v3682 = vmul.f32 %v3618, 0.01
        %v3683 = vmul.f32 %v3619, 0.01
        %v3684 = vmul.f32 %v3620, 0.01
        %v3685 = vmul.f32 %v3621, 0.01
        %v3686 = vmul.f32 %v3622, 0.01
        %v3687 = vmul.f32 %v3623, 0.01
        %v3688 = vmul.f32 %v3624, 0.01
        %v3689 = vmul.f32 %v3625, 0.01
        %v3690 = vmul.f32 %v3626, 0.01
        %v3691 = vmul.f32 %v3627, 0.01
        %v3692 = vmul.f32 %v3628, 0.01
        %v3693 = vmul.f32 %v3629, 0.01
        %v3694 = vmul.f32 %v3630, 0.01
        %v3695 = vmul.f32 %v3631, 0.01
        %v3696 = vmul.f32 %v3632, 0.01
        %v3697 = vsel %vm3633, %v3601, %v3665
        %v3698 = vsel %vm3634, %v3602, %v3666
        %v3699 = vsel %vm3635, %v3603, %v3667
        %v3700 = vsel %vm3636, %v3604, %v3668
        %v3701 = vsel %vm3637, %v3605, %v3669
        %v3702 = vsel %vm3638, %v3606, %v3670
        %v3703 = vsel %vm3639, %v3607, %v3671
        %v3704 = vsel %vm3640, %v3608, %v3672
        %v3705 = vsel %vm3641, %v3609, %v3673
        %v3706 = vsel %vm3642, %v3610, %v3674
        %v3707 = vsel %vm3643, %v3611, %v3675
        %v3708 = vsel %vm3644, %v3612, %v3676
        %v3709 = vsel %vm3645, %v3613, %v3677
        %v3710 = vsel %vm3646, %v3614, %v3678
        %v3711 = vsel %vm3647, %v3615, %v3679
        %v3712 = vsel %vm3648, %v3616, %v3680
        %v3713 = vsel %vm3649, %v3617, %v3681
        %v3714 = vsel %vm3650, %v3618, %v3682
        %v3715 = vsel %vm3651, %v3619, %v3683
        %v3716 = vsel %vm3652, %v3620, %v3684
        %v3717 = vsel %vm3653, %v3621, %v3685
        %v3718 = vsel %vm3654, %v3622, %v3686
        %v3719 = vsel %vm3655, %v3623, %v3687
        %v3720 = vsel %vm3656, %v3624, %v3688
        %v3721 = vsel %vm3657, %v3625, %v3689
        %v3722 = vsel %vm3658, %v3626, %v3690
        %v3723 = vsel %vm3659, %v3627, %v3691
        %v3724 = vsel %vm3660, %v3628, %v3692
        %v3725 = vsel %vm3661, %v3629, %v3693
        %v3726 = vsel %vm3662, %v3630, %v3694
        %v3727 = vsel %vm3663, %v3631, %v3695
        %v3728 = vsel %vm3664, %v3632, %v3696
        %v3729 = vpack.c.bf16 %v3698, %v3697
        %v3730 = vpack.c.bf16 %v3700, %v3699
        %v3731 = vpack.c.bf16 %v3702, %v3701
        %v3732 = vpack.c.bf16 %v3704, %v3703
        %v3733 = vpack.c.bf16 %v3706, %v3705
        %v3734 = vpack.c.bf16 %v3708, %v3707
        %v3735 = vpack.c.bf16 %v3710, %v3709
        %v3736 = vpack.c.bf16 %v3712, %v3711
        %v3737 = vpack.c.bf16 %v3714, %v3713
        %v3738 = vpack.c.bf16 %v3716, %v3715
        %v3739 = vpack.c.bf16 %v3718, %v3717
        %v3740 = vpack.c.bf16 %v3720, %v3719
        %v3741 = vpack.c.bf16 %v3722, %v3721
        %v3742 = vpack.c.bf16 %v3724, %v3723
        %v3743 = vpack.c.bf16 %v3726, %v3725
        %v3744 = vpack.c.bf16 %v3728, %v3727
        %v3745 = vperm.slane %v229, 0
        %v3754 = vunpack.c.l.b16 %v217
        %v3755 = vunpack.c.l.b16 %v218
        %v3756 = vunpack.c.l.b16 %v219
        %v3757 = vunpack.c.l.b16 %v220
        %v3758 = vunpack.c.l.b16 %v221
        %v3759 = vunpack.c.l.b16 %v222
        %v3760 = vunpack.c.l.b16 %v223
        %v3761 = vunpack.c.l.b16 %v224
        %v3762 = vpack.c.b16 %v3755, %v3754
        %v3763 = vpack.c.b16 %v3757, %v3756
        %v3764 = vpack.c.b16 %v3759, %v3758
        %v3765 = vpack.c.b16 %v3761, %v3760
        %v3771 = vsel %vm503, %v3729, 0
        %v3774 = vsel %vm503, %v3730, 0
        %v3777 = vsel %vm503, %v3731, 0
        %v3780 = vsel %vm503, %v3732, 0
        %v3783 = vsel %vm503, %v3733, 0
        %v3786 = vsel %vm503, %v3734, 0
        %v3789 = vsel %vm503, %v3735, 0
        %v3792 = vsel %vm503, %v3736, 0
        %v3795 = vsel %vm503, %v3737, 0
        %v3798 = vsel %vm503, %v3738, 0
        %v3801 = vsel %vm503, %v3739, 0
        %v3804 = vsel %vm503, %v3740, 0
        %v3807 = vsel %vm503, %v3741, 0
        %v3810 = vsel %vm503, %v3742, 0
        %v3813 = vsel %vm503, %v3743, 0
        %v3816 = vsel %vm503, %v3744, 0
        %3818 = vmatpush.bf16.msra.mxu0 0
        %3819 = vmatpush.bf16.msra.mxu0 0
        %3820 = vmatpush.bf16.msra.mxu0 0
        %3821 = vmatpush.bf16.msra.mxu0 0
        %3822 = vmatpush.bf16.msra.mxu0 %v3765
        %3823 = vmatpush.bf16.msra.mxu0 %v3764
        %3824 = vmatpush.bf16.msra.mxu0 %v3763
        %3825 = vmatpush.bf16.msra.mxu0 %v3762
        %3826 = vmatmul.bf16.gmra.mxu0 %v3771
        %v3827 = vpop.f32.mrf.mxu0
        %v3828 = vadd.f32 %v3745, %v3827
        %v3829 = vpop.f32.mrf.mxu0
        %v3830 = vadd.f32 %v3745, %v3829
        %3831 = vmatmul.bf16.gmra.mxu0 %v3774
        %v3832 = vpop.f32.mrf.mxu0
        %v3833 = vadd.f32 %v3745, %v3832
        %v3834 = vpop.f32.mrf.mxu0
        %v3835 = vadd.f32 %v3745, %v3834
        %3836 = vmatmul.bf16.gmra.mxu0 %v3777
        %v3837 = vpop.f32.mrf.mxu0
        %v3838 = vadd.f32 %v3745, %v3837
        %v3839 = vpop.f32.mrf.mxu0
        %v3840 = vadd.f32 %v3745, %v3839
        %3841 = vmatmul.bf16.gmra.mxu0 %v3780
        %v3842 = vpop.f32.mrf.mxu0
        %v3843 = vadd.f32 %v3745, %v3842
        %v3844 = vpop.f32.mrf.mxu0
        %v3845 = vadd.f32 %v3745, %v3844
        %3846 = vmatmul.bf16.gmra.mxu0 %v3783
        %v3847 = vpop.f32.mrf.mxu0
        %v3848 = vadd.f32 %v3745, %v3847
        %v3849 = vpop.f32.mrf.mxu0
        %v3850 = vadd.f32 %v3745, %v3849
        %3851 = vmatmul.bf16.gmra.mxu0 %v3786
        %v3852 = vpop.f32.mrf.mxu0
        %v3853 = vadd.f32 %v3745, %v3852
        %v3854 = vpop.f32.mrf.mxu0
        %v3855 = vadd.f32 %v3745, %v3854
        %3856 = vmatmul.bf16.gmra.mxu0 %v3789
        %v3857 = vpop.f32.mrf.mxu0
        %v3858 = vadd.f32 %v3745, %v3857
        %v3859 = vpop.f32.mrf.mxu0
        %v3860 = vadd.f32 %v3745, %v3859
        %3861 = vmatmul.bf16.gmra.mxu0 %v3792
        %v3862 = vpop.f32.mrf.mxu0
        %v3863 = vadd.f32 %v3745, %v3862
        %v3864 = vpop.f32.mrf.mxu0
        %v3865 = vadd.f32 %v3745, %v3864
        %3866 = vmatmul.bf16.gmra.mxu0 %v3795
        %v3867 = vpop.f32.mrf.mxu0
        %v3868 = vadd.f32 %v3745, %v3867
        %v3869 = vpop.f32.mrf.mxu0
        %v3870 = vadd.f32 %v3745, %v3869
        %3871 = vmatmul.bf16.gmra.mxu0 %v3798
        %v3872 = vpop.f32.mrf.mxu0
        %v3873 = vadd.f32 %v3745, %v3872
        %v3874 = vpop.f32.mrf.mxu0
        %v3875 = vadd.f32 %v3745, %v3874
        %3876 = vmatmul.bf16.gmra.mxu0 %v3801
        %v3877 = vpop.f32.mrf.mxu0
        %v3878 = vadd.f32 %v3745, %v3877
        %v3879 = vpop.f32.mrf.mxu0
        %v3880 = vadd.f32 %v3745, %v3879
        %3881 = vmatmul.bf16.gmra.mxu0 %v3804
        %v3882 = vpop.f32.mrf.mxu0
        %v3883 = vadd.f32 %v3745, %v3882
        %v3884 = vpop.f32.mrf.mxu0
        %v3885 = vadd.f32 %v3745, %v3884
        %3886 = vmatmul.bf16.gmra.mxu0 %v3807
        %v3887 = vpop.f32.mrf.mxu0
        %v3888 = vadd.f32 %v3745, %v3887
        %v3889 = vpop.f32.mrf.mxu0
        %v3890 = vadd.f32 %v3745, %v3889
        %3891 = vmatmul.bf16.gmra.mxu0 %v3810
        %v3892 = vpop.f32.mrf.mxu0
        %v3893 = vadd.f32 %v3745, %v3892
        %v3894 = vpop.f32.mrf.mxu0
        %v3895 = vadd.f32 %v3745, %v3894
        %3896 = vmatmul.bf16.gmra.mxu0 %v3813
        %v3897 = vpop.f32.mrf.mxu0
        %v3898 = vadd.f32 %v3745, %v3897
        %v3899 = vpop.f32.mrf.mxu0
        %v3900 = vadd.f32 %v3745, %v3899
        %3901 = vmatmul.bf16.gmra.mxu0 %v3816
        %v3902 = vpop.f32.mrf.mxu0
        %v3903 = vadd.f32 %v3745, %v3902
        %v3904 = vpop.f32.mrf.mxu0
        %v3905 = vadd.f32 %v3745, %v3904
        %3906 = vdwg.mxu0
        %3907 = vst [vmem:[%s164] sm:$0xff] %v3828
        %3908 = vst [vmem:[%s164 + $0x8] sm:$0xff] %v3830
        %3909 = vst [vmem:[%s164 + $0x10] sm:$0xff] %v3833
        %3910 = vst [vmem:[%s164 + $0x18] sm:$0xff] %v3835
        %3911 = vst [vmem:[%s164 + $0x20] sm:$0xff] %v3838
        %3912 = vst [vmem:[%s164 + $0x28] sm:$0xff] %v3840
        %3913 = vst [vmem:[%s164 + $0x30] sm:$0xff] %v3843
        %3914 = vst [vmem:[%s164 + $0x38] sm:$0xff] %v3845
        %3915 = vst [vmem:[%s164 + $0x40] sm:$0xff] %v3848
        %3916 = vst [vmem:[%s164 + $0x48] sm:$0xff] %v3850
        %3917 = vst [vmem:[%s164 + $0x50] sm:$0xff] %v3853
        %3918 = vst [vmem:[%s164 + $0x58] sm:$0xff] %v3855
        %3919 = vst [vmem:[%s164 + $0x60] sm:$0xff] %v3858
        %3920 = vst [vmem:[%s164 + $0x68] sm:$0xff] %v3860
        %3921 = vst [vmem:[%s164 + $0x70] sm:$0xff] %v3863
        %3922 = vst [vmem:[%s164 + $0x78] sm:$0xff] %v3865
        %3923 = vst [vmem:[%s164 + $0x80] sm:$0xff] %v3868
        %3924 = vst [vmem:[%s164 + $0x88] sm:$0xff] %v3870
        %3925 = vst [vmem:[%s164 + $0x90] sm:$0xff] %v3873
        %3926 = vst [vmem:[%s164 + $0x98] sm:$0xff] %v3875
        %3927 = vst [vmem:[%s164 + $0xa0] sm:$0xff] %v3878
        %3928 = vst [vmem:[%s164 + $0xa8] sm:$0xff] %v3880
        %3929 = vst [vmem:[%s164 + $0xb0] sm:$0xff] %v3883
        %3930 = vst [vmem:[%s164 + $0xb8] sm:$0xff] %v3885
        %3931 = vst [vmem:[%s164 + $0xc0] sm:$0xff] %v3888
        %3932 = vst [vmem:[%s164 + $0xc8] sm:$0xff] %v3890
        %3933 = vst [vmem:[%s164 + $0xd0] sm:$0xff] %v3893
        %3934 = vst [vmem:[%s164 + $0xd8] sm:$0xff] %v3895
        %3935 = vst [vmem:[%s164 + $0xe0] sm:$0xff] %v3898
        %3936 = vst [vmem:[%s164 + $0xe8] sm:$0xff] %v3900
        %3937 = vst [vmem:[%s164 + $0xf0] sm:$0xff] %v3903
        %3938 = vst [vmem:[%s164 + $0xf8] sm:$0xff] %v3905
        %s3939 = sand.u32 %s93, 1
        %s3940 = scalar_lea.sflag [#allocation3], %s3939
        %s3941 = sand.u32 %s93, 1
        %s3942 = smul.addr %s3941, 256
        %s3943 = scalar_lea.vmem [#allocation2], %s3942
        // Predicated region
        $region33: #{tpu_custom_call.1} parent=31 // pred_check
          %p3944 = pneg %p103
        $region34: #{tpu_custom_call.1} parent=31 // pred_check_branch
          %3946 = sbr.rel (%p3944) target = $region36
        $region35: #{tpu_custom_call.1} parent=31 // pred_region
          %s3947 = smul.u32 32, %s17
          %3949 = vsyncadd %s3940, 0
          %s3950 = smul.addr %s3947, 8
          %s3951 = scalar_lea.hbm %s3, %s3950
          %s3952 = sshll.u32 %s3943, 4
          %s3953 = int_to_ptr.vmem [resolvable:$true] %s3952
          %s3954 = sshll.u32 %s3951, 4
          %s3955 = int_to_ptr.hbm [resolvable:$true] %s3954
          %3960 = dma.vmem_to_hbm [thread:$0]  %s3953, 4096, %s3955, %s3940, 128, 128, 8
        $region36: #{tpu_custom_call.1} parent=31 // pred_fallthru
          _
      $region32: #{tpu_custom_call.1} parent=5 // pred_fallthru
        _
      %p3961 = scmp.le.s32.totalorder 2, %s12
      // Predicated region
      $region37: #{tpu_custom_call.1} parent=5 // pred_check
        %p3962 = pneg %p3961
      $region38: #{tpu_custom_call.1} parent=5 // pred_check_branch
        %3964 = sbr.rel (%p3962) target = $region40
      $region39: #{tpu_custom_call.1} parent=5 // pred_region
        %s3965 = ssub.s32 %s12, 2
        // Predicated region
        $region41: #{tpu_custom_call.1} parent=39 // pred_check
          %p3966 = pneg %p109
        $region42: #{tpu_custom_call.1} parent=39 // pred_check_branch
          %3968 = sbr.rel (%p3966) target = $region44
        $region43: #{tpu_custom_call.1} parent=39 // pred_region
          %s3969 = sand.u32 %s94, 1
          %s3970 = scalar_lea.sflag [#allocation3], %s3969
          %s3971 = sand.u32 %s94, 1
          %s3972 = smul.addr %s3971, 256
          %s3973 = scalar_lea.vmem [#allocation2], %s3972
          %3975 = dma.done %s3970, 4096
        $region44: #{tpu_custom_call.1} parent=39 // pred_fallthru
          _
      $region40: #{tpu_custom_call.1} parent=5 // pred_fallthru
        _
    $region6: #{tpu_custom_call.1} parent=1 // loop_footer
      %s16 = sadd.s32 1, %s12
    $region7: #{tpu_custom_call.1} parent=1 // loop_footer_branch
      %11 = sbr.rel target = $region3
    $region8: #{tpu_custom_call.1} parent=1 // loop_exit
      _
    %3976 = vsyncpa [#allocation3], 1
    %s3977 = scalar_lea.sflag [#allocation3], 1
    %3978 = vsyncpa %s3977, 1

</llo_original>
